<compile_context>
chip_gen: v7x
topology: tpu7x:2x2x1
jax: 0.10.0
libtpu: 0.0.40
codegen_flags: <defaults>
</compile_context>

<pallas_src>
import functools

import jax
import jax.numpy as jnp
from jax.experimental import pallas as pl
from jax.experimental.pallas import tpu as pltpu  # noqa: F401  (TPU backend)


def _lstm_fc_kernel(x_ref, wih_ref, whh_ref, bias_ref, wfc_ref, bfc_ref,
                    out_ref, *, T, B, H):
    """Single invocation: full LSTM recurrence + final FC.

    x_ref    : (T*B, I)  time-major, row t*B + b = (time t, batch b)
    wih_ref  : (4, I, H) per-gate W_ih^T  (PyTorch gate order i, f, g, o)
    whh_ref  : (4, H, H) per-gate W_hh^T
    bias_ref : (4, 1, H) per-gate (b_ih + b_hh)
    wfc_ref  : (H, O_pad) padded W_fc^T
    bfc_ref  : (1, O_pad) padded b_fc
    out_ref  : (B, O_pad)
    """
    x = x_ref[...]                                            # (T*B, I)

    # Hoisted input projections + bias for ALL time steps, per gate.
    # One tiny K=1 matmul each, done once, off the recurrence critical path.
    xw = [jnp.dot(x, wih_ref[k], preferred_element_type=jnp.float32)
          + bias_ref[k]
          for k in range(4)]                                  # each (T*B, H)

    # Recurrent weights resident for the whole loop.
    whh = [whh_ref[k] for k in range(4)]                      # each (H, H)

    h = jnp.zeros((B, H), jnp.float32)
    c = jnp.zeros((B, H), jnp.float32)

    # T is small and static: fully unrolled; h/c stay in vregs, all slices
    # static and sublane-aligned (multiples of B=8 rows).
    for t in range(T):
        lo = t * B
        i_g = jax.nn.sigmoid(
            xw[0][lo:lo + B, :]
            + jnp.dot(h, whh[0], preferred_element_type=jnp.float32))
        f_g = jax.nn.sigmoid(
            xw[1][lo:lo + B, :]
            + jnp.dot(h, whh[1], preferred_element_type=jnp.float32))
        g_g = jnp.tanh(
            xw[2][lo:lo + B, :]
            + jnp.dot(h, whh[2], preferred_element_type=jnp.float32))
        o_g = jax.nn.sigmoid(
            xw[3][lo:lo + B, :]
            + jnp.dot(h, whh[3], preferred_element_type=jnp.float32))
        c = f_g * c + i_g * g_g
        h = o_g * jnp.tanh(c)

    # Final Linear on the last hidden state; lane-dense (B, O_pad) store.
    out = jnp.dot(h, wfc_ref[...], preferred_element_type=jnp.float32) \
          + bfc_ref[...]
    out_ref[...] = out.astype(out_ref.dtype)


def pitch_mix_lstm(x_btI, w_ih, w_hh, b_ih, b_hh, w_fc, b_fc):
    """x_btI: (B, T, I) float32 (PyTorch batch_first). Weights follow PyTorch
    shapes: w_ih (4H, I), w_hh (4H, H), biases (4H,), w_fc (O, H), b_fc (O,).
    Returns (B, O), matching `self.fc(hn[-1])`."""
    B, T, I = x_btI.shape
    fourH = w_ih.shape[0]
    H = fourH // 4
    O = w_fc.shape[0]
    O_pad = max(128, ((O + 127) // 128) * 128)   # lane-dense output width

    # Time-major, flattened rows: row t*B + b.
    x_2d = jnp.transpose(x_btI, (1, 0, 2)).reshape(T * B, I)

    # Per-gate stacked, pre-transposed weights (PyTorch gate order i, f, g, o).
    wih_s = jnp.transpose(w_ih.reshape(4, H, I), (0, 2, 1))   # (4, I, H)
    whh_s = jnp.transpose(w_hh.reshape(4, H, H), (0, 2, 1))   # (4, H, H)
    bias_s = (b_ih + b_hh).reshape(4, 1, H)                   # (4, 1, H)

    # Padded FC weights for a lane-dense output store.
    wfc_pad = jnp.zeros((H, O_pad), jnp.float32).at[:, :O].set(w_fc.T)
    bfc_pad = jnp.zeros((1, O_pad), jnp.float32).at[:, :O].set(
        b_fc.reshape(1, O))

    out_pad = pl.pallas_call(
        functools.partial(_lstm_fc_kernel, T=T, B=B, H=H),
        out_shape=jax.ShapeDtypeStruct((B, O_pad), jnp.float32),
    )(x_2d, wih_s, whh_s, bias_s, wfc_pad, bfc_pad)

    return out_pad[:, :O]


def reference_forward(x_btI, w_ih, w_hh, b_ih, b_hh, w_fc, b_fc):
    """Pure-JAX reference mirroring torch.nn.LSTM(batch_first=True) + Linear."""
    B, T, I = x_btI.shape
    H = w_hh.shape[1]
    h = jnp.zeros((B, H), jnp.float32)
    c = jnp.zeros((B, H), jnp.float32)
    for t in range(T):
        g = x_btI[:, t, :] @ w_ih.T + b_ih + h @ w_hh.T + b_hh
        i_g = jax.nn.sigmoid(g[:, 0 * H:1 * H])
        f_g = jax.nn.sigmoid(g[:, 1 * H:2 * H])
        g_g = jnp.tanh(g[:, 2 * H:3 * H])
        o_g = jax.nn.sigmoid(g[:, 3 * H:4 * H])
        c = f_g * c + i_g * g_g
        h = o_g * jnp.tanh(c)
    return h @ w_fc.T + b_fc


if __name__ == "__main__":
    # Shapes consistent with the module: input_size=1, hidden_size=64,
    # output_size=4 (label-encoder classes), batch=8, seq_len=8.
    B, T, I, H, O = 8, 8, 1, 64, 4

    key = jax.random.PRNGKey(0)
    ks = jax.random.split(key, 7)
    scale = 1.0 / jnp.sqrt(H)  # PyTorch default uniform(-1/sqrt(H), 1/sqrt(H))

    x = jax.random.normal(ks[0], (B, T, I), jnp.float32)
    w_ih = jax.random.uniform(ks[1], (4 * H, I), jnp.float32, -scale, scale)
    w_hh = jax.random.uniform(ks[2], (4 * H, H), jnp.float32, -scale, scale)
    b_ih = jax.random.uniform(ks[3], (4 * H,), jnp.float32, -scale, scale)
    b_hh = jax.random.uniform(ks[4], (4 * H,), jnp.float32, -scale, scale)
    w_fc = jax.random.uniform(ks[5], (O, H), jnp.float32, -scale, scale)
    b_fc = jax.random.uniform(ks[6], (O,), jnp.float32, -scale, scale)

    out = pitch_mix_lstm(x, w_ih, w_hh, b_ih, b_hh, w_fc, b_fc)
    out = jax.block_until_ready(out)

    ref = reference_forward(x, w_ih, w_hh, b_ih, b_hh, w_fc, b_fc)
    assert out.shape == (B, O)
    assert jnp.allclose(out, ref, atol=1e-5, rtol=1e-5), \
        f"mismatch: max abs err {jnp.max(jnp.abs(out - ref))}"

    print("KERNEL_OK")
</pallas_src>

<mosaic_0001>
module attributes {stable_mosaic.version = 11 : i64} {
  func.func @_lstm_fc_kernel(%arg0: memref<64x1xf32, #tpu.memory_space<vmem>>, %arg1: memref<4x1x64xf32, #tpu.memory_space<vmem>>, %arg2: memref<4x64x64xf32, #tpu.memory_space<vmem>>, %arg3: memref<4x1x64xf32, #tpu.memory_space<vmem>>, %arg4: memref<64x128xf32, #tpu.memory_space<vmem>>, %arg5: memref<1x128xf32, #tpu.memory_space<vmem>>, %arg6: memref<8x128xf32, #tpu.memory_space<vmem>>) attributes {dimension_semantics = [], scalar_prefetch = 0 : i64, scratch_operands = 0 : i64, tpu.core_type = #tpu.core_type<tc>} {
    %c0 = arith.constant 0 : index
    %c0_0 = arith.constant 0 : index
    %0 = vector.load %arg0[%c0, %c0_0] : memref<64x1xf32, #tpu.memory_space<vmem>>, vector<64x1xf32>
    %c0_1 = arith.constant 0 : index
    %c0_2 = arith.constant 0 : index
    %c0_3 = arith.constant 0 : index
    %1 = vector.load %arg1[%c0_1, %c0_2, %c0_3] : memref<4x1x64xf32, #tpu.memory_space<vmem>>, vector<1x1x64xf32>
    %2 = vector.shape_cast %1 : vector<1x1x64xf32> to vector<1x64xf32>
    %cst = arith.constant dense<0.000000e+00> : vector<64x64xf32>
    %3 = tpu.matmul %0, %2, %cst {dimension_numbers = #tpu.dot_dimension_numbers<[1], [0], [0], [1], [0, 0, 1, 1], [], []>} : vector<64x1xf32>, vector<1x64xf32>, vector<64x64xf32> -> vector<64x64xf32>
    %c0_4 = arith.constant 0 : index
    %c0_5 = arith.constant 0 : index
    %c0_6 = arith.constant 0 : index
    %4 = vector.load %arg3[%c0_4, %c0_5, %c0_6] : memref<4x1x64xf32, #tpu.memory_space<vmem>>, vector<1x1x64xf32>
    %5 = vector.shape_cast %4 : vector<1x1x64xf32> to vector<1x64xf32>
    %6 = vector.broadcast %5 : vector<1x64xf32> to vector<64x64xf32>
    %7 = arith.addf %3, %6 : vector<64x64xf32>
    %c1 = arith.constant 1 : index
    %c0_7 = arith.constant 0 : index
    %c0_8 = arith.constant 0 : index
    %8 = vector.load %arg1[%c1, %c0_7, %c0_8] : memref<4x1x64xf32, #tpu.memory_space<vmem>>, vector<1x1x64xf32>
    %9 = vector.shape_cast %8 : vector<1x1x64xf32> to vector<1x64xf32>
    %cst_9 = arith.constant dense<0.000000e+00> : vector<64x64xf32>
    %10 = tpu.matmul %0, %9, %cst_9 {dimension_numbers = #tpu.dot_dimension_numbers<[1], [0], [0], [1], [0, 0, 1, 1], [], []>} : vector<64x1xf32>, vector<1x64xf32>, vector<64x64xf32> -> vector<64x64xf32>
    %c1_10 = arith.constant 1 : index
    %c0_11 = arith.constant 0 : index
    %c0_12 = arith.constant 0 : index
    %11 = vector.load %arg3[%c1_10, %c0_11, %c0_12] : memref<4x1x64xf32, #tpu.memory_space<vmem>>, vector<1x1x64xf32>
    %12 = vector.shape_cast %11 : vector<1x1x64xf32> to vector<1x64xf32>
    %13 = vector.broadcast %12 : vector<1x64xf32> to vector<64x64xf32>
    %14 = arith.addf %10, %13 : vector<64x64xf32>
    %c2 = arith.constant 2 : index
    %c0_13 = arith.constant 0 : index
    %c0_14 = arith.constant 0 : index
    %15 = vector.load %arg1[%c2, %c0_13, %c0_14] : memref<4x1x64xf32, #tpu.memory_space<vmem>>, vector<1x1x64xf32>
    %16 = vector.shape_cast %15 : vector<1x1x64xf32> to vector<1x64xf32>
    %cst_15 = arith.constant dense<0.000000e+00> : vector<64x64xf32>
    %17 = tpu.matmul %0, %16, %cst_15 {dimension_numbers = #tpu.dot_dimension_numbers<[1], [0], [0], [1], [0, 0, 1, 1], [], []>} : vector<64x1xf32>, vector<1x64xf32>, vector<64x64xf32> -> vector<64x64xf32>
    %c2_16 = arith.constant 2 : index
    %c0_17 = arith.constant 0 : index
    %c0_18 = arith.constant 0 : index
    %18 = vector.load %arg3[%c2_16, %c0_17, %c0_18] : memref<4x1x64xf32, #tpu.memory_space<vmem>>, vector<1x1x64xf32>
    %19 = vector.shape_cast %18 : vector<1x1x64xf32> to vector<1x64xf32>
    %20 = vector.broadcast %19 : vector<1x64xf32> to vector<64x64xf32>
    %21 = arith.addf %17, %20 : vector<64x64xf32>
    %c3 = arith.constant 3 : index
    %c0_19 = arith.constant 0 : index
    %c0_20 = arith.constant 0 : index
    %22 = vector.load %arg1[%c3, %c0_19, %c0_20] : memref<4x1x64xf32, #tpu.memory_space<vmem>>, vector<1x1x64xf32>
    %23 = vector.shape_cast %22 : vector<1x1x64xf32> to vector<1x64xf32>
    %cst_21 = arith.constant dense<0.000000e+00> : vector<64x64xf32>
    %24 = tpu.matmul %0, %23, %cst_21 {dimension_numbers = #tpu.dot_dimension_numbers<[1], [0], [0], [1], [0, 0, 1, 1], [], []>} : vector<64x1xf32>, vector<1x64xf32>, vector<64x64xf32> -> vector<64x64xf32>
    %c3_22 = arith.constant 3 : index
    %c0_23 = arith.constant 0 : index
    %c0_24 = arith.constant 0 : index
    %25 = vector.load %arg3[%c3_22, %c0_23, %c0_24] : memref<4x1x64xf32, #tpu.memory_space<vmem>>, vector<1x1x64xf32>
    %26 = vector.shape_cast %25 : vector<1x1x64xf32> to vector<1x64xf32>
    %27 = vector.broadcast %26 : vector<1x64xf32> to vector<64x64xf32>
    %28 = arith.addf %24, %27 : vector<64x64xf32>
    %c0_25 = arith.constant 0 : index
    %c0_26 = arith.constant 0 : index
    %c0_27 = arith.constant 0 : index
    %29 = vector.load %arg2[%c0_25, %c0_26, %c0_27] : memref<4x64x64xf32, #tpu.memory_space<vmem>>, vector<1x64x64xf32>
    %30 = vector.shape_cast %29 : vector<1x64x64xf32> to vector<64x64xf32>
    %c1_28 = arith.constant 1 : index
    %c0_29 = arith.constant 0 : index
    %c0_30 = arith.constant 0 : index
    %31 = vector.load %arg2[%c1_28, %c0_29, %c0_30] : memref<4x64x64xf32, #tpu.memory_space<vmem>>, vector<1x64x64xf32>
    %32 = vector.shape_cast %31 : vector<1x64x64xf32> to vector<64x64xf32>
    %c2_31 = arith.constant 2 : index
    %c0_32 = arith.constant 0 : index
    %c0_33 = arith.constant 0 : index
    %33 = vector.load %arg2[%c2_31, %c0_32, %c0_33] : memref<4x64x64xf32, #tpu.memory_space<vmem>>, vector<1x64x64xf32>
    %34 = vector.shape_cast %33 : vector<1x64x64xf32> to vector<64x64xf32>
    %c3_34 = arith.constant 3 : index
    %c0_35 = arith.constant 0 : index
    %c0_36 = arith.constant 0 : index
    %35 = vector.load %arg2[%c3_34, %c0_35, %c0_36] : memref<4x64x64xf32, #tpu.memory_space<vmem>>, vector<1x64x64xf32>
    %36 = vector.shape_cast %35 : vector<1x64x64xf32> to vector<64x64xf32>
    %cst_37 = arith.constant 0.000000e+00 : f32
    %37 = vector.broadcast %cst_37 : f32 to vector<8x64xf32>
    %cst_38 = arith.constant 0.000000e+00 : f32
    %38 = vector.broadcast %cst_38 : f32 to vector<8x64xf32>
    %39 = vector.extract_strided_slice %7 {offsets = [0, 0], sizes = [8, 64], strides = [1, 1]} : vector<64x64xf32> to vector<8x64xf32>
    %cst_39 = arith.constant dense<0.000000e+00> : vector<8x64xf32>
    %40 = tpu.matmul %37, %30, %cst_39 {dimension_numbers = #tpu.dot_dimension_numbers<[1], [0], [0], [1], [0, 0, 1, 1], [], []>} : vector<8x64xf32>, vector<64x64xf32>, vector<8x64xf32> -> vector<8x64xf32>
    %41 = arith.addf %39, %40 : vector<8x64xf32>
    %42 = arith.negf %41 : vector<8x64xf32>
    %43 = math.exp %42 : vector<8x64xf32>
    %cst_40 = arith.constant 1.000000e+00 : f32
    %44 = vector.broadcast %cst_40 : f32 to vector<8x64xf32>
    %45 = arith.addf %44, %43 : vector<8x64xf32>
    %46 = arith.divf %44, %45 : vector<8x64xf32>
    %47 = vector.extract_strided_slice %14 {offsets = [0, 0], sizes = [8, 64], strides = [1, 1]} : vector<64x64xf32> to vector<8x64xf32>
    %cst_41 = arith.constant dense<0.000000e+00> : vector<8x64xf32>
    %48 = tpu.matmul %37, %32, %cst_41 {dimension_numbers = #tpu.dot_dimension_numbers<[1], [0], [0], [1], [0, 0, 1, 1], [], []>} : vector<8x64xf32>, vector<64x64xf32>, vector<8x64xf32> -> vector<8x64xf32>
    %49 = arith.addf %47, %48 : vector<8x64xf32>
    %50 = arith.negf %49 : vector<8x64xf32>
    %51 = math.exp %50 : vector<8x64xf32>
    %cst_42 = arith.constant 1.000000e+00 : f32
    %52 = vector.broadcast %cst_42 : f32 to vector<8x64xf32>
    %53 = arith.addf %52, %51 : vector<8x64xf32>
    %54 = arith.divf %52, %53 : vector<8x64xf32>
    %55 = vector.extract_strided_slice %21 {offsets = [0, 0], sizes = [8, 64], strides = [1, 1]} : vector<64x64xf32> to vector<8x64xf32>
    %cst_43 = arith.constant dense<0.000000e+00> : vector<8x64xf32>
    %56 = tpu.matmul %37, %34, %cst_43 {dimension_numbers = #tpu.dot_dimension_numbers<[1], [0], [0], [1], [0, 0, 1, 1], [], []>} : vector<8x64xf32>, vector<64x64xf32>, vector<8x64xf32> -> vector<8x64xf32>
    %57 = arith.addf %55, %56 : vector<8x64xf32>
    %58 = math.tanh %57 : vector<8x64xf32>
    %59 = vector.extract_strided_slice %28 {offsets = [0, 0], sizes = [8, 64], strides = [1, 1]} : vector<64x64xf32> to vector<8x64xf32>
    %cst_44 = arith.constant dense<0.000000e+00> : vector<8x64xf32>
    %60 = tpu.matmul %37, %36, %cst_44 {dimension_numbers = #tpu.dot_dimension_numbers<[1], [0], [0], [1], [0, 0, 1, 1], [], []>} : vector<8x64xf32>, vector<64x64xf32>, vector<8x64xf32> -> vector<8x64xf32>
    %61 = arith.addf %59, %60 : vector<8x64xf32>
    %62 = arith.negf %61 : vector<8x64xf32>
    %63 = math.exp %62 : vector<8x64xf32>
    %cst_45 = arith.constant 1.000000e+00 : f32
    %64 = vector.broadcast %cst_45 : f32 to vector<8x64xf32>
    %65 = arith.addf %64, %63 : vector<8x64xf32>
    %66 = arith.divf %64, %65 : vector<8x64xf32>
    %67 = arith.mulf %54, %38 : vector<8x64xf32>
    %68 = arith.mulf %46, %58 : vector<8x64xf32>
    %69 = arith.addf %67, %68 : vector<8x64xf32>
    %70 = math.tanh %69 : vector<8x64xf32>
    %71 = arith.mulf %66, %70 : vector<8x64xf32>
    %72 = vector.extract_strided_slice %7 {offsets = [8, 0], sizes = [8, 64], strides = [1, 1]} : vector<64x64xf32> to vector<8x64xf32>
    %cst_46 = arith.constant dense<0.000000e+00> : vector<8x64xf32>
    %73 = tpu.matmul %71, %30, %cst_46 {dimension_numbers = #tpu.dot_dimension_numbers<[1], [0], [0], [1], [0, 0, 1, 1], [], []>} : vector<8x64xf32>, vector<64x64xf32>, vector<8x64xf32> -> vector<8x64xf32>
    %74 = arith.addf %72, %73 : vector<8x64xf32>
    %75 = arith.negf %74 : vector<8x64xf32>
    %76 = math.exp %75 : vector<8x64xf32>
    %cst_47 = arith.constant 1.000000e+00 : f32
    %77 = vector.broadcast %cst_47 : f32 to vector<8x64xf32>
    %78 = arith.addf %77, %76 : vector<8x64xf32>
    %79 = arith.divf %77, %78 : vector<8x64xf32>
    %80 = vector.extract_strided_slice %14 {offsets = [8, 0], sizes = [8, 64], strides = [1, 1]} : vector<64x64xf32> to vector<8x64xf32>
    %cst_48 = arith.constant dense<0.000000e+00> : vector<8x64xf32>
    %81 = tpu.matmul %71, %32, %cst_48 {dimension_numbers = #tpu.dot_dimension_numbers<[1], [0], [0], [1], [0, 0, 1, 1], [], []>} : vector<8x64xf32>, vector<64x64xf32>, vector<8x64xf32> -> vector<8x64xf32>
    %82 = arith.addf %80, %81 : vector<8x64xf32>
    %83 = arith.negf %82 : vector<8x64xf32>
    %84 = math.exp %83 : vector<8x64xf32>
    %cst_49 = arith.constant 1.000000e+00 : f32
    %85 = vector.broadcast %cst_49 : f32 to vector<8x64xf32>
    %86 = arith.addf %85, %84 : vector<8x64xf32>
    %87 = arith.divf %85, %86 : vector<8x64xf32>
    %88 = vector.extract_strided_slice %21 {offsets = [8, 0], sizes = [8, 64], strides = [1, 1]} : vector<64x64xf32> to vector<8x64xf32>
    %cst_50 = arith.constant dense<0.000000e+00> : vector<8x64xf32>
    %89 = tpu.matmul %71, %34, %cst_50 {dimension_numbers = #tpu.dot_dimension_numbers<[1], [0], [0], [1], [0, 0, 1, 1], [], []>} : vector<8x64xf32>, vector<64x64xf32>, vector<8x64xf32> -> vector<8x64xf32>
    %90 = arith.addf %88, %89 : vector<8x64xf32>
    %91 = math.tanh %90 : vector<8x64xf32>
    %92 = vector.extract_strided_slice %28 {offsets = [8, 0], sizes = [8, 64], strides = [1, 1]} : vector<64x64xf32> to vector<8x64xf32>
    %cst_51 = arith.constant dense<0.000000e+00> : vector<8x64xf32>
    %93 = tpu.matmul %71, %36, %cst_51 {dimension_numbers = #tpu.dot_dimension_numbers<[1], [0], [0], [1], [0, 0, 1, 1], [], []>} : vector<8x64xf32>, vector<64x64xf32>, vector<8x64xf32> -> vector<8x64xf32>
    %94 = arith.addf %92, %93 : vector<8x64xf32>
    %95 = arith.negf %94 : vector<8x64xf32>
    %96 = math.exp %95 : vector<8x64xf32>
    %cst_52 = arith.constant 1.000000e+00 : f32
    %97 = vector.broadcast %cst_52 : f32 to vector<8x64xf32>
    %98 = arith.addf %97, %96 : vector<8x64xf32>
    %99 = arith.divf %97, %98 : vector<8x64xf32>
    %100 = arith.mulf %87, %69 : vector<8x64xf32>
    %101 = arith.mulf %79, %91 : vector<8x64xf32>
    %102 = arith.addf %100, %101 : vector<8x64xf32>
    %103 = math.tanh %102 : vector<8x64xf32>
    %104 = arith.mulf %99, %103 : vector<8x64xf32>
    %105 = vector.extract_strided_slice %7 {offsets = [16, 0], sizes = [8, 64], strides = [1, 1]} : vector<64x64xf32> to vector<8x64xf32>
    %cst_53 = arith.constant dense<0.000000e+00> : vector<8x64xf32>
    %106 = tpu.matmul %104, %30, %cst_53 {dimension_numbers = #tpu.dot_dimension_numbers<[1], [0], [0], [1], [0, 0, 1, 1], [], []>} : vector<8x64xf32>, vector<64x64xf32>, vector<8x64xf32> -> vector<8x64xf32>
    %107 = arith.addf %105, %106 : vector<8x64xf32>
    %108 = arith.negf %107 : vector<8x64xf32>
    %109 = math.exp %108 : vector<8x64xf32>
    %cst_54 = arith.constant 1.000000e+00 : f32
    %110 = vector.broadcast %cst_54 : f32 to vector<8x64xf32>
    %111 = arith.addf %110, %109 : vector<8x64xf32>
    %112 = arith.divf %110, %111 : vector<8x64xf32>
    %113 = vector.extract_strided_slice %14 {offsets = [16, 0], sizes = [8, 64], strides = [1, 1]} : vector<64x64xf32> to vector<8x64xf32>
    %cst_55 = arith.constant dense<0.000000e+00> : vector<8x64xf32>
    %114 = tpu.matmul %104, %32, %cst_55 {dimension_numbers = #tpu.dot_dimension_numbers<[1], [0], [0], [1], [0, 0, 1, 1], [], []>} : vector<8x64xf32>, vector<64x64xf32>, vector<8x64xf32> -> vector<8x64xf32>
    %115 = arith.addf %113, %114 : vector<8x64xf32>
    %116 = arith.negf %115 : vector<8x64xf32>
    %117 = math.exp %116 : vector<8x64xf32>
    %cst_56 = arith.constant 1.000000e+00 : f32
    %118 = vector.broadcast %cst_56 : f32 to vector<8x64xf32>
    %119 = arith.addf %118, %117 : vector<8x64xf32>
    %120 = arith.divf %118, %119 : vector<8x64xf32>
    %121 = vector.extract_strided_slice %21 {offsets = [16, 0], sizes = [8, 64], strides = [1, 1]} : vector<64x64xf32> to vector<8x64xf32>
    %cst_57 = arith.constant dense<0.000000e+00> : vector<8x64xf32>
    %122 = tpu.matmul %104, %34, %cst_57 {dimension_numbers = #tpu.dot_dimension_numbers<[1], [0], [0], [1], [0, 0, 1, 1], [], []>} : vector<8x64xf32>, vector<64x64xf32>, vector<8x64xf32> -> vector<8x64xf32>
    %123 = arith.addf %121, %122 : vector<8x64xf32>
    %124 = math.tanh %123 : vector<8x64xf32>
    %125 = vector.extract_strided_slice %28 {offsets = [16, 0], sizes = [8, 64], strides = [1, 1]} : vector<64x64xf32> to vector<8x64xf32>
    %cst_58 = arith.constant dense<0.000000e+00> : vector<8x64xf32>
    %126 = tpu.matmul %104, %36, %cst_58 {dimension_numbers = #tpu.dot_dimension_numbers<[1], [0], [0], [1], [0, 0, 1, 1], [], []>} : vector<8x64xf32>, vector<64x64xf32>, vector<8x64xf32> -> vector<8x64xf32>
    %127 = arith.addf %125, %126 : vector<8x64xf32>
    %128 = arith.negf %127 : vector<8x64xf32>
    %129 = math.exp %128 : vector<8x64xf32>
    %cst_59 = arith.constant 1.000000e+00 : f32
    %130 = vector.broadcast %cst_59 : f32 to vector<8x64xf32>
    %131 = arith.addf %130, %129 : vector<8x64xf32>
    %132 = arith.divf %130, %131 : vector<8x64xf32>
    %133 = arith.mulf %120, %102 : vector<8x64xf32>
    %134 = arith.mulf %112, %124 : vector<8x64xf32>
    %135 = arith.addf %133, %134 : vector<8x64xf32>
    %136 = math.tanh %135 : vector<8x64xf32>
    %137 = arith.mulf %132, %136 : vector<8x64xf32>
    %138 = vector.extract_strided_slice %7 {offsets = [24, 0], sizes = [8, 64], strides = [1, 1]} : vector<64x64xf32> to vector<8x64xf32>
    %cst_60 = arith.constant dense<0.000000e+00> : vector<8x64xf32>
    %139 = tpu.matmul %137, %30, %cst_60 {dimension_numbers = #tpu.dot_dimension_numbers<[1], [0], [0], [1], [0, 0, 1, 1], [], []>} : vector<8x64xf32>, vector<64x64xf32>, vector<8x64xf32> -> vector<8x64xf32>
    %140 = arith.addf %138, %139 : vector<8x64xf32>
    %141 = arith.negf %140 : vector<8x64xf32>
    %142 = math.exp %141 : vector<8x64xf32>
    %cst_61 = arith.constant 1.000000e+00 : f32
    %143 = vector.broadcast %cst_61 : f32 to vector<8x64xf32>
    %144 = arith.addf %143, %142 : vector<8x64xf32>
    %145 = arith.divf %143, %144 : vector<8x64xf32>
    %146 = vector.extract_strided_slice %14 {offsets = [24, 0], sizes = [8, 64], strides = [1, 1]} : vector<64x64xf32> to vector<8x64xf32>
    %cst_62 = arith.constant dense<0.000000e+00> : vector<8x64xf32>
    %147 = tpu.matmul %137, %32, %cst_62 {dimension_numbers = #tpu.dot_dimension_numbers<[1], [0], [0], [1], [0, 0, 1, 1], [], []>} : vector<8x64xf32>, vector<64x64xf32>, vector<8x64xf32> -> vector<8x64xf32>
    %148 = arith.addf %146, %147 : vector<8x64xf32>
    %149 = arith.negf %148 : vector<8x64xf32>
    %150 = math.exp %149 : vector<8x64xf32>
    %cst_63 = arith.constant 1.000000e+00 : f32
    %151 = vector.broadcast %cst_63 : f32 to vector<8x64xf32>
    %152 = arith.addf %151, %150 : vector<8x64xf32>
    %153 = arith.divf %151, %152 : vector<8x64xf32>
    %154 = vector.extract_strided_slice %21 {offsets = [24, 0], sizes = [8, 64], strides = [1, 1]} : vector<64x64xf32> to vector<8x64xf32>
    %cst_64 = arith.constant dense<0.000000e+00> : vector<8x64xf32>
    %155 = tpu.matmul %137, %34, %cst_64 {dimension_numbers = #tpu.dot_dimension_numbers<[1], [0], [0], [1], [0, 0, 1, 1], [], []>} : vector<8x64xf32>, vector<64x64xf32>, vector<8x64xf32> -> vector<8x64xf32>
    %156 = arith.addf %154, %155 : vector<8x64xf32>
    %157 = math.tanh %156 : vector<8x64xf32>
    %158 = vector.extract_strided_slice %28 {offsets = [24, 0], sizes = [8, 64], strides = [1, 1]} : vector<64x64xf32> to vector<8x64xf32>
    %cst_65 = arith.constant dense<0.000000e+00> : vector<8x64xf32>
    %159 = tpu.matmul %137, %36, %cst_65 {dimension_numbers = #tpu.dot_dimension_numbers<[1], [0], [0], [1], [0, 0, 1, 1], [], []>} : vector<8x64xf32>, vector<64x64xf32>, vector<8x64xf32> -> vector<8x64xf32>
    %160 = arith.addf %158, %159 : vector<8x64xf32>
    %161 = arith.negf %160 : vector<8x64xf32>
    %162 = math.exp %161 : vector<8x64xf32>
    %cst_66 = arith.constant 1.000000e+00 : f32
    %163 = vector.broadcast %cst_66 : f32 to vector<8x64xf32>
    %164 = arith.addf %163, %162 : vector<8x64xf32>
    %165 = arith.divf %163, %164 : vector<8x64xf32>
    %166 = arith.mulf %153, %135 : vector<8x64xf32>
    %167 = arith.mulf %145, %157 : vector<8x64xf32>
    %168 = arith.addf %166, %167 : vector<8x64xf32>
    %169 = math.tanh %168 : vector<8x64xf32>
    %170 = arith.mulf %165, %169 : vector<8x64xf32>
    %171 = vector.extract_strided_slice %7 {offsets = [32, 0], sizes = [8, 64], strides = [1, 1]} : vector<64x64xf32> to vector<8x64xf32>
    %cst_67 = arith.constant dense<0.000000e+00> : vector<8x64xf32>
    %172 = tpu.matmul %170, %30, %cst_67 {dimension_numbers = #tpu.dot_dimension_numbers<[1], [0], [0], [1], [0, 0, 1, 1], [], []>} : vector<8x64xf32>, vector<64x64xf32>, vector<8x64xf32> -> vector<8x64xf32>
    %173 = arith.addf %171, %172 : vector<8x64xf32>
    %174 = arith.negf %173 : vector<8x64xf32>
    %175 = math.exp %174 : vector<8x64xf32>
    %cst_68 = arith.constant 1.000000e+00 : f32
    %176 = vector.broadcast %cst_68 : f32 to vector<8x64xf32>
    %177 = arith.addf %176, %175 : vector<8x64xf32>
    %178 = arith.divf %176, %177 : vector<8x64xf32>
    %179 = vector.extract_strided_slice %14 {offsets = [32, 0], sizes = [8, 64], strides = [1, 1]} : vector<64x64xf32> to vector<8x64xf32>
    %cst_69 = arith.constant dense<0.000000e+00> : vector<8x64xf32>
    %180 = tpu.matmul %170, %32, %cst_69 {dimension_numbers = #tpu.dot_dimension_numbers<[1], [0], [0], [1], [0, 0, 1, 1], [], []>} : vector<8x64xf32>, vector<64x64xf32>, vector<8x64xf32> -> vector<8x64xf32>
    %181 = arith.addf %179, %180 : vector<8x64xf32>
    %182 = arith.negf %181 : vector<8x64xf32>
    %183 = math.exp %182 : vector<8x64xf32>
    %cst_70 = arith.constant 1.000000e+00 : f32
    %184 = vector.broadcast %cst_70 : f32 to vector<8x64xf32>
    %185 = arith.addf %184, %183 : vector<8x64xf32>
    %186 = arith.divf %184, %185 : vector<8x64xf32>
    %187 = vector.extract_strided_slice %21 {offsets = [32, 0], sizes = [8, 64], strides = [1, 1]} : vector<64x64xf32> to vector<8x64xf32>
    %cst_71 = arith.constant dense<0.000000e+00> : vector<8x64xf32>
    %188 = tpu.matmul %170, %34, %cst_71 {dimension_numbers = #tpu.dot_dimension_numbers<[1], [0], [0], [1], [0, 0, 1, 1], [], []>} : vector<8x64xf32>, vector<64x64xf32>, vector<8x64xf32> -> vector<8x64xf32>
    %189 = arith.addf %187, %188 : vector<8x64xf32>
    %190 = math.tanh %189 : vector<8x64xf32>
    %191 = vector.extract_strided_slice %28 {offsets = [32, 0], sizes = [8, 64], strides = [1, 1]} : vector<64x64xf32> to vector<8x64xf32>
    %cst_72 = arith.constant dense<0.000000e+00> : vector<8x64xf32>
    %192 = tpu.matmul %170, %36, %cst_72 {dimension_numbers = #tpu.dot_dimension_numbers<[1], [0], [0], [1], [0, 0, 1, 1], [], []>} : vector<8x64xf32>, vector<64x64xf32>, vector<8x64xf32> -> vector<8x64xf32>
    %193 = arith.addf %191, %192 : vector<8x64xf32>
    %194 = arith.negf %193 : vector<8x64xf32>
    %195 = math.exp %194 : vector<8x64xf32>
    %cst_73 = arith.constant 1.000000e+00 : f32
    %196 = vector.broadcast %cst_73 : f32 to vector<8x64xf32>
    %197 = arith.addf %196, %195 : vector<8x64xf32>
    %198 = arith.divf %196, %197 : vector<8x64xf32>
    %199 = arith.mulf %186, %168 : vector<8x64xf32>
    %200 = arith.mulf %178, %190 : vector<8x64xf32>
    %201 = arith.addf %199, %200 : vector<8x64xf32>
    %202 = math.tanh %201 : vector<8x64xf32>
    %203 = arith.mulf %198, %202 : vector<8x64xf32>
    %204 = vector.extract_strided_slice %7 {offsets = [40, 0], sizes = [8, 64], strides = [1, 1]} : vector<64x64xf32> to vector<8x64xf32>
    %cst_74 = arith.constant dense<0.000000e+00> : vector<8x64xf32>
    %205 = tpu.matmul %203, %30, %cst_74 {dimension_numbers = #tpu.dot_dimension_numbers<[1], [0], [0], [1], [0, 0, 1, 1], [], []>} : vector<8x64xf32>, vector<64x64xf32>, vector<8x64xf32> -> vector<8x64xf32>
    %206 = arith.addf %204, %205 : vector<8x64xf32>
    %207 = arith.negf %206 : vector<8x64xf32>
    %208 = math.exp %207 : vector<8x64xf32>
    %cst_75 = arith.constant 1.000000e+00 : f32
    %209 = vector.broadcast %cst_75 : f32 to vector<8x64xf32>
    %210 = arith.addf %209, %208 : vector<8x64xf32>
    %211 = arith.divf %209, %210 : vector<8x64xf32>
    %212 = vector.extract_strided_slice %14 {offsets = [40, 0], sizes = [8, 64], strides = [1, 1]} : vector<64x64xf32> to vector<8x64xf32>
    %cst_76 = arith.constant dense<0.000000e+00> : vector<8x64xf32>
    %213 = tpu.matmul %203, %32, %cst_76 {dimension_numbers = #tpu.dot_dimension_numbers<[1], [0], [0], [1], [0, 0, 1, 1], [], []>} : vector<8x64xf32>, vector<64x64xf32>, vector<8x64xf32> -> vector<8x64xf32>
    %214 = arith.addf %212, %213 : vector<8x64xf32>
    %215 = arith.negf %214 : vector<8x64xf32>
    %216 = math.exp %215 : vector<8x64xf32>
    %cst_77 = arith.constant 1.000000e+00 : f32
    %217 = vector.broadcast %cst_77 : f32 to vector<8x64xf32>
    %218 = arith.addf %217, %216 : vector<8x64xf32>
    %219 = arith.divf %217, %218 : vector<8x64xf32>
    %220 = vector.extract_strided_slice %21 {offsets = [40, 0], sizes = [8, 64], strides = [1, 1]} : vector<64x64xf32> to vector<8x64xf32>
    %cst_78 = arith.constant dense<0.000000e+00> : vector<8x64xf32>
    %221 = tpu.matmul %203, %34, %cst_78 {dimension_numbers = #tpu.dot_dimension_numbers<[1], [0], [0], [1], [0, 0, 1, 1], [], []>} : vector<8x64xf32>, vector<64x64xf32>, vector<8x64xf32> -> vector<8x64xf32>
    %222 = arith.addf %220, %221 : vector<8x64xf32>
    %223 = math.tanh %222 : vector<8x64xf32>
    %224 = vector.extract_strided_slice %28 {offsets = [40, 0], sizes = [8, 64], strides = [1, 1]} : vector<64x64xf32> to vector<8x64xf32>
    %cst_79 = arith.constant dense<0.000000e+00> : vector<8x64xf32>
    %225 = tpu.matmul %203, %36, %cst_79 {dimension_numbers = #tpu.dot_dimension_numbers<[1], [0], [0], [1], [0, 0, 1, 1], [], []>} : vector<8x64xf32>, vector<64x64xf32>, vector<8x64xf32> -> vector<8x64xf32>
    %226 = arith.addf %224, %225 : vector<8x64xf32>
    %227 = arith.negf %226 : vector<8x64xf32>
    %228 = math.exp %227 : vector<8x64xf32>
    %cst_80 = arith.constant 1.000000e+00 : f32
    %229 = vector.broadcast %cst_80 : f32 to vector<8x64xf32>
    %230 = arith.addf %229, %228 : vector<8x64xf32>
    %231 = arith.divf %229, %230 : vector<8x64xf32>
    %232 = arith.mulf %219, %201 : vector<8x64xf32>
    %233 = arith.mulf %211, %223 : vector<8x64xf32>
    %234 = arith.addf %232, %233 : vector<8x64xf32>
    %235 = math.tanh %234 : vector<8x64xf32>
    %236 = arith.mulf %231, %235 : vector<8x64xf32>
    %237 = vector.extract_strided_slice %7 {offsets = [48, 0], sizes = [8, 64], strides = [1, 1]} : vector<64x64xf32> to vector<8x64xf32>
    %cst_81 = arith.constant dense<0.000000e+00> : vector<8x64xf32>
    %238 = tpu.matmul %236, %30, %cst_81 {dimension_numbers = #tpu.dot_dimension_numbers<[1], [0], [0], [1], [0, 0, 1, 1], [], []>} : vector<8x64xf32>, vector<64x64xf32>, vector<8x64xf32> -> vector<8x64xf32>
    %239 = arith.addf %237, %238 : vector<8x64xf32>
    %240 = arith.negf %239 : vector<8x64xf32>
    %241 = math.exp %240 : vector<8x64xf32>
    %cst_82 = arith.constant 1.000000e+00 : f32
    %242 = vector.broadcast %cst_82 : f32 to vector<8x64xf32>
    %243 = arith.addf %242, %241 : vector<8x64xf32>
    %244 = arith.divf %242, %243 : vector<8x64xf32>
    %245 = vector.extract_strided_slice %14 {offsets = [48, 0], sizes = [8, 64], strides = [1, 1]} : vector<64x64xf32> to vector<8x64xf32>
    %cst_83 = arith.constant dense<0.000000e+00> : vector<8x64xf32>
    %246 = tpu.matmul %236, %32, %cst_83 {dimension_numbers = #tpu.dot_dimension_numbers<[1], [0], [0], [1], [0, 0, 1, 1], [], []>} : vector<8x64xf32>, vector<64x64xf32>, vector<8x64xf32> -> vector<8x64xf32>
    %247 = arith.addf %245, %246 : vector<8x64xf32>
    %248 = arith.negf %247 : vector<8x64xf32>
    %249 = math.exp %248 : vector<8x64xf32>
    %cst_84 = arith.constant 1.000000e+00 : f32
    %250 = vector.broadcast %cst_84 : f32 to vector<8x64xf32>
    %251 = arith.addf %250, %249 : vector<8x64xf32>
    %252 = arith.divf %250, %251 : vector<8x64xf32>
    %253 = vector.extract_strided_slice %21 {offsets = [48, 0], sizes = [8, 64], strides = [1, 1]} : vector<64x64xf32> to vector<8x64xf32>
    %cst_85 = arith.constant dense<0.000000e+00> : vector<8x64xf32>
    %254 = tpu.matmul %236, %34, %cst_85 {dimension_numbers = #tpu.dot_dimension_numbers<[1], [0], [0], [1], [0, 0, 1, 1], [], []>} : vector<8x64xf32>, vector<64x64xf32>, vector<8x64xf32> -> vector<8x64xf32>
    %255 = arith.addf %253, %254 : vector<8x64xf32>
    %256 = math.tanh %255 : vector<8x64xf32>
    %257 = vector.extract_strided_slice %28 {offsets = [48, 0], sizes = [8, 64], strides = [1, 1]} : vector<64x64xf32> to vector<8x64xf32>
    %cst_86 = arith.constant dense<0.000000e+00> : vector<8x64xf32>
    %258 = tpu.matmul %236, %36, %cst_86 {dimension_numbers = #tpu.dot_dimension_numbers<[1], [0], [0], [1], [0, 0, 1, 1], [], []>} : vector<8x64xf32>, vector<64x64xf32>, vector<8x64xf32> -> vector<8x64xf32>
    %259 = arith.addf %257, %258 : vector<8x64xf32>
    %260 = arith.negf %259 : vector<8x64xf32>
    %261 = math.exp %260 : vector<8x64xf32>
    %cst_87 = arith.constant 1.000000e+00 : f32
    %262 = vector.broadcast %cst_87 : f32 to vector<8x64xf32>
    %263 = arith.addf %262, %261 : vector<8x64xf32>
    %264 = arith.divf %262, %263 : vector<8x64xf32>
    %265 = arith.mulf %252, %234 : vector<8x64xf32>
    %266 = arith.mulf %244, %256 : vector<8x64xf32>
    %267 = arith.addf %265, %266 : vector<8x64xf32>
    %268 = math.tanh %267 : vector<8x64xf32>
    %269 = arith.mulf %264, %268 : vector<8x64xf32>
    %270 = vector.extract_strided_slice %7 {offsets = [56, 0], sizes = [8, 64], strides = [1, 1]} : vector<64x64xf32> to vector<8x64xf32>
    %cst_88 = arith.constant dense<0.000000e+00> : vector<8x64xf32>
    %271 = tpu.matmul %269, %30, %cst_88 {dimension_numbers = #tpu.dot_dimension_numbers<[1], [0], [0], [1], [0, 0, 1, 1], [], []>} : vector<8x64xf32>, vector<64x64xf32>, vector<8x64xf32> -> vector<8x64xf32>
    %272 = arith.addf %270, %271 : vector<8x64xf32>
    %273 = arith.negf %272 : vector<8x64xf32>
    %274 = math.exp %273 : vector<8x64xf32>
    %cst_89 = arith.constant 1.000000e+00 : f32
    %275 = vector.broadcast %cst_89 : f32 to vector<8x64xf32>
    %276 = arith.addf %275, %274 : vector<8x64xf32>
    %277 = arith.divf %275, %276 : vector<8x64xf32>
    %278 = vector.extract_strided_slice %14 {offsets = [56, 0], sizes = [8, 64], strides = [1, 1]} : vector<64x64xf32> to vector<8x64xf32>
    %cst_90 = arith.constant dense<0.000000e+00> : vector<8x64xf32>
    %279 = tpu.matmul %269, %32, %cst_90 {dimension_numbers = #tpu.dot_dimension_numbers<[1], [0], [0], [1], [0, 0, 1, 1], [], []>} : vector<8x64xf32>, vector<64x64xf32>, vector<8x64xf32> -> vector<8x64xf32>
    %280 = arith.addf %278, %279 : vector<8x64xf32>
    %281 = arith.negf %280 : vector<8x64xf32>
    %282 = math.exp %281 : vector<8x64xf32>
    %cst_91 = arith.constant 1.000000e+00 : f32
    %283 = vector.broadcast %cst_91 : f32 to vector<8x64xf32>
    %284 = arith.addf %283, %282 : vector<8x64xf32>
    %285 = arith.divf %283, %284 : vector<8x64xf32>
    %286 = vector.extract_strided_slice %21 {offsets = [56, 0], sizes = [8, 64], strides = [1, 1]} : vector<64x64xf32> to vector<8x64xf32>
    %cst_92 = arith.constant dense<0.000000e+00> : vector<8x64xf32>
    %287 = tpu.matmul %269, %34, %cst_92 {dimension_numbers = #tpu.dot_dimension_numbers<[1], [0], [0], [1], [0, 0, 1, 1], [], []>} : vector<8x64xf32>, vector<64x64xf32>, vector<8x64xf32> -> vector<8x64xf32>
    %288 = arith.addf %286, %287 : vector<8x64xf32>
    %289 = math.tanh %288 : vector<8x64xf32>
    %290 = vector.extract_strided_slice %28 {offsets = [56, 0], sizes = [8, 64], strides = [1, 1]} : vector<64x64xf32> to vector<8x64xf32>
    %cst_93 = arith.constant dense<0.000000e+00> : vector<8x64xf32>
    %291 = tpu.matmul %269, %36, %cst_93 {dimension_numbers = #tpu.dot_dimension_numbers<[1], [0], [0], [1], [0, 0, 1, 1], [], []>} : vector<8x64xf32>, vector<64x64xf32>, vector<8x64xf32> -> vector<8x64xf32>
    %292 = arith.addf %290, %291 : vector<8x64xf32>
    %293 = arith.negf %292 : vector<8x64xf32>
    %294 = math.exp %293 : vector<8x64xf32>
    %cst_94 = arith.constant 1.000000e+00 : f32
    %295 = vector.broadcast %cst_94 : f32 to vector<8x64xf32>
    %296 = arith.addf %295, %294 : vector<8x64xf32>
    %297 = arith.divf %295, %296 : vector<8x64xf32>
    %298 = arith.mulf %285, %267 : vector<8x64xf32>
    %299 = arith.mulf %277, %289 : vector<8x64xf32>
    %300 = arith.addf %298, %299 : vector<8x64xf32>
    %301 = math.tanh %300 : vector<8x64xf32>
    %302 = arith.mulf %297, %301 : vector<8x64xf32>
    %c0_95 = arith.constant 0 : index
    %c0_96 = arith.constant 0 : index
    %303 = vector.load %arg4[%c0_95, %c0_96] : memref<64x128xf32, #tpu.memory_space<vmem>>, vector<64x128xf32>
    %cst_97 = arith.constant dense<0.000000e+00> : vector<8x128xf32>
    %304 = tpu.matmul %302, %303, %cst_97 {dimension_numbers = #tpu.dot_dimension_numbers<[1], [0], [0], [1], [0, 0, 1, 1], [], []>} : vector<8x64xf32>, vector<64x128xf32>, vector<8x128xf32> -> vector<8x128xf32>
    %c0_98 = arith.constant 0 : index
    %c0_99 = arith.constant 0 : index
    %305 = vector.load %arg5[%c0_98, %c0_99] : memref<1x128xf32, #tpu.memory_space<vmem>>, vector<1x128xf32>
    %306 = vector.broadcast %305 : vector<1x128xf32> to vector<8x128xf32>
    %307 = arith.addf %304, %306 : vector<8x128xf32>
    %c0_100 = arith.constant 0 : index
    %c0_101 = arith.constant 0 : index
    %308 = vector.load %arg6[%c0_100, %c0_101] : memref<8x128xf32, #tpu.memory_space<vmem>>, vector<8x128xf32>
    tpu.vector_store %arg6[%c0_100, %c0_101], %307 {strides = array<i32>} : memref<8x128xf32, #tpu.memory_space<vmem>>, vector<8x128xf32>,
    return
  }
}

</mosaic_0001>

<llo_original>
// kernel: tpu_custom_call.1
$region0: #{tpu_custom_call.1}
  #allocation0 [shape = 'u32[]', space=smem, size = 0x4, offset = 0x4, fixed_abs, tag = 'smem constant byte address 0x4 - core index']
  #allocation1 [shape = 'u32[144,128]{1,0:T(1,128)}', space=vmem, size = 0x12000, scoped, tag = 'internal scratch']
  %s0 = inlined_call_operand.vmem [shape: f32[64,1], index: 0, kind: input, shape index: {}]
  %s1 = inlined_call_operand.vmem [shape: f32[4,1,64], index: 1, kind: input, shape index: {}]
  %s2 = inlined_call_operand.hbm [shape: f32[4,64,64], index: 2, kind: input, shape index: {}]
  %s3 = inlined_call_operand.vmem [shape: f32[4,1,64], index: 3, kind: input, shape index: {}]
  %s4 = inlined_call_operand.vmem [shape: f32[64,128], index: 4, kind: input, shape index: {}]
  %s5 = inlined_call_operand.vmem [shape: f32[1,128], index: 5, kind: input, shape index: {}]
  %s6 = inlined_call_operand.hbm [shape: f32[8,128], index: 6, kind: output, shape index: {}]
  %s7 = sld [smem:[#allocation0]]
  $region38: #{tpu_custom_call.1} parent=0
    _
  %s9 = ssub.s32 1, %s7
  %s10 = scalar_select 0, %s9, %s7
  $region1: #{tpu_custom_call.1} parent=0
    #allocation2 [shape = 'u8[131072]{0}', space=vmem, size = 0x20000, scoped, tag = 'input window, operand 2, single buffered']
    #allocation3 [shape = 's32[1]{0}', space=sflag, size = 0x4, scoped, tag = 'scoped memory for tpu_custom_call.1']
    #allocation4 [shape = 's32[1]{0}', space=sflag, size = 0x4, scoped, tag = 'scoped memory for tpu_custom_call.1']
    #allocation5 [shape = 'u8[4096]{0}', space=vmem, size = 0x1000, scoped, tag = 'output window, operand 0, single buffered']
    %11 = vsyncpa [#allocation3], 0
    %12 = vsyncpa [#allocation4], 0
    // Predicated region
    $region2: #{tpu_custom_call.1} parent=1 // pred_check
      _
    $region3: #{tpu_custom_call.1} parent=1 // pred_check_branch
      %14 = sbr.rel (0) target = $region5
    $region4: #{tpu_custom_call.1} parent=1 // pred_region
      _
    $region5: #{tpu_custom_call.1} parent=1 // pred_fallthru
      _
    // Predicated region
    $region6: #{tpu_custom_call.1} parent=1 // pred_check
      _
    $region7: #{tpu_custom_call.1} parent=1 // pred_check_branch
      %16 = sbr.rel (0) target = $region9
    $region8: #{tpu_custom_call.1} parent=1 // pred_region
      _
    $region9: #{tpu_custom_call.1} parent=1 // pred_fallthru
      _
    // Predicated region
    $region10: #{tpu_custom_call.1} parent=1 // pred_check
      _
    $region11: #{tpu_custom_call.1} parent=1 // pred_check_branch
      %18 = sbr.rel (0) target = $region13
    $region12: #{tpu_custom_call.1} parent=1 // pred_region
      %s20 = ssub.s32 4096, 4096
      %21 = vsyncadd [#allocation3], %s20
      %s22 = sshll.u32 [#allocation2], 4
      %s23 = int_to_ptr.vmem [resolvable:$true] %s22
      %28 = dma.hbm_to_vmem [thread:$0]  %s2, 4096, %s23, [#allocation3], 128, 128, 8
    $region13: #{tpu_custom_call.1} parent=1 // pred_fallthru
      _
    // Predicated region
    $region14: #{tpu_custom_call.1} parent=1 // pred_check
      _
    $region15: #{tpu_custom_call.1} parent=1 // pred_check_branch
      %30 = sbr.rel (0) target = $region17
    $region16: #{tpu_custom_call.1} parent=1 // pred_region
      _
    $region17: #{tpu_custom_call.1} parent=1 // pred_fallthru
      _
    // Predicated region
    $region18: #{tpu_custom_call.1} parent=1 // pred_check
      _
    $region19: #{tpu_custom_call.1} parent=1 // pred_check_branch
      %32 = sbr.rel (0) target = $region21
    $region20: #{tpu_custom_call.1} parent=1 // pred_region
      _
    $region21: #{tpu_custom_call.1} parent=1 // pred_fallthru
      _
    // Predicated region
    $region22: #{tpu_custom_call.1} parent=1 // pred_check
      _
    $region23: #{tpu_custom_call.1} parent=1 // pred_check_branch
      %34 = sbr.rel (0) target = $region25
    $region24: #{tpu_custom_call.1} parent=1 // pred_region
      _
    $region25: #{tpu_custom_call.1} parent=1 // pred_fallthru
      _
    // Predicated region
    $region26: #{tpu_custom_call.1} parent=1 // pred_check
      _
    $region27: #{tpu_custom_call.1} parent=1 // pred_check_branch
      %36 = sbr.rel (0) target = $region29
    $region28: #{tpu_custom_call.1} parent=1 // pred_region
      %37 = dma.done [#allocation3], 4096
    $region29: #{tpu_custom_call.1} parent=1 // pred_fallthru
      _
    %v38 = vld [vmem:[%s0] sm:$0xff]
    %v39 = vld [vmem:[%s0 + $0x8] sm:$0xff]
    %v40 = vld [vmem:[%s0 + $0x10] sm:$0xff]
    %v41 = vld [vmem:[%s0 + $0x18] sm:$0xff]
    %v42 = vld [vmem:[%s0 + $0x20] sm:$0xff]
    %v43 = vld [vmem:[%s0 + $0x28] sm:$0xff]
    %v44 = vld [vmem:[%s0 + $0x30] sm:$0xff]
    %v45 = vld [vmem:[%s0 + $0x38] sm:$0xff]
    %v46 = vld [vmem:[%s1] sm:$0x1]
    %v47 = vld [vmem:[%s3] sm:$0x1]
    %v49 = vlaneseq
    %v50 = vshrl.u32 %v49, 7
    %v51 = vsub.s32 0, %v50
    %v52 = vrot.slane %v47, %v51
    %vm54 = vcmask 7168
    %v56 = vsel %vm54, %v38, 0
    %v59 = vsel %vm54, %v39, 0
    %v62 = vsel %vm54, %v40, 0
    %v65 = vsel %vm54, %v41, 0
    %v68 = vsel %vm54, %v42, 0
    %v71 = vsel %vm54, %v43, 0
    %v74 = vsel %vm54, %v44, 0
    %v77 = vsel %vm54, %v45, 0
    %vm79 = vcmask 1040384
    %v81 = vsel %vm79, %v46, 0
    %83 = vmatprep.subr.mxu0 0.0
    %84 = vmatpush1.msra.mxu0 %v81
    %85 = vmatprep.subr.mxu0 0.0
    %86 = vmatpush1.msra.mxu0 0.0
    %87 = vmatprep.subr.mxu0 0.0
    %88 = vmatpush1.msra.mxu0 0.0
    %89 = vmatprep.subr.mxu0 0.0
    %90 = vmatpush1.msra.mxu0 0.0
    %91 = vmatprep.subr.mxu0 0.0
    %92 = vmatpush1.msra.mxu0 0.0
    %93 = vmatprep.subr.mxu0 0.0
    %94 = vmatpush1.msra.mxu0 0.0
    %95 = vmatprep.subr.mxu0 0.0
    %96 = vmatpush1.msra.mxu0 0.0
    %97 = vmatprep.subr.mxu0 0.0
    %98 = vmatpush1.msra.mxu0 0.0
    %99 = vmatprep.subr.mxu0 0.0
    %100 = vmatpush1.msra.mxu0 0.0
    %101 = vmatprep.subr.mxu0 0.0
    %102 = vmatpush1.msra.mxu0 0.0
    %103 = vmatprep.subr.mxu0 0.0
    %104 = vmatpush1.msra.mxu0 0.0
    %105 = vmatprep.subr.mxu0 0.0
    %106 = vmatpush1.msra.mxu0 0.0
    %107 = vmatprep.subr.mxu0 0.0
    %108 = vmatpush1.msra.mxu0 0.0
    %109 = vmatprep.subr.mxu0 0.0
    %110 = vmatpush1.msra.mxu0 0.0
    %111 = vmatprep.subr.mxu0 0.0
    %112 = vmatpush1.msra.mxu0 0.0
    %113 = vmatprep.subr.mxu0 0.0
    %114 = vmatpush1.msra.mxu0 0.0
    %115 = vmatprep.subr.mxu0 0.0
    %116 = vmatpush1.msra.mxu0 0.0
    %117 = vmatprep.subr.mxu0 0.0
    %118 = vmatpush1.msra.mxu0 0.0
    %119 = vmatprep.subr.mxu0 0.0
    %120 = vmatpush1.msra.mxu0 0.0
    %121 = vmatprep.subr.mxu0 0.0
    %122 = vmatpush1.msra.mxu0 0.0
    %123 = vmatprep.subr.mxu0 0.0
    %124 = vmatpush1.msra.mxu0 0.0
    %125 = vmatprep.subr.mxu0 0.0
    %126 = vmatpush1.msra.mxu0 0.0
    %127 = vmatprep.subr.mxu0 0.0
    %128 = vmatpush1.msra.mxu0 0.0
    %129 = vmatprep.subr.mxu0 0.0
    %130 = vmatpush1.msra.mxu0 0.0
    %131 = vmatprep.subr.mxu0 0.0
    %132 = vmatpush1.msra.mxu0 0.0
    %133 = vmatprep.subr.mxu0 0.0
    %134 = vmatpush1.msra.mxu0 0.0
    %135 = vmatprep.subr.mxu0 0.0
    %136 = vmatpush1.msra.mxu0 0.0
    %137 = vmatprep.subr.mxu0 0.0
    %138 = vmatpush1.msra.mxu0 0.0
    %139 = vmatprep.subr.mxu0 0.0
    %140 = vmatpush1.msra.mxu0 0.0
    %141 = vmatprep.subr.mxu0 0.0
    %142 = vmatpush1.msra.mxu0 0.0
    %143 = vmatprep.subr.mxu0 0.0
    %144 = vmatpush1.msra.mxu0 0.0
    %145 = vmatprep.subr.mxu0 0.0
    %146 = vmatpush1.msra.mxu0 0.0
    %147 = vmatprep.mubr.f32.mxu0 0.0
    %148 = vmatmul.mubr.f32.gmra.mrb[0].mxu0 %v56
    %v149 = vpop.f32.mrb[0].mxu0
    %v150 = vadd.f32 %v52, %v149
    %v151 = vpop.f32.mrb[0].mxu0
    %152 = vmatprep.mubr.f32.mxu0 0.0
    %153 = vmatmul.mubr.f32.gmra.mrb[0].mxu0 %v59
    %v154 = vpop.f32.mrb[0].mxu0
    %v155 = vadd.f32 %v52, %v154
    %v156 = vpop.f32.mrb[0].mxu0
    %157 = vmatprep.mubr.f32.mxu0 0.0
    %158 = vmatmul.mubr.f32.gmra.mrb[0].mxu0 %v62
    %v159 = vpop.f32.mrb[0].mxu0
    %v160 = vadd.f32 %v52, %v159
    %v161 = vpop.f32.mrb[0].mxu0
    %162 = vmatprep.mubr.f32.mxu0 0.0
    %163 = vmatmul.mubr.f32.gmra.mrb[0].mxu0 %v65
    %v164 = vpop.f32.mrb[0].mxu0
    %v165 = vadd.f32 %v52, %v164
    %v166 = vpop.f32.mrb[0].mxu0
    %167 = vmatprep.mubr.f32.mxu0 0.0
    %168 = vmatmul.mubr.f32.gmra.mrb[0].mxu0 %v68
    %v169 = vpop.f32.mrb[0].mxu0
    %v170 = vadd.f32 %v52, %v169
    %v171 = vpop.f32.mrb[0].mxu0
    %172 = vmatprep.mubr.f32.mxu0 0.0
    %173 = vmatmul.mubr.f32.gmra.mrb[0].mxu0 %v71
    %v174 = vpop.f32.mrb[0].mxu0
    %v175 = vadd.f32 %v52, %v174
    %v176 = vpop.f32.mrb[0].mxu0
    %177 = vmatprep.mubr.f32.mxu0 0.0
    %178 = vmatmul.mubr.f32.gmra.mrb[0].mxu0 %v74
    %v179 = vpop.f32.mrb[0].mxu0
    %v180 = vadd.f32 %v52, %v179
    %v181 = vpop.f32.mrb[0].mxu0
    %182 = vmatprep.mubr.f32.mxu0 0.0
    %183 = vmatmul.mubr.f32.gmra.mrb[0].mxu0 %v77
    %v184 = vpop.f32.mrb[0].mxu0
    %v185 = vadd.f32 %v52, %v184
    %v186 = vpop.f32.mrb[0].mxu0
    %187 = vdwg.mxu0
    %s188 = scalar_lea.vmem %s1, 1
    %v189 = vld [vmem:[%s188] sm:$0x1]
    %s190 = scalar_lea.vmem %s3, 1
    %v191 = vld [vmem:[%s190] sm:$0x1]
    %v193 = vlaneseq
    %v194 = vshrl.u32 %v193, 7
    %v195 = vsub.s32 0, %v194
    %v196 = vrot.slane %v191, %v195
    %v199 = vsel %vm79, %v189, 0
    %201 = vmatprep.subr.mxu0 0.0
    %202 = vmatpush1.msra.mxu0 %v199
    %203 = vmatprep.subr.mxu0 0.0
    %204 = vmatpush1.msra.mxu0 0.0
    %205 = vmatprep.subr.mxu0 0.0
    %206 = vmatpush1.msra.mxu0 0.0
    %207 = vmatprep.subr.mxu0 0.0
    %208 = vmatpush1.msra.mxu0 0.0
    %209 = vmatprep.subr.mxu0 0.0
    %210 = vmatpush1.msra.mxu0 0.0
    %211 = vmatprep.subr.mxu0 0.0
    %212 = vmatpush1.msra.mxu0 0.0
    %213 = vmatprep.subr.mxu0 0.0
    %214 = vmatpush1.msra.mxu0 0.0
    %215 = vmatprep.subr.mxu0 0.0
    %216 = vmatpush1.msra.mxu0 0.0
    %217 = vmatprep.subr.mxu0 0.0
    %218 = vmatpush1.msra.mxu0 0.0
    %219 = vmatprep.subr.mxu0 0.0
    %220 = vmatpush1.msra.mxu0 0.0
    %221 = vmatprep.subr.mxu0 0.0
    %222 = vmatpush1.msra.mxu0 0.0
    %223 = vmatprep.subr.mxu0 0.0
    %224 = vmatpush1.msra.mxu0 0.0
    %225 = vmatprep.subr.mxu0 0.0
    %226 = vmatpush1.msra.mxu0 0.0
    %227 = vmatprep.subr.mxu0 0.0
    %228 = vmatpush1.msra.mxu0 0.0
    %229 = vmatprep.subr.mxu0 0.0
    %230 = vmatpush1.msra.mxu0 0.0
    %231 = vmatprep.subr.mxu0 0.0
    %232 = vmatpush1.msra.mxu0 0.0
    %233 = vmatprep.subr.mxu0 0.0
    %234 = vmatpush1.msra.mxu0 0.0
    %235 = vmatprep.subr.mxu0 0.0
    %236 = vmatpush1.msra.mxu0 0.0
    %237 = vmatprep.subr.mxu0 0.0
    %238 = vmatpush1.msra.mxu0 0.0
    %239 = vmatprep.subr.mxu0 0.0
    %240 = vmatpush1.msra.mxu0 0.0
    %241 = vmatprep.subr.mxu0 0.0
    %242 = vmatpush1.msra.mxu0 0.0
    %243 = vmatprep.subr.mxu0 0.0
    %244 = vmatpush1.msra.mxu0 0.0
    %245 = vmatprep.subr.mxu0 0.0
    %246 = vmatpush1.msra.mxu0 0.0
    %247 = vmatprep.subr.mxu0 0.0
    %248 = vmatpush1.msra.mxu0 0.0
    %249 = vmatprep.subr.mxu0 0.0
    %250 = vmatpush1.msra.mxu0 0.0
    %251 = vmatprep.subr.mxu0 0.0
    %252 = vmatpush1.msra.mxu0 0.0
    %253 = vmatprep.subr.mxu0 0.0
    %254 = vmatpush1.msra.mxu0 0.0
    %255 = vmatprep.subr.mxu0 0.0
    %256 = vmatpush1.msra.mxu0 0.0
    %257 = vmatprep.subr.mxu0 0.0
    %258 = vmatpush1.msra.mxu0 0.0
    %259 = vmatprep.subr.mxu0 0.0
    %260 = vmatpush1.msra.mxu0 0.0
    %261 = vmatprep.subr.mxu0 0.0
    %262 = vmatpush1.msra.mxu0 0.0
    %263 = vmatprep.subr.mxu0 0.0
    %264 = vmatpush1.msra.mxu0 0.0
    %265 = vmatprep.mubr.f32.mxu0 0.0
    %266 = vmatmul.mubr.f32.gmra.mrb[0].mxu0 %v56
    %v267 = vpop.f32.mrb[0].mxu0
    %v268 = vadd.f32 %v196, %v267
    %v269 = vpop.f32.mrb[0].mxu0
    %270 = vmatprep.mubr.f32.mxu0 0.0
    %271 = vmatmul.mubr.f32.gmra.mrb[0].mxu0 %v59
    %v272 = vpop.f32.mrb[0].mxu0
    %v273 = vadd.f32 %v196, %v272
    %v274 = vpop.f32.mrb[0].mxu0
    %275 = vmatprep.mubr.f32.mxu0 0.0
    %276 = vmatmul.mubr.f32.gmra.mrb[0].mxu0 %v62
    %v277 = vpop.f32.mrb[0].mxu0
    %v278 = vadd.f32 %v196, %v277
    %v279 = vpop.f32.mrb[0].mxu0
    %280 = vmatprep.mubr.f32.mxu0 0.0
    %281 = vmatmul.mubr.f32.gmra.mrb[0].mxu0 %v65
    %v282 = vpop.f32.mrb[0].mxu0
    %v283 = vadd.f32 %v196, %v282
    %v284 = vpop.f32.mrb[0].mxu0
    %285 = vmatprep.mubr.f32.mxu0 0.0
    %286 = vmatmul.mubr.f32.gmra.mrb[0].mxu0 %v68
    %v287 = vpop.f32.mrb[0].mxu0
    %v288 = vadd.f32 %v196, %v287
    %v289 = vpop.f32.mrb[0].mxu0
    %290 = vmatprep.mubr.f32.mxu0 0.0
    %291 = vmatmul.mubr.f32.gmra.mrb[0].mxu0 %v71
    %v292 = vpop.f32.mrb[0].mxu0
    %v293 = vadd.f32 %v196, %v292
    %v294 = vpop.f32.mrb[0].mxu0
    %295 = vmatprep.mubr.f32.mxu0 0.0
    %296 = vmatmul.mubr.f32.gmra.mrb[0].mxu0 %v74
    %v297 = vpop.f32.mrb[0].mxu0
    %v298 = vadd.f32 %v196, %v297
    %v299 = vpop.f32.mrb[0].mxu0
    %300 = vmatprep.mubr.f32.mxu0 0.0
    %301 = vmatmul.mubr.f32.gmra.mrb[0].mxu0 %v77
    %v302 = vpop.f32.mrb[0].mxu0
    %v303 = vadd.f32 %v196, %v302
    %v304 = vpop.f32.mrb[0].mxu0
    %305 = vdwg.mxu0
    %s306 = scalar_lea.vmem %s1, 2
    %v307 = vld [vmem:[%s306] sm:$0x1]
    %s308 = scalar_lea.vmem %s3, 2
    %v309 = vld [vmem:[%s308] sm:$0x1]
    %v311 = vlaneseq
    %v312 = vshrl.u32 %v311, 7
    %v313 = vsub.s32 0, %v312
    %v314 = vrot.slane %v309, %v313
    %v317 = vsel %vm79, %v307, 0
    %319 = vmatprep.subr.mxu0 0.0
    %320 = vmatpush1.msra.mxu0 %v317
    %321 = vmatprep.subr.mxu0 0.0
    %322 = vmatpush1.msra.mxu0 0.0
    %323 = vmatprep.subr.mxu0 0.0
    %324 = vmatpush1.msra.mxu0 0.0
    %325 = vmatprep.subr.mxu0 0.0
    %326 = vmatpush1.msra.mxu0 0.0
    %327 = vmatprep.subr.mxu0 0.0
    %328 = vmatpush1.msra.mxu0 0.0
    %329 = vmatprep.subr.mxu0 0.0
    %330 = vmatpush1.msra.mxu0 0.0
    %331 = vmatprep.subr.mxu0 0.0
    %332 = vmatpush1.msra.mxu0 0.0
    %333 = vmatprep.subr.mxu0 0.0
    %334 = vmatpush1.msra.mxu0 0.0
    %335 = vmatprep.subr.mxu0 0.0
    %336 = vmatpush1.msra.mxu0 0.0
    %337 = vmatprep.subr.mxu0 0.0
    %338 = vmatpush1.msra.mxu0 0.0
    %339 = vmatprep.subr.mxu0 0.0
    %340 = vmatpush1.msra.mxu0 0.0
    %341 = vmatprep.subr.mxu0 0.0
    %342 = vmatpush1.msra.mxu0 0.0
    %343 = vmatprep.subr.mxu0 0.0
    %344 = vmatpush1.msra.mxu0 0.0
    %345 = vmatprep.subr.mxu0 0.0
    %346 = vmatpush1.msra.mxu0 0.0
    %347 = vmatprep.subr.mxu0 0.0
    %348 = vmatpush1.msra.mxu0 0.0
    %349 = vmatprep.subr.mxu0 0.0
    %350 = vmatpush1.msra.mxu0 0.0
    %351 = vmatprep.subr.mxu0 0.0
    %352 = vmatpush1.msra.mxu0 0.0
    %353 = vmatprep.subr.mxu0 0.0
    %354 = vmatpush1.msra.mxu0 0.0
    %355 = vmatprep.subr.mxu0 0.0
    %356 = vmatpush1.msra.mxu0 0.0
    %357 = vmatprep.subr.mxu0 0.0
    %358 = vmatpush1.msra.mxu0 0.0
    %359 = vmatprep.subr.mxu0 0.0
    %360 = vmatpush1.msra.mxu0 0.0
    %361 = vmatprep.subr.mxu0 0.0
    %362 = vmatpush1.msra.mxu0 0.0
    %363 = vmatprep.subr.mxu0 0.0
    %364 = vmatpush1.msra.mxu0 0.0
    %365 = vmatprep.subr.mxu0 0.0
    %366 = vmatpush1.msra.mxu0 0.0
    %367 = vmatprep.subr.mxu0 0.0
    %368 = vmatpush1.msra.mxu0 0.0
    %369 = vmatprep.subr.mxu0 0.0
    %370 = vmatpush1.msra.mxu0 0.0
    %371 = vmatprep.subr.mxu0 0.0
    %372 = vmatpush1.msra.mxu0 0.0
    %373 = vmatprep.subr.mxu0 0.0
    %374 = vmatpush1.msra.mxu0 0.0
    %375 = vmatprep.subr.mxu0 0.0
    %376 = vmatpush1.msra.mxu0 0.0
    %377 = vmatprep.subr.mxu0 0.0
    %378 = vmatpush1.msra.mxu0 0.0
    %379 = vmatprep.subr.mxu0 0.0
    %380 = vmatpush1.msra.mxu0 0.0
    %381 = vmatprep.subr.mxu0 0.0
    %382 = vmatpush1.msra.mxu0 0.0
    %383 = vmatprep.mubr.f32.mxu0 0.0
    %384 = vmatmul.mubr.f32.gmra.mrb[0].mxu0 %v56
    %v385 = vpop.f32.mrb[0].mxu0
    %v386 = vadd.f32 %v314, %v385
    %v387 = vpop.f32.mrb[0].mxu0
    %388 = vmatprep.mubr.f32.mxu0 0.0
    %389 = vmatmul.mubr.f32.gmra.mrb[0].mxu0 %v59
    %v390 = vpop.f32.mrb[0].mxu0
    %v391 = vadd.f32 %v314, %v390
    %v392 = vpop.f32.mrb[0].mxu0
    %393 = vmatprep.mubr.f32.mxu0 0.0
    %394 = vmatmul.mubr.f32.gmra.mrb[0].mxu0 %v62
    %v395 = vpop.f32.mrb[0].mxu0
    %v396 = vadd.f32 %v314, %v395
    %v397 = vpop.f32.mrb[0].mxu0
    %398 = vmatprep.mubr.f32.mxu0 0.0
    %399 = vmatmul.mubr.f32.gmra.mrb[0].mxu0 %v65
    %v400 = vpop.f32.mrb[0].mxu0
    %v401 = vadd.f32 %v314, %v400
    %v402 = vpop.f32.mrb[0].mxu0
    %403 = vmatprep.mubr.f32.mxu0 0.0
    %404 = vmatmul.mubr.f32.gmra.mrb[0].mxu0 %v68
    %v405 = vpop.f32.mrb[0].mxu0
    %v406 = vadd.f32 %v314, %v405
    %v407 = vpop.f32.mrb[0].mxu0
    %408 = vmatprep.mubr.f32.mxu0 0.0
    %409 = vmatmul.mubr.f32.gmra.mrb[0].mxu0 %v71
    %v410 = vpop.f32.mrb[0].mxu0
    %v411 = vadd.f32 %v314, %v410
    %v412 = vpop.f32.mrb[0].mxu0
    %413 = vmatprep.mubr.f32.mxu0 0.0
    %414 = vmatmul.mubr.f32.gmra.mrb[0].mxu0 %v74
    %v415 = vpop.f32.mrb[0].mxu0
    %v416 = vadd.f32 %v314, %v415
    %v417 = vpop.f32.mrb[0].mxu0
    %418 = vmatprep.mubr.f32.mxu0 0.0
    %419 = vmatmul.mubr.f32.gmra.mrb[0].mxu0 %v77
    %v420 = vpop.f32.mrb[0].mxu0
    %v421 = vadd.f32 %v314, %v420
    %v422 = vpop.f32.mrb[0].mxu0
    %423 = vdwg.mxu0
    %s424 = scalar_lea.vmem %s1, 3
    %v425 = vld [vmem:[%s424] sm:$0x1]
    %s426 = scalar_lea.vmem %s3, 3
    %v427 = vld [vmem:[%s426] sm:$0x1]
    %v429 = vlaneseq
    %v430 = vshrl.u32 %v429, 7
    %v431 = vsub.s32 0, %v430
    %v432 = vrot.slane %v427, %v431
    %v435 = vsel %vm79, %v425, 0
    %437 = vmatprep.subr.mxu0 0.0
    %438 = vmatpush1.msra.mxu0 %v435
    %439 = vmatprep.subr.mxu0 0.0
    %440 = vmatpush1.msra.mxu0 0.0
    %441 = vmatprep.subr.mxu0 0.0
    %442 = vmatpush1.msra.mxu0 0.0
    %443 = vmatprep.subr.mxu0 0.0
    %444 = vmatpush1.msra.mxu0 0.0
    %445 = vmatprep.subr.mxu0 0.0
    %446 = vmatpush1.msra.mxu0 0.0
    %447 = vmatprep.subr.mxu0 0.0
    %448 = vmatpush1.msra.mxu0 0.0
    %449 = vmatprep.subr.mxu0 0.0
    %450 = vmatpush1.msra.mxu0 0.0
    %451 = vmatprep.subr.mxu0 0.0
    %452 = vmatpush1.msra.mxu0 0.0
    %453 = vmatprep.subr.mxu0 0.0
    %454 = vmatpush1.msra.mxu0 0.0
    %455 = vmatprep.subr.mxu0 0.0
    %456 = vmatpush1.msra.mxu0 0.0
    %457 = vmatprep.subr.mxu0 0.0
    %458 = vmatpush1.msra.mxu0 0.0
    %459 = vmatprep.subr.mxu0 0.0
    %460 = vmatpush1.msra.mxu0 0.0
    %461 = vmatprep.subr.mxu0 0.0
    %462 = vmatpush1.msra.mxu0 0.0
    %463 = vmatprep.subr.mxu0 0.0
    %464 = vmatpush1.msra.mxu0 0.0
    %465 = vmatprep.subr.mxu0 0.0
    %466 = vmatpush1.msra.mxu0 0.0
    %467 = vmatprep.subr.mxu0 0.0
    %468 = vmatpush1.msra.mxu0 0.0
    %469 = vmatprep.subr.mxu0 0.0
    %470 = vmatpush1.msra.mxu0 0.0
    %471 = vmatprep.subr.mxu0 0.0
    %472 = vmatpush1.msra.mxu0 0.0
    %473 = vmatprep.subr.mxu0 0.0
    %474 = vmatpush1.msra.mxu0 0.0
    %475 = vmatprep.subr.mxu0 0.0
    %476 = vmatpush1.msra.mxu0 0.0
    %477 = vmatprep.subr.mxu0 0.0
    %478 = vmatpush1.msra.mxu0 0.0
    %479 = vmatprep.subr.mxu0 0.0
    %480 = vmatpush1.msra.mxu0 0.0
    %481 = vmatprep.subr.mxu0 0.0
    %482 = vmatpush1.msra.mxu0 0.0
    %483 = vmatprep.subr.mxu0 0.0
    %484 = vmatpush1.msra.mxu0 0.0
    %485 = vmatprep.subr.mxu0 0.0
    %486 = vmatpush1.msra.mxu0 0.0
    %487 = vmatprep.subr.mxu0 0.0
    %488 = vmatpush1.msra.mxu0 0.0
    %489 = vmatprep.subr.mxu0 0.0
    %490 = vmatpush1.msra.mxu0 0.0
    %491 = vmatprep.subr.mxu0 0.0
    %492 = vmatpush1.msra.mxu0 0.0
    %493 = vmatprep.subr.mxu0 0.0
    %494 = vmatpush1.msra.mxu0 0.0
    %495 = vmatprep.subr.mxu0 0.0
    %496 = vmatpush1.msra.mxu0 0.0
    %497 = vmatprep.subr.mxu0 0.0
    %498 = vmatpush1.msra.mxu0 0.0
    %499 = vmatprep.subr.mxu0 0.0
    %500 = vmatpush1.msra.mxu0 0.0
    %501 = vmatprep.mubr.f32.mxu0 0.0
    %502 = vmatmul.mubr.f32.gmra.mrb[0].mxu0 %v56
    %v503 = vpop.f32.mrb[0].mxu0
    %v504 = vadd.f32 %v432, %v503
    %v505 = vpop.f32.mrb[0].mxu0
    %506 = vmatprep.mubr.f32.mxu0 0.0
    %507 = vmatmul.mubr.f32.gmra.mrb[0].mxu0 %v59
    %v508 = vpop.f32.mrb[0].mxu0
    %v509 = vadd.f32 %v432, %v508
    %v510 = vpop.f32.mrb[0].mxu0
    %511 = vmatprep.mubr.f32.mxu0 0.0
    %512 = vmatmul.mubr.f32.gmra.mrb[0].mxu0 %v62
    %v513 = vpop.f32.mrb[0].mxu0
    %v514 = vadd.f32 %v432, %v513
    %v515 = vpop.f32.mrb[0].mxu0
    %516 = vmatprep.mubr.f32.mxu0 0.0
    %517 = vmatmul.mubr.f32.gmra.mrb[0].mxu0 %v65
    %v518 = vpop.f32.mrb[0].mxu0
    %v519 = vadd.f32 %v432, %v518
    %v520 = vpop.f32.mrb[0].mxu0
    %521 = vmatprep.mubr.f32.mxu0 0.0
    %522 = vmatmul.mubr.f32.gmra.mrb[0].mxu0 %v68
    %v523 = vpop.f32.mrb[0].mxu0
    %v524 = vadd.f32 %v432, %v523
    %v525 = vpop.f32.mrb[0].mxu0
    %526 = vmatprep.mubr.f32.mxu0 0.0
    %527 = vmatmul.mubr.f32.gmra.mrb[0].mxu0 %v71
    %v528 = vpop.f32.mrb[0].mxu0
    %v529 = vadd.f32 %v432, %v528
    %v530 = vpop.f32.mrb[0].mxu0
    %531 = vmatprep.mubr.f32.mxu0 0.0
    %532 = vmatmul.mubr.f32.gmra.mrb[0].mxu0 %v74
    %v533 = vpop.f32.mrb[0].mxu0
    %v534 = vadd.f32 %v432, %v533
    %v535 = vpop.f32.mrb[0].mxu0
    %536 = vmatprep.mubr.f32.mxu0 0.0
    %537 = vmatmul.mubr.f32.gmra.mrb[0].mxu0 %v77
    %v538 = vpop.f32.mrb[0].mxu0
    %v539 = vadd.f32 %v432, %v538
    %v540 = vpop.f32.mrb[0].mxu0
    %541 = vdwg.mxu0
    %v542 = vld [vmem:[#allocation2] sm:$0xff]
    %v543 = vld [vmem:[#allocation2 + $0x8] sm:$0xff]
    %v544 = vld [vmem:[#allocation2 + $0x10] sm:$0xff]
    %v545 = vld [vmem:[#allocation2 + $0x18] sm:$0xff]
    %v546 = vld [vmem:[#allocation2 + $0x20] sm:$0xff]
    %v547 = vld [vmem:[#allocation2 + $0x28] sm:$0xff]
    %v548 = vld [vmem:[#allocation2 + $0x30] sm:$0xff]
    %v549 = vld [vmem:[#allocation2 + $0x38] sm:$0xff]
    %s550 = scalar_lea.vmem [#allocation2], 64
    %v551 = vld [vmem:[%s550] sm:$0xff]
    %v552 = vld [vmem:[%s550 + $0x8] sm:$0xff]
    %v553 = vld [vmem:[%s550 + $0x10] sm:$0xff]
    %v554 = vld [vmem:[%s550 + $0x18] sm:$0xff]
    %v555 = vld [vmem:[%s550 + $0x20] sm:$0xff]
    %v556 = vld [vmem:[%s550 + $0x28] sm:$0xff]
    %v557 = vld [vmem:[%s550 + $0x30] sm:$0xff]
    %v558 = vld [vmem:[%s550 + $0x38] sm:$0xff]
    %s559 = scalar_lea.vmem [#allocation2], 128
    %v560 = vld [vmem:[%s559] sm:$0xff]
    %v561 = vld [vmem:[%s559 + $0x8] sm:$0xff]
    %v562 = vld [vmem:[%s559 + $0x10] sm:$0xff]
    %v563 = vld [vmem:[%s559 + $0x18] sm:$0xff]
    %v564 = vld [vmem:[%s559 + $0x20] sm:$0xff]
    %v565 = vld [vmem:[%s559 + $0x28] sm:$0xff]
    %v566 = vld [vmem:[%s559 + $0x30] sm:$0xff]
    %v567 = vld [vmem:[%s559 + $0x38] sm:$0xff]
    %s568 = scalar_lea.vmem [#allocation2], 192
    %v569 = vld [vmem:[%s568] sm:$0xff]
    %v570 = vld [vmem:[%s568 + $0x8] sm:$0xff]
    %v571 = vld [vmem:[%s568 + $0x10] sm:$0xff]
    %v572 = vld [vmem:[%s568 + $0x18] sm:$0xff]
    %v573 = vld [vmem:[%s568 + $0x20] sm:$0xff]
    %v574 = vld [vmem:[%s568 + $0x28] sm:$0xff]
    %v575 = vld [vmem:[%s568 + $0x30] sm:$0xff]
    %v576 = vld [vmem:[%s568 + $0x38] sm:$0xff]
    %vm577 = vcmask 523264
    %v579 = vsel %vm577, 0.0, 0
    %581 = vmatprep.subr.mxu0 0.0
    %582 = vmatpush1.msra.mxu0 %v542
    %583 = vmatprep.subr.mxu0 0.0
    %584 = vmatpush1.msra.mxu0 %v543
    %585 = vmatprep.subr.mxu0 0.0
    %586 = vmatpush1.msra.mxu0 %v544
    %587 = vmatprep.subr.mxu0 0.0
    %588 = vmatpush1.msra.mxu0 %v545
    %589 = vmatprep.subr.mxu0 0.0
    %590 = vmatpush1.msra.mxu0 %v546
    %591 = vmatprep.subr.mxu0 0.0
    %592 = vmatpush1.msra.mxu0 %v547
    %593 = vmatprep.subr.mxu0 0.0
    %594 = vmatpush1.msra.mxu0 %v548
    %595 = vmatprep.subr.mxu0 0.0
    %596 = vmatpush1.msra.mxu0 %v549
    %597 = vmatprep.subr.mxu0 0.0
    %598 = vmatpush1.msra.mxu0 0.0
    %599 = vmatprep.subr.mxu0 0.0
    %600 = vmatpush1.msra.mxu0 0.0
    %601 = vmatprep.subr.mxu0 0.0
    %602 = vmatpush1.msra.mxu0 0.0
    %603 = vmatprep.subr.mxu0 0.0
    %604 = vmatpush1.msra.mxu0 0.0
    %605 = vmatprep.subr.mxu0 0.0
    %606 = vmatpush1.msra.mxu0 0.0
    %607 = vmatprep.subr.mxu0 0.0
    %608 = vmatpush1.msra.mxu0 0.0
    %609 = vmatprep.subr.mxu0 0.0
    %610 = vmatpush1.msra.mxu0 0.0
    %611 = vmatprep.subr.mxu0 0.0
    %612 = vmatpush1.msra.mxu0 0.0
    %613 = vmatprep.subr.mxu0 0.0
    %614 = vmatpush1.msra.mxu0 0.0
    %615 = vmatprep.subr.mxu0 0.0
    %616 = vmatpush1.msra.mxu0 0.0
    %617 = vmatprep.subr.mxu0 0.0
    %618 = vmatpush1.msra.mxu0 0.0
    %619 = vmatprep.subr.mxu0 0.0
    %620 = vmatpush1.msra.mxu0 0.0
    %621 = vmatprep.subr.mxu0 0.0
    %622 = vmatpush1.msra.mxu0 0.0
    %623 = vmatprep.subr.mxu0 0.0
    %624 = vmatpush1.msra.mxu0 0.0
    %625 = vmatprep.subr.mxu0 0.0
    %626 = vmatpush1.msra.mxu0 0.0
    %627 = vmatprep.subr.mxu0 0.0
    %628 = vmatpush1.msra.mxu0 0.0
    %629 = vmatprep.subr.mxu0 0.0
    %630 = vmatpush1.msra.mxu0 0.0
    %631 = vmatprep.subr.mxu0 0.0
    %632 = vmatpush1.msra.mxu0 0.0
    %633 = vmatprep.subr.mxu0 0.0
    %634 = vmatpush1.msra.mxu0 0.0
    %635 = vmatprep.subr.mxu0 0.0
    %636 = vmatpush1.msra.mxu0 0.0
    %637 = vmatprep.subr.mxu0 0.0
    %638 = vmatpush1.msra.mxu0 0.0
    %639 = vmatprep.subr.mxu0 0.0
    %640 = vmatpush1.msra.mxu0 0.0
    %641 = vmatprep.subr.mxu0 0.0
    %642 = vmatpush1.msra.mxu0 0.0
    %643 = vmatprep.subr.mxu0 0.0
    %644 = vmatpush1.msra.mxu0 0.0
    %645 = vmatprep.mubr.f32.mxu0 0.0
    %646 = vmatmul.mubr.f32.gmra.mrb[0].mxu0 %v579
    %v647 = vpop.f32.mrb[0].mxu0
    %v648 = vadd.f32 0.0, %v647
    %v649 = vpop.f32.mrb[0].mxu0
    %650 = vdwg.mxu0
    %v651 = vadd.f32 %v150, %v648
    %v652 = vxor.u32 %v651, 2147483648
    %v653 = vmul.f32 %v652, 1.442695
    %v654 = vpow.pop %v653
    %v655 = vadd.f32 %v654, 1.0
    %v656 = vrcp.pop %v655
    %v657 = vmul.f32 1.0, %v656
    %658 = vmatprep.subr.mxu0 0.0
    %659 = vmatpush1.msra.mxu0 %v551
    %660 = vmatprep.subr.mxu0 0.0
    %661 = vmatpush1.msra.mxu0 %v552
    %662 = vmatprep.subr.mxu0 0.0
    %663 = vmatpush1.msra.mxu0 %v553
    %664 = vmatprep.subr.mxu0 0.0
    %665 = vmatpush1.msra.mxu0 %v554
    %666 = vmatprep.subr.mxu0 0.0
    %667 = vmatpush1.msra.mxu0 %v555
    %668 = vmatprep.subr.mxu0 0.0
    %669 = vmatpush1.msra.mxu0 %v556
    %670 = vmatprep.subr.mxu0 0.0
    %671 = vmatpush1.msra.mxu0 %v557
    %672 = vmatprep.subr.mxu0 0.0
    %673 = vmatpush1.msra.mxu0 %v558
    %674 = vmatprep.subr.mxu0 0.0
    %675 = vmatpush1.msra.mxu0 0.0
    %676 = vmatprep.subr.mxu0 0.0
    %677 = vmatpush1.msra.mxu0 0.0
    %678 = vmatprep.subr.mxu0 0.0
    %679 = vmatpush1.msra.mxu0 0.0
    %680 = vmatprep.subr.mxu0 0.0
    %681 = vmatpush1.msra.mxu0 0.0
    %682 = vmatprep.subr.mxu0 0.0
    %683 = vmatpush1.msra.mxu0 0.0
    %684 = vmatprep.subr.mxu0 0.0
    %685 = vmatpush1.msra.mxu0 0.0
    %686 = vmatprep.subr.mxu0 0.0
    %687 = vmatpush1.msra.mxu0 0.0
    %688 = vmatprep.subr.mxu0 0.0
    %689 = vmatpush1.msra.mxu0 0.0
    %690 = vmatprep.subr.mxu0 0.0
    %691 = vmatpush1.msra.mxu0 0.0
    %692 = vmatprep.subr.mxu0 0.0
    %693 = vmatpush1.msra.mxu0 0.0
    %694 = vmatprep.subr.mxu0 0.0
    %695 = vmatpush1.msra.mxu0 0.0
    %696 = vmatprep.subr.mxu0 0.0
    %697 = vmatpush1.msra.mxu0 0.0
    %698 = vmatprep.subr.mxu0 0.0
    %699 = vmatpush1.msra.mxu0 0.0
    %700 = vmatprep.subr.mxu0 0.0
    %701 = vmatpush1.msra.mxu0 0.0
    %702 = vmatprep.subr.mxu0 0.0
    %703 = vmatpush1.msra.mxu0 0.0
    %704 = vmatprep.subr.mxu0 0.0
    %705 = vmatpush1.msra.mxu0 0.0
    %706 = vmatprep.subr.mxu0 0.0
    %707 = vmatpush1.msra.mxu0 0.0
    %708 = vmatprep.subr.mxu0 0.0
    %709 = vmatpush1.msra.mxu0 0.0
    %710 = vmatprep.subr.mxu0 0.0
    %711 = vmatpush1.msra.mxu0 0.0
    %712 = vmatprep.subr.mxu0 0.0
    %713 = vmatpush1.msra.mxu0 0.0
    %714 = vmatprep.subr.mxu0 0.0
    %715 = vmatpush1.msra.mxu0 0.0
    %716 = vmatprep.subr.mxu0 0.0
    %717 = vmatpush1.msra.mxu0 0.0
    %718 = vmatprep.subr.mxu0 0.0
    %719 = vmatpush1.msra.mxu0 0.0
    %720 = vmatprep.subr.mxu0 0.0
    %721 = vmatpush1.msra.mxu0 0.0
    %722 = vmatprep.mubr.f32.mxu0 0.0
    %723 = vmatmul.mubr.f32.gmra.mrb[0].mxu0 %v579
    %v724 = vpop.f32.mrb[0].mxu0
    %v725 = vadd.f32 0.0, %v724
    %v726 = vpop.f32.mrb[0].mxu0
    %727 = vdwg.mxu0
    %v728 = vadd.f32 %v268, %v725
    %v729 = vxor.u32 %v728, 2147483648
    %v730 = vmul.f32 %v729, 1.442695
    %v731 = vpow.pop %v730
    %v732 = vadd.f32 %v731, 1.0
    %v733 = vrcp.pop %v732
    %v734 = vmul.f32 1.0, %v733
    %735 = vmatprep.subr.mxu0 0.0
    %736 = vmatpush1.msra.mxu0 %v560
    %737 = vmatprep.subr.mxu0 0.0
    %738 = vmatpush1.msra.mxu0 %v561
    %739 = vmatprep.subr.mxu0 0.0
    %740 = vmatpush1.msra.mxu0 %v562
    %741 = vmatprep.subr.mxu0 0.0
    %742 = vmatpush1.msra.mxu0 %v563
    %743 = vmatprep.subr.mxu0 0.0
    %744 = vmatpush1.msra.mxu0 %v564
    %745 = vmatprep.subr.mxu0 0.0
    %746 = vmatpush1.msra.mxu0 %v565
    %747 = vmatprep.subr.mxu0 0.0
    %748 = vmatpush1.msra.mxu0 %v566
    %749 = vmatprep.subr.mxu0 0.0
    %750 = vmatpush1.msra.mxu0 %v567
    %751 = vmatprep.subr.mxu0 0.0
    %752 = vmatpush1.msra.mxu0 0.0
    %753 = vmatprep.subr.mxu0 0.0
    %754 = vmatpush1.msra.mxu0 0.0
    %755 = vmatprep.subr.mxu0 0.0
    %756 = vmatpush1.msra.mxu0 0.0
    %757 = vmatprep.subr.mxu0 0.0
    %758 = vmatpush1.msra.mxu0 0.0
    %759 = vmatprep.subr.mxu0 0.0
    %760 = vmatpush1.msra.mxu0 0.0
    %761 = vmatprep.subr.mxu0 0.0
    %762 = vmatpush1.msra.mxu0 0.0
    %763 = vmatprep.subr.mxu0 0.0
    %764 = vmatpush1.msra.mxu0 0.0
    %765 = vmatprep.subr.mxu0 0.0
    %766 = vmatpush1.msra.mxu0 0.0
    %767 = vmatprep.subr.mxu0 0.0
    %768 = vmatpush1.msra.mxu0 0.0
    %769 = vmatprep.subr.mxu0 0.0
    %770 = vmatpush1.msra.mxu0 0.0
    %771 = vmatprep.subr.mxu0 0.0
    %772 = vmatpush1.msra.mxu0 0.0
    %773 = vmatprep.subr.mxu0 0.0
    %774 = vmatpush1.msra.mxu0 0.0
    %775 = vmatprep.subr.mxu0 0.0
    %776 = vmatpush1.msra.mxu0 0.0
    %777 = vmatprep.subr.mxu0 0.0
    %778 = vmatpush1.msra.mxu0 0.0
    %779 = vmatprep.subr.mxu0 0.0
    %780 = vmatpush1.msra.mxu0 0.0
    %781 = vmatprep.subr.mxu0 0.0
    %782 = vmatpush1.msra.mxu0 0.0
    %783 = vmatprep.subr.mxu0 0.0
    %784 = vmatpush1.msra.mxu0 0.0
    %785 = vmatprep.subr.mxu0 0.0
    %786 = vmatpush1.msra.mxu0 0.0
    %787 = vmatprep.subr.mxu0 0.0
    %788 = vmatpush1.msra.mxu0 0.0
    %789 = vmatprep.subr.mxu0 0.0
    %790 = vmatpush1.msra.mxu0 0.0
    %791 = vmatprep.subr.mxu0 0.0
    %792 = vmatpush1.msra.mxu0 0.0
    %793 = vmatprep.subr.mxu0 0.0
    %794 = vmatpush1.msra.mxu0 0.0
    %795 = vmatprep.subr.mxu0 0.0
    %796 = vmatpush1.msra.mxu0 0.0
    %797 = vmatprep.subr.mxu0 0.0
    %798 = vmatpush1.msra.mxu0 0.0
    %799 = vmatprep.mubr.f32.mxu0 0.0
    %800 = vmatmul.mubr.f32.gmra.mrb[0].mxu0 %v579
    %v801 = vpop.f32.mrb[0].mxu0
    %v802 = vadd.f32 0.0, %v801
    %v803 = vpop.f32.mrb[0].mxu0
    %804 = vdwg.mxu0
    %v805 = vadd.f32 %v386, %v802
    %v806 = vtanh.pop %v805
    %807 = vmatprep.subr.mxu0 0.0
    %808 = vmatpush1.msra.mxu0 %v569
    %809 = vmatprep.subr.mxu0 0.0
    %810 = vmatpush1.msra.mxu0 %v570
    %811 = vmatprep.subr.mxu0 0.0
    %812 = vmatpush1.msra.mxu0 %v571
    %813 = vmatprep.subr.mxu0 0.0
    %814 = vmatpush1.msra.mxu0 %v572
    %815 = vmatprep.subr.mxu0 0.0
    %816 = vmatpush1.msra.mxu0 %v573
    %817 = vmatprep.subr.mxu0 0.0
    %818 = vmatpush1.msra.mxu0 %v574
    %819 = vmatprep.subr.mxu0 0.0
    %820 = vmatpush1.msra.mxu0 %v575
    %821 = vmatprep.subr.mxu0 0.0
    %822 = vmatpush1.msra.mxu0 %v576
    %823 = vmatprep.subr.mxu0 0.0
    %824 = vmatpush1.msra.mxu0 0.0
    %825 = vmatprep.subr.mxu0 0.0
    %826 = vmatpush1.msra.mxu0 0.0
    %827 = vmatprep.subr.mxu0 0.0
    %828 = vmatpush1.msra.mxu0 0.0
    %829 = vmatprep.subr.mxu0 0.0
    %830 = vmatpush1.msra.mxu0 0.0
    %831 = vmatprep.subr.mxu0 0.0
    %832 = vmatpush1.msra.mxu0 0.0
    %833 = vmatprep.subr.mxu0 0.0
    %834 = vmatpush1.msra.mxu0 0.0
    %835 = vmatprep.subr.mxu0 0.0
    %836 = vmatpush1.msra.mxu0 0.0
    %837 = vmatprep.subr.mxu0 0.0
    %838 = vmatpush1.msra.mxu0 0.0
    %839 = vmatprep.subr.mxu0 0.0
    %840 = vmatpush1.msra.mxu0 0.0
    %841 = vmatprep.subr.mxu0 0.0
    %842 = vmatpush1.msra.mxu0 0.0
    %843 = vmatprep.subr.mxu0 0.0
    %844 = vmatpush1.msra.mxu0 0.0
    %845 = vmatprep.subr.mxu0 0.0
    %846 = vmatpush1.msra.mxu0 0.0
    %847 = vmatprep.subr.mxu0 0.0
    %848 = vmatpush1.msra.mxu0 0.0
    %849 = vmatprep.subr.mxu0 0.0
    %850 = vmatpush1.msra.mxu0 0.0
    %851 = vmatprep.subr.mxu0 0.0
    %852 = vmatpush1.msra.mxu0 0.0
    %853 = vmatprep.subr.mxu0 0.0
    %854 = vmatpush1.msra.mxu0 0.0
    %855 = vmatprep.subr.mxu0 0.0
    %856 = vmatpush1.msra.mxu0 0.0
    %857 = vmatprep.subr.mxu0 0.0
    %858 = vmatpush1.msra.mxu0 0.0
    %859 = vmatprep.subr.mxu0 0.0
    %860 = vmatpush1.msra.mxu0 0.0
    %861 = vmatprep.subr.mxu0 0.0
    %862 = vmatpush1.msra.mxu0 0.0
    %863 = vmatprep.subr.mxu0 0.0
    %864 = vmatpush1.msra.mxu0 0.0
    %865 = vmatprep.subr.mxu0 0.0
    %866 = vmatpush1.msra.mxu0 0.0
    %867 = vmatprep.subr.mxu0 0.0
    %868 = vmatpush1.msra.mxu0 0.0
    %869 = vmatprep.subr.mxu0 0.0
    %870 = vmatpush1.msra.mxu0 0.0
    %871 = vmatprep.mubr.f32.mxu0 0.0
    %872 = vmatmul.mubr.f32.gmra.mrb[0].mxu0 %v579
    %v873 = vpop.f32.mrb[0].mxu0
    %v874 = vadd.f32 0.0, %v873
    %v875 = vpop.f32.mrb[0].mxu0
    %876 = vdwg.mxu0
    %v877 = vadd.f32 %v504, %v874
    %v878 = vxor.u32 %v877, 2147483648
    %v879 = vmul.f32 %v878, 1.442695
    %v880 = vpow.pop %v879
    %v881 = vadd.f32 %v880, 1.0
    %v882 = vrcp.pop %v881
    %v883 = vmul.f32 1.0, %v882
    %v884 = vmul.f32 %v734, 0.0
    %v885 = vmul.f32 %v657, %v806
    %v886 = vadd.f32 %v884, %v885
    %v887 = vtanh.pop %v886
    %v888 = vmul.f32 %v883, %v887
    %v890 = vsel %vm577, %v888, 0
    %892 = vmatprep.subr.mxu0 0.0
    %893 = vmatpush1.msra.mxu0 %v542
    %894 = vmatprep.subr.mxu0 0.0
    %895 = vmatpush1.msra.mxu0 %v543
    %896 = vmatprep.subr.mxu0 0.0
    %897 = vmatpush1.msra.mxu0 %v544
    %898 = vmatprep.subr.mxu0 0.0
    %899 = vmatpush1.msra.mxu0 %v545
    %900 = vmatprep.subr.mxu0 0.0
    %901 = vmatpush1.msra.mxu0 %v546
    %902 = vmatprep.subr.mxu0 0.0
    %903 = vmatpush1.msra.mxu0 %v547
    %904 = vmatprep.subr.mxu0 0.0
    %905 = vmatpush1.msra.mxu0 %v548
    %906 = vmatprep.subr.mxu0 0.0
    %907 = vmatpush1.msra.mxu0 %v549
    %908 = vmatprep.subr.mxu0 0.0
    %909 = vmatpush1.msra.mxu0 0.0
    %910 = vmatprep.subr.mxu0 0.0
    %911 = vmatpush1.msra.mxu0 0.0
    %912 = vmatprep.subr.mxu0 0.0
    %913 = vmatpush1.msra.mxu0 0.0
    %914 = vmatprep.subr.mxu0 0.0
    %915 = vmatpush1.msra.mxu0 0.0
    %916 = vmatprep.subr.mxu0 0.0
    %917 = vmatpush1.msra.mxu0 0.0
    %918 = vmatprep.subr.mxu0 0.0
    %919 = vmatpush1.msra.mxu0 0.0
    %920 = vmatprep.subr.mxu0 0.0
    %921 = vmatpush1.msra.mxu0 0.0
    %922 = vmatprep.subr.mxu0 0.0
    %923 = vmatpush1.msra.mxu0 0.0
    %924 = vmatprep.subr.mxu0 0.0
    %925 = vmatpush1.msra.mxu0 0.0
    %926 = vmatprep.subr.mxu0 0.0
    %927 = vmatpush1.msra.mxu0 0.0
    %928 = vmatprep.subr.mxu0 0.0
    %929 = vmatpush1.msra.mxu0 0.0
    %930 = vmatprep.subr.mxu0 0.0
    %931 = vmatpush1.msra.mxu0 0.0
    %932 = vmatprep.subr.mxu0 0.0
    %933 = vmatpush1.msra.mxu0 0.0
    %934 = vmatprep.subr.mxu0 0.0
    %935 = vmatpush1.msra.mxu0 0.0
    %936 = vmatprep.subr.mxu0 0.0
    %937 = vmatpush1.msra.mxu0 0.0
    %938 = vmatprep.subr.mxu0 0.0
    %939 = vmatpush1.msra.mxu0 0.0
    %940 = vmatprep.subr.mxu0 0.0
    %941 = vmatpush1.msra.mxu0 0.0
    %942 = vmatprep.subr.mxu0 0.0
    %943 = vmatpush1.msra.mxu0 0.0
    %944 = vmatprep.subr.mxu0 0.0
    %945 = vmatpush1.msra.mxu0 0.0
    %946 = vmatprep.subr.mxu0 0.0
    %947 = vmatpush1.msra.mxu0 0.0
    %948 = vmatprep.subr.mxu0 0.0
    %949 = vmatpush1.msra.mxu0 0.0
    %950 = vmatprep.subr.mxu0 0.0
    %951 = vmatpush1.msra.mxu0 0.0
    %952 = vmatprep.subr.mxu0 0.0
    %953 = vmatpush1.msra.mxu0 0.0
    %954 = vmatprep.subr.mxu0 0.0
    %955 = vmatpush1.msra.mxu0 0.0
    %956 = vmatprep.mubr.f32.mxu0 0.0
    %957 = vmatmul.mubr.f32.gmra.mrb[0].mxu0 %v890
    %v958 = vpop.f32.mrb[0].mxu0
    %v959 = vadd.f32 0.0, %v958
    %v960 = vpop.f32.mrb[0].mxu0
    %961 = vdwg.mxu0
    %v962 = vadd.f32 %v155, %v959
    %v963 = vxor.u32 %v962, 2147483648
    %v964 = vmul.f32 %v963, 1.442695
    %v965 = vpow.pop %v964
    %v966 = vadd.f32 %v965, 1.0
    %v967 = vrcp.pop %v966
    %v968 = vmul.f32 1.0, %v967
    %969 = vmatprep.subr.mxu0 0.0
    %970 = vmatpush1.msra.mxu0 %v551
    %971 = vmatprep.subr.mxu0 0.0
    %972 = vmatpush1.msra.mxu0 %v552
    %973 = vmatprep.subr.mxu0 0.0
    %974 = vmatpush1.msra.mxu0 %v553
    %975 = vmatprep.subr.mxu0 0.0
    %976 = vmatpush1.msra.mxu0 %v554
    %977 = vmatprep.subr.mxu0 0.0
    %978 = vmatpush1.msra.mxu0 %v555
    %979 = vmatprep.subr.mxu0 0.0
    %980 = vmatpush1.msra.mxu0 %v556
    %981 = vmatprep.subr.mxu0 0.0
    %982 = vmatpush1.msra.mxu0 %v557
    %983 = vmatprep.subr.mxu0 0.0
    %984 = vmatpush1.msra.mxu0 %v558
    %985 = vmatprep.subr.mxu0 0.0
    %986 = vmatpush1.msra.mxu0 0.0
    %987 = vmatprep.subr.mxu0 0.0
    %988 = vmatpush1.msra.mxu0 0.0
    %989 = vmatprep.subr.mxu0 0.0
    %990 = vmatpush1.msra.mxu0 0.0
    %991 = vmatprep.subr.mxu0 0.0
    %992 = vmatpush1.msra.mxu0 0.0
    %993 = vmatprep.subr.mxu0 0.0
    %994 = vmatpush1.msra.mxu0 0.0
    %995 = vmatprep.subr.mxu0 0.0
    %996 = vmatpush1.msra.mxu0 0.0
    %997 = vmatprep.subr.mxu0 0.0
    %998 = vmatpush1.msra.mxu0 0.0
    %999 = vmatprep.subr.mxu0 0.0
    %1000 = vmatpush1.msra.mxu0 0.0
    %1001 = vmatprep.subr.mxu0 0.0
    %1002 = vmatpush1.msra.mxu0 0.0
    %1003 = vmatprep.subr.mxu0 0.0
    %1004 = vmatpush1.msra.mxu0 0.0
    %1005 = vmatprep.subr.mxu0 0.0
    %1006 = vmatpush1.msra.mxu0 0.0
    %1007 = vmatprep.subr.mxu0 0.0
    %1008 = vmatpush1.msra.mxu0 0.0
    %1009 = vmatprep.subr.mxu0 0.0
    %1010 = vmatpush1.msra.mxu0 0.0
    %1011 = vmatprep.subr.mxu0 0.0
    %1012 = vmatpush1.msra.mxu0 0.0
    %1013 = vmatprep.subr.mxu0 0.0
    %1014 = vmatpush1.msra.mxu0 0.0
    %1015 = vmatprep.subr.mxu0 0.0
    %1016 = vmatpush1.msra.mxu0 0.0
    %1017 = vmatprep.subr.mxu0 0.0
    %1018 = vmatpush1.msra.mxu0 0.0
    %1019 = vmatprep.subr.mxu0 0.0
    %1020 = vmatpush1.msra.mxu0 0.0
    %1021 = vmatprep.subr.mxu0 0.0
    %1022 = vmatpush1.msra.mxu0 0.0
    %1023 = vmatprep.subr.mxu0 0.0
    %1024 = vmatpush1.msra.mxu0 0.0
    %1025 = vmatprep.subr.mxu0 0.0
    %1026 = vmatpush1.msra.mxu0 0.0
    %1027 = vmatprep.subr.mxu0 0.0
    %1028 = vmatpush1.msra.mxu0 0.0
    %1029 = vmatprep.subr.mxu0 0.0
    %1030 = vmatpush1.msra.mxu0 0.0
    %1031 = vmatprep.subr.mxu0 0.0
    %1032 = vmatpush1.msra.mxu0 0.0
    %1033 = vmatprep.mubr.f32.mxu0 0.0
    %1034 = vmatmul.mubr.f32.gmra.mrb[0].mxu0 %v890
    %v1035 = vpop.f32.mrb[0].mxu0
    %v1036 = vadd.f32 0.0, %v1035
    %v1037 = vpop.f32.mrb[0].mxu0
    %1038 = vdwg.mxu0
    %v1039 = vadd.f32 %v273, %v1036
    %v1040 = vxor.u32 %v1039, 2147483648
    %v1041 = vmul.f32 %v1040, 1.442695
    %v1042 = vpow.pop %v1041
    %v1043 = vadd.f32 %v1042, 1.0
    %v1044 = vrcp.pop %v1043
    %v1045 = vmul.f32 1.0, %v1044
    %1046 = vmatprep.subr.mxu0 0.0
    %1047 = vmatpush1.msra.mxu0 %v560
    %1048 = vmatprep.subr.mxu0 0.0
    %1049 = vmatpush1.msra.mxu0 %v561
    %1050 = vmatprep.subr.mxu0 0.0
    %1051 = vmatpush1.msra.mxu0 %v562
    %1052 = vmatprep.subr.mxu0 0.0
    %1053 = vmatpush1.msra.mxu0 %v563
    %1054 = vmatprep.subr.mxu0 0.0
    %1055 = vmatpush1.msra.mxu0 %v564
    %1056 = vmatprep.subr.mxu0 0.0
    %1057 = vmatpush1.msra.mxu0 %v565
    %1058 = vmatprep.subr.mxu0 0.0
    %1059 = vmatpush1.msra.mxu0 %v566
    %1060 = vmatprep.subr.mxu0 0.0
    %1061 = vmatpush1.msra.mxu0 %v567
    %1062 = vmatprep.subr.mxu0 0.0
    %1063 = vmatpush1.msra.mxu0 0.0
    %1064 = vmatprep.subr.mxu0 0.0
    %1065 = vmatpush1.msra.mxu0 0.0
    %1066 = vmatprep.subr.mxu0 0.0
    %1067 = vmatpush1.msra.mxu0 0.0
    %1068 = vmatprep.subr.mxu0 0.0
    %1069 = vmatpush1.msra.mxu0 0.0
    %1070 = vmatprep.subr.mxu0 0.0
    %1071 = vmatpush1.msra.mxu0 0.0
    %1072 = vmatprep.subr.mxu0 0.0
    %1073 = vmatpush1.msra.mxu0 0.0
    %1074 = vmatprep.subr.mxu0 0.0
    %1075 = vmatpush1.msra.mxu0 0.0
    %1076 = vmatprep.subr.mxu0 0.0
    %1077 = vmatpush1.msra.mxu0 0.0
    %1078 = vmatprep.subr.mxu0 0.0
    %1079 = vmatpush1.msra.mxu0 0.0
    %1080 = vmatprep.subr.mxu0 0.0
    %1081 = vmatpush1.msra.mxu0 0.0
    %1082 = vmatprep.subr.mxu0 0.0
    %1083 = vmatpush1.msra.mxu0 0.0
    %1084 = vmatprep.subr.mxu0 0.0
    %1085 = vmatpush1.msra.mxu0 0.0
    %1086 = vmatprep.subr.mxu0 0.0
    %1087 = vmatpush1.msra.mxu0 0.0
    %1088 = vmatprep.subr.mxu0 0.0
    %1089 = vmatpush1.msra.mxu0 0.0
    %1090 = vmatprep.subr.mxu0 0.0
    %1091 = vmatpush1.msra.mxu0 0.0
    %1092 = vmatprep.subr.mxu0 0.0
    %1093 = vmatpush1.msra.mxu0 0.0
    %1094 = vmatprep.subr.mxu0 0.0
    %1095 = vmatpush1.msra.mxu0 0.0
    %1096 = vmatprep.subr.mxu0 0.0
    %1097 = vmatpush1.msra.mxu0 0.0
    %1098 = vmatprep.subr.mxu0 0.0
    %1099 = vmatpush1.msra.mxu0 0.0
    %1100 = vmatprep.subr.mxu0 0.0
    %1101 = vmatpush1.msra.mxu0 0.0
    %1102 = vmatprep.subr.mxu0 0.0
    %1103 = vmatpush1.msra.mxu0 0.0
    %1104 = vmatprep.subr.mxu0 0.0
    %1105 = vmatpush1.msra.mxu0 0.0
    %1106 = vmatprep.subr.mxu0 0.0
    %1107 = vmatpush1.msra.mxu0 0.0
    %1108 = vmatprep.subr.mxu0 0.0
    %1109 = vmatpush1.msra.mxu0 0.0
    %1110 = vmatprep.mubr.f32.mxu0 0.0
    %1111 = vmatmul.mubr.f32.gmra.mrb[0].mxu0 %v890
    %v1112 = vpop.f32.mrb[0].mxu0
    %v1113 = vadd.f32 0.0, %v1112
    %v1114 = vpop.f32.mrb[0].mxu0
    %1115 = vdwg.mxu0
    %v1116 = vadd.f32 %v391, %v1113
    %v1117 = vtanh.pop %v1116
    %1118 = vmatprep.subr.mxu0 0.0
    %1119 = vmatpush1.msra.mxu0 %v569
    %1120 = vmatprep.subr.mxu0 0.0
    %1121 = vmatpush1.msra.mxu0 %v570
    %1122 = vmatprep.subr.mxu0 0.0
    %1123 = vmatpush1.msra.mxu0 %v571
    %1124 = vmatprep.subr.mxu0 0.0
    %1125 = vmatpush1.msra.mxu0 %v572
    %1126 = vmatprep.subr.mxu0 0.0
    %1127 = vmatpush1.msra.mxu0 %v573
    %1128 = vmatprep.subr.mxu0 0.0
    %1129 = vmatpush1.msra.mxu0 %v574
    %1130 = vmatprep.subr.mxu0 0.0
    %1131 = vmatpush1.msra.mxu0 %v575
    %1132 = vmatprep.subr.mxu0 0.0
    %1133 = vmatpush1.msra.mxu0 %v576
    %1134 = vmatprep.subr.mxu0 0.0
    %1135 = vmatpush1.msra.mxu0 0.0
    %1136 = vmatprep.subr.mxu0 0.0
    %1137 = vmatpush1.msra.mxu0 0.0
    %1138 = vmatprep.subr.mxu0 0.0
    %1139 = vmatpush1.msra.mxu0 0.0
    %1140 = vmatprep.subr.mxu0 0.0
    %1141 = vmatpush1.msra.mxu0 0.0
    %1142 = vmatprep.subr.mxu0 0.0
    %1143 = vmatpush1.msra.mxu0 0.0
    %1144 = vmatprep.subr.mxu0 0.0
    %1145 = vmatpush1.msra.mxu0 0.0
    %1146 = vmatprep.subr.mxu0 0.0
    %1147 = vmatpush1.msra.mxu0 0.0
    %1148 = vmatprep.subr.mxu0 0.0
    %1149 = vmatpush1.msra.mxu0 0.0
    %1150 = vmatprep.subr.mxu0 0.0
    %1151 = vmatpush1.msra.mxu0 0.0
    %1152 = vmatprep.subr.mxu0 0.0
    %1153 = vmatpush1.msra.mxu0 0.0
    %1154 = vmatprep.subr.mxu0 0.0
    %1155 = vmatpush1.msra.mxu0 0.0
    %1156 = vmatprep.subr.mxu0 0.0
    %1157 = vmatpush1.msra.mxu0 0.0
    %1158 = vmatprep.subr.mxu0 0.0
    %1159 = vmatpush1.msra.mxu0 0.0
    %1160 = vmatprep.subr.mxu0 0.0
    %1161 = vmatpush1.msra.mxu0 0.0
    %1162 = vmatprep.subr.mxu0 0.0
    %1163 = vmatpush1.msra.mxu0 0.0
    %1164 = vmatprep.subr.mxu0 0.0
    %1165 = vmatpush1.msra.mxu0 0.0
    %1166 = vmatprep.subr.mxu0 0.0
    %1167 = vmatpush1.msra.mxu0 0.0
    %1168 = vmatprep.subr.mxu0 0.0
    %1169 = vmatpush1.msra.mxu0 0.0
    %1170 = vmatprep.subr.mxu0 0.0
    %1171 = vmatpush1.msra.mxu0 0.0
    %1172 = vmatprep.subr.mxu0 0.0
    %1173 = vmatpush1.msra.mxu0 0.0
    %1174 = vmatprep.subr.mxu0 0.0
    %1175 = vmatpush1.msra.mxu0 0.0
    %1176 = vmatprep.subr.mxu0 0.0
    %1177 = vmatpush1.msra.mxu0 0.0
    %1178 = vmatprep.subr.mxu0 0.0
    %1179 = vmatpush1.msra.mxu0 0.0
    %1180 = vmatprep.subr.mxu0 0.0
    %1181 = vmatpush1.msra.mxu0 0.0
    %1182 = vmatprep.mubr.f32.mxu0 0.0
    %1183 = vmatmul.mubr.f32.gmra.mrb[0].mxu0 %v890
    %v1184 = vpop.f32.mrb[0].mxu0
    %v1185 = vadd.f32 0.0, %v1184
    %v1186 = vpop.f32.mrb[0].mxu0
    %1187 = vdwg.mxu0
    %v1188 = vadd.f32 %v509, %v1185
    %v1189 = vxor.u32 %v1188, 2147483648
    %v1190 = vmul.f32 %v1189, 1.442695
    %v1191 = vpow.pop %v1190
    %v1192 = vadd.f32 %v1191, 1.0
    %v1193 = vrcp.pop %v1192
    %v1194 = vmul.f32 1.0, %v1193
    %v1195 = vmul.f32 %v1045, %v886
    %v1196 = vmul.f32 %v968, %v1117
    %v1197 = vadd.f32 %v1195, %v1196
    %v1198 = vtanh.pop %v1197
    %v1199 = vmul.f32 %v1194, %v1198
    %v1201 = vsel %vm577, %v1199, 0
    %1203 = vmatprep.subr.mxu0 0.0
    %1204 = vmatpush1.msra.mxu0 %v542
    %1205 = vmatprep.subr.mxu0 0.0
    %1206 = vmatpush1.msra.mxu0 %v543
    %1207 = vmatprep.subr.mxu0 0.0
    %1208 = vmatpush1.msra.mxu0 %v544
    %1209 = vmatprep.subr.mxu0 0.0
    %1210 = vmatpush1.msra.mxu0 %v545
    %1211 = vmatprep.subr.mxu0 0.0
    %1212 = vmatpush1.msra.mxu0 %v546
    %1213 = vmatprep.subr.mxu0 0.0
    %1214 = vmatpush1.msra.mxu0 %v547
    %1215 = vmatprep.subr.mxu0 0.0
    %1216 = vmatpush1.msra.mxu0 %v548
    %1217 = vmatprep.subr.mxu0 0.0
    %1218 = vmatpush1.msra.mxu0 %v549
    %1219 = vmatprep.subr.mxu0 0.0
    %1220 = vmatpush1.msra.mxu0 0.0
    %1221 = vmatprep.subr.mxu0 0.0
    %1222 = vmatpush1.msra.mxu0 0.0
    %1223 = vmatprep.subr.mxu0 0.0
    %1224 = vmatpush1.msra.mxu0 0.0
    %1225 = vmatprep.subr.mxu0 0.0
    %1226 = vmatpush1.msra.mxu0 0.0
    %1227 = vmatprep.subr.mxu0 0.0
    %1228 = vmatpush1.msra.mxu0 0.0
    %1229 = vmatprep.subr.mxu0 0.0
    %1230 = vmatpush1.msra.mxu0 0.0
    %1231 = vmatprep.subr.mxu0 0.0
    %1232 = vmatpush1.msra.mxu0 0.0
    %1233 = vmatprep.subr.mxu0 0.0
    %1234 = vmatpush1.msra.mxu0 0.0
    %1235 = vmatprep.subr.mxu0 0.0
    %1236 = vmatpush1.msra.mxu0 0.0
    %1237 = vmatprep.subr.mxu0 0.0
    %1238 = vmatpush1.msra.mxu0 0.0
    %1239 = vmatprep.subr.mxu0 0.0
    %1240 = vmatpush1.msra.mxu0 0.0
    %1241 = vmatprep.subr.mxu0 0.0
    %1242 = vmatpush1.msra.mxu0 0.0
    %1243 = vmatprep.subr.mxu0 0.0
    %1244 = vmatpush1.msra.mxu0 0.0
    %1245 = vmatprep.subr.mxu0 0.0
    %1246 = vmatpush1.msra.mxu0 0.0
    %1247 = vmatprep.subr.mxu0 0.0
    %1248 = vmatpush1.msra.mxu0 0.0
    %1249 = vmatprep.subr.mxu0 0.0
    %1250 = vmatpush1.msra.mxu0 0.0
    %1251 = vmatprep.subr.mxu0 0.0
    %1252 = vmatpush1.msra.mxu0 0.0
    %1253 = vmatprep.subr.mxu0 0.0
    %1254 = vmatpush1.msra.mxu0 0.0
    %1255 = vmatprep.subr.mxu0 0.0
    %1256 = vmatpush1.msra.mxu0 0.0
    %1257 = vmatprep.subr.mxu0 0.0
    %1258 = vmatpush1.msra.mxu0 0.0
    %1259 = vmatprep.subr.mxu0 0.0
    %1260 = vmatpush1.msra.mxu0 0.0
    %1261 = vmatprep.subr.mxu0 0.0
    %1262 = vmatpush1.msra.mxu0 0.0
    %1263 = vmatprep.subr.mxu0 0.0
    %1264 = vmatpush1.msra.mxu0 0.0
    %1265 = vmatprep.subr.mxu0 0.0
    %1266 = vmatpush1.msra.mxu0 0.0
    %1267 = vmatprep.mubr.f32.mxu0 0.0
    %1268 = vmatmul.mubr.f32.gmra.mrb[0].mxu0 %v1201
    %v1269 = vpop.f32.mrb[0].mxu0
    %v1270 = vadd.f32 0.0, %v1269
    %v1271 = vpop.f32.mrb[0].mxu0
    %1272 = vdwg.mxu0
    %v1273 = vadd.f32 %v160, %v1270
    %v1274 = vxor.u32 %v1273, 2147483648
    %v1275 = vmul.f32 %v1274, 1.442695
    %v1276 = vpow.pop %v1275
    %v1277 = vadd.f32 %v1276, 1.0
    %v1278 = vrcp.pop %v1277
    %v1279 = vmul.f32 1.0, %v1278
    %1280 = vmatprep.subr.mxu0 0.0
    %1281 = vmatpush1.msra.mxu0 %v551
    %1282 = vmatprep.subr.mxu0 0.0
    %1283 = vmatpush1.msra.mxu0 %v552
    %1284 = vmatprep.subr.mxu0 0.0
    %1285 = vmatpush1.msra.mxu0 %v553
    %1286 = vmatprep.subr.mxu0 0.0
    %1287 = vmatpush1.msra.mxu0 %v554
    %1288 = vmatprep.subr.mxu0 0.0
    %1289 = vmatpush1.msra.mxu0 %v555
    %1290 = vmatprep.subr.mxu0 0.0
    %1291 = vmatpush1.msra.mxu0 %v556
    %1292 = vmatprep.subr.mxu0 0.0
    %1293 = vmatpush1.msra.mxu0 %v557
    %1294 = vmatprep.subr.mxu0 0.0
    %1295 = vmatpush1.msra.mxu0 %v558
    %1296 = vmatprep.subr.mxu0 0.0
    %1297 = vmatpush1.msra.mxu0 0.0
    %1298 = vmatprep.subr.mxu0 0.0
    %1299 = vmatpush1.msra.mxu0 0.0
    %1300 = vmatprep.subr.mxu0 0.0
    %1301 = vmatpush1.msra.mxu0 0.0
    %1302 = vmatprep.subr.mxu0 0.0
    %1303 = vmatpush1.msra.mxu0 0.0
    %1304 = vmatprep.subr.mxu0 0.0
    %1305 = vmatpush1.msra.mxu0 0.0
    %1306 = vmatprep.subr.mxu0 0.0
    %1307 = vmatpush1.msra.mxu0 0.0
    %1308 = vmatprep.subr.mxu0 0.0
    %1309 = vmatpush1.msra.mxu0 0.0
    %1310 = vmatprep.subr.mxu0 0.0
    %1311 = vmatpush1.msra.mxu0 0.0
    %1312 = vmatprep.subr.mxu0 0.0
    %1313 = vmatpush1.msra.mxu0 0.0
    %1314 = vmatprep.subr.mxu0 0.0
    %1315 = vmatpush1.msra.mxu0 0.0
    %1316 = vmatprep.subr.mxu0 0.0
    %1317 = vmatpush1.msra.mxu0 0.0
    %1318 = vmatprep.subr.mxu0 0.0
    %1319 = vmatpush1.msra.mxu0 0.0
    %1320 = vmatprep.subr.mxu0 0.0
    %1321 = vmatpush1.msra.mxu0 0.0
    %1322 = vmatprep.subr.mxu0 0.0
    %1323 = vmatpush1.msra.mxu0 0.0
    %1324 = vmatprep.subr.mxu0 0.0
    %1325 = vmatpush1.msra.mxu0 0.0
    %1326 = vmatprep.subr.mxu0 0.0
    %1327 = vmatpush1.msra.mxu0 0.0
    %1328 = vmatprep.subr.mxu0 0.0
    %1329 = vmatpush1.msra.mxu0 0.0
    %1330 = vmatprep.subr.mxu0 0.0
    %1331 = vmatpush1.msra.mxu0 0.0
    %1332 = vmatprep.subr.mxu0 0.0
    %1333 = vmatpush1.msra.mxu0 0.0
    %1334 = vmatprep.subr.mxu0 0.0
    %1335 = vmatpush1.msra.mxu0 0.0
    %1336 = vmatprep.subr.mxu0 0.0
    %1337 = vmatpush1.msra.mxu0 0.0
    %1338 = vmatprep.subr.mxu0 0.0
    %1339 = vmatpush1.msra.mxu0 0.0
    %1340 = vmatprep.subr.mxu0 0.0
    %1341 = vmatpush1.msra.mxu0 0.0
    %1342 = vmatprep.subr.mxu0 0.0
    %1343 = vmatpush1.msra.mxu0 0.0
    %1344 = vmatprep.mubr.f32.mxu0 0.0
    %1345 = vmatmul.mubr.f32.gmra.mrb[0].mxu0 %v1201
    %v1346 = vpop.f32.mrb[0].mxu0
    %v1347 = vadd.f32 0.0, %v1346
    %v1348 = vpop.f32.mrb[0].mxu0
    %1349 = vdwg.mxu0
    %v1350 = vadd.f32 %v278, %v1347
    %v1351 = vxor.u32 %v1350, 2147483648
    %v1352 = vmul.f32 %v1351, 1.442695
    %v1353 = vpow.pop %v1352
    %v1354 = vadd.f32 %v1353, 1.0
    %v1355 = vrcp.pop %v1354
    %v1356 = vmul.f32 1.0, %v1355
    %1357 = vmatprep.subr.mxu0 0.0
    %1358 = vmatpush1.msra.mxu0 %v560
    %1359 = vmatprep.subr.mxu0 0.0
    %1360 = vmatpush1.msra.mxu0 %v561
    %1361 = vmatprep.subr.mxu0 0.0
    %1362 = vmatpush1.msra.mxu0 %v562
    %1363 = vmatprep.subr.mxu0 0.0
    %1364 = vmatpush1.msra.mxu0 %v563
    %1365 = vmatprep.subr.mxu0 0.0
    %1366 = vmatpush1.msra.mxu0 %v564
    %1367 = vmatprep.subr.mxu0 0.0
    %1368 = vmatpush1.msra.mxu0 %v565
    %1369 = vmatprep.subr.mxu0 0.0
    %1370 = vmatpush1.msra.mxu0 %v566
    %1371 = vmatprep.subr.mxu0 0.0
    %1372 = vmatpush1.msra.mxu0 %v567
    %1373 = vmatprep.subr.mxu0 0.0
    %1374 = vmatpush1.msra.mxu0 0.0
    %1375 = vmatprep.subr.mxu0 0.0
    %1376 = vmatpush1.msra.mxu0 0.0
    %1377 = vmatprep.subr.mxu0 0.0
    %1378 = vmatpush1.msra.mxu0 0.0
    %1379 = vmatprep.subr.mxu0 0.0
    %1380 = vmatpush1.msra.mxu0 0.0
    %1381 = vmatprep.subr.mxu0 0.0
    %1382 = vmatpush1.msra.mxu0 0.0
    %1383 = vmatprep.subr.mxu0 0.0
    %1384 = vmatpush1.msra.mxu0 0.0
    %1385 = vmatprep.subr.mxu0 0.0
    %1386 = vmatpush1.msra.mxu0 0.0
    %1387 = vmatprep.subr.mxu0 0.0
    %1388 = vmatpush1.msra.mxu0 0.0
    %1389 = vmatprep.subr.mxu0 0.0
    %1390 = vmatpush1.msra.mxu0 0.0
    %1391 = vmatprep.subr.mxu0 0.0
    %1392 = vmatpush1.msra.mxu0 0.0
    %1393 = vmatprep.subr.mxu0 0.0
    %1394 = vmatpush1.msra.mxu0 0.0
    %1395 = vmatprep.subr.mxu0 0.0
    %1396 = vmatpush1.msra.mxu0 0.0
    %1397 = vmatprep.subr.mxu0 0.0
    %1398 = vmatpush1.msra.mxu0 0.0
    %1399 = vmatprep.subr.mxu0 0.0
    %1400 = vmatpush1.msra.mxu0 0.0
    %1401 = vmatprep.subr.mxu0 0.0
    %1402 = vmatpush1.msra.mxu0 0.0
    %1403 = vmatprep.subr.mxu0 0.0
    %1404 = vmatpush1.msra.mxu0 0.0
    %1405 = vmatprep.subr.mxu0 0.0
    %1406 = vmatpush1.msra.mxu0 0.0
    %1407 = vmatprep.subr.mxu0 0.0
    %1408 = vmatpush1.msra.mxu0 0.0
    %1409 = vmatprep.subr.mxu0 0.0
    %1410 = vmatpush1.msra.mxu0 0.0
    %1411 = vmatprep.subr.mxu0 0.0
    %1412 = vmatpush1.msra.mxu0 0.0
    %1413 = vmatprep.subr.mxu0 0.0
    %1414 = vmatpush1.msra.mxu0 0.0
    %1415 = vmatprep.subr.mxu0 0.0
    %1416 = vmatpush1.msra.mxu0 0.0
    %1417 = vmatprep.subr.mxu0 0.0
    %1418 = vmatpush1.msra.mxu0 0.0
    %1419 = vmatprep.subr.mxu0 0.0
    %1420 = vmatpush1.msra.mxu0 0.0
    %1421 = vmatprep.mubr.f32.mxu0 0.0
    %1422 = vmatmul.mubr.f32.gmra.mrb[0].mxu0 %v1201
    %v1423 = vpop.f32.mrb[0].mxu0
    %v1424 = vadd.f32 0.0, %v1423
    %v1425 = vpop.f32.mrb[0].mxu0
    %1426 = vdwg.mxu0
    %v1427 = vadd.f32 %v396, %v1424
    %v1428 = vtanh.pop %v1427
    %1429 = vmatprep.subr.mxu0 0.0
    %1430 = vmatpush1.msra.mxu0 %v569
    %1431 = vmatprep.subr.mxu0 0.0
    %1432 = vmatpush1.msra.mxu0 %v570
    %1433 = vmatprep.subr.mxu0 0.0
    %1434 = vmatpush1.msra.mxu0 %v571
    %1435 = vmatprep.subr.mxu0 0.0
    %1436 = vmatpush1.msra.mxu0 %v572
    %1437 = vmatprep.subr.mxu0 0.0
    %1438 = vmatpush1.msra.mxu0 %v573
    %1439 = vmatprep.subr.mxu0 0.0
    %1440 = vmatpush1.msra.mxu0 %v574
    %1441 = vmatprep.subr.mxu0 0.0
    %1442 = vmatpush1.msra.mxu0 %v575
    %1443 = vmatprep.subr.mxu0 0.0
    %1444 = vmatpush1.msra.mxu0 %v576
    %1445 = vmatprep.subr.mxu0 0.0
    %1446 = vmatpush1.msra.mxu0 0.0
    %1447 = vmatprep.subr.mxu0 0.0
    %1448 = vmatpush1.msra.mxu0 0.0
    %1449 = vmatprep.subr.mxu0 0.0
    %1450 = vmatpush1.msra.mxu0 0.0
    %1451 = vmatprep.subr.mxu0 0.0
    %1452 = vmatpush1.msra.mxu0 0.0
    %1453 = vmatprep.subr.mxu0 0.0
    %1454 = vmatpush1.msra.mxu0 0.0
    %1455 = vmatprep.subr.mxu0 0.0
    %1456 = vmatpush1.msra.mxu0 0.0
    %1457 = vmatprep.subr.mxu0 0.0
    %1458 = vmatpush1.msra.mxu0 0.0
    %1459 = vmatprep.subr.mxu0 0.0
    %1460 = vmatpush1.msra.mxu0 0.0
    %1461 = vmatprep.subr.mxu0 0.0
    %1462 = vmatpush1.msra.mxu0 0.0
    %1463 = vmatprep.subr.mxu0 0.0
    %1464 = vmatpush1.msra.mxu0 0.0
    %1465 = vmatprep.subr.mxu0 0.0
    %1466 = vmatpush1.msra.mxu0 0.0
    %1467 = vmatprep.subr.mxu0 0.0
    %1468 = vmatpush1.msra.mxu0 0.0
    %1469 = vmatprep.subr.mxu0 0.0
    %1470 = vmatpush1.msra.mxu0 0.0
    %1471 = vmatprep.subr.mxu0 0.0
    %1472 = vmatpush1.msra.mxu0 0.0
    %1473 = vmatprep.subr.mxu0 0.0
    %1474 = vmatpush1.msra.mxu0 0.0
    %1475 = vmatprep.subr.mxu0 0.0
    %1476 = vmatpush1.msra.mxu0 0.0
    %1477 = vmatprep.subr.mxu0 0.0
    %1478 = vmatpush1.msra.mxu0 0.0
    %1479 = vmatprep.subr.mxu0 0.0
    %1480 = vmatpush1.msra.mxu0 0.0
    %1481 = vmatprep.subr.mxu0 0.0
    %1482 = vmatpush1.msra.mxu0 0.0
    %1483 = vmatprep.subr.mxu0 0.0
    %1484 = vmatpush1.msra.mxu0 0.0
    %1485 = vmatprep.subr.mxu0 0.0
    %1486 = vmatpush1.msra.mxu0 0.0
    %1487 = vmatprep.subr.mxu0 0.0
    %1488 = vmatpush1.msra.mxu0 0.0
    %1489 = vmatprep.subr.mxu0 0.0
    %1490 = vmatpush1.msra.mxu0 0.0
    %1491 = vmatprep.subr.mxu0 0.0
    %1492 = vmatpush1.msra.mxu0 0.0
    %1493 = vmatprep.mubr.f32.mxu0 0.0
    %1494 = vmatmul.mubr.f32.gmra.mrb[0].mxu0 %v1201
    %v1495 = vpop.f32.mrb[0].mxu0
    %v1496 = vadd.f32 0.0, %v1495
    %v1497 = vpop.f32.mrb[0].mxu0
    %1498 = vdwg.mxu0
    %v1499 = vadd.f32 %v514, %v1496
    %v1500 = vxor.u32 %v1499, 2147483648
    %v1501 = vmul.f32 %v1500, 1.442695
    %v1502 = vpow.pop %v1501
    %v1503 = vadd.f32 %v1502, 1.0
    %v1504 = vrcp.pop %v1503
    %v1505 = vmul.f32 1.0, %v1504
    %v1506 = vmul.f32 %v1356, %v1197
    %v1507 = vmul.f32 %v1279, %v1428
    %v1508 = vadd.f32 %v1506, %v1507
    %v1509 = vtanh.pop %v1508
    %v1510 = vmul.f32 %v1505, %v1509
    %v1512 = vsel %vm577, %v1510, 0
    %1514 = vmatprep.subr.mxu0 0.0
    %1515 = vmatpush1.msra.mxu0 %v542
    %1516 = vmatprep.subr.mxu0 0.0
    %1517 = vmatpush1.msra.mxu0 %v543
    %1518 = vmatprep.subr.mxu0 0.0
    %1519 = vmatpush1.msra.mxu0 %v544
    %1520 = vmatprep.subr.mxu0 0.0
    %1521 = vmatpush1.msra.mxu0 %v545
    %1522 = vmatprep.subr.mxu0 0.0
    %1523 = vmatpush1.msra.mxu0 %v546
    %1524 = vmatprep.subr.mxu0 0.0
    %1525 = vmatpush1.msra.mxu0 %v547
    %1526 = vmatprep.subr.mxu0 0.0
    %1527 = vmatpush1.msra.mxu0 %v548
    %1528 = vmatprep.subr.mxu0 0.0
    %1529 = vmatpush1.msra.mxu0 %v549
    %1530 = vmatprep.subr.mxu0 0.0
    %1531 = vmatpush1.msra.mxu0 0.0
    %1532 = vmatprep.subr.mxu0 0.0
    %1533 = vmatpush1.msra.mxu0 0.0
    %1534 = vmatprep.subr.mxu0 0.0
    %1535 = vmatpush1.msra.mxu0 0.0
    %1536 = vmatprep.subr.mxu0 0.0
    %1537 = vmatpush1.msra.mxu0 0.0
    %1538 = vmatprep.subr.mxu0 0.0
    %1539 = vmatpush1.msra.mxu0 0.0
    %1540 = vmatprep.subr.mxu0 0.0
    %1541 = vmatpush1.msra.mxu0 0.0
    %1542 = vmatprep.subr.mxu0 0.0
    %1543 = vmatpush1.msra.mxu0 0.0
    %1544 = vmatprep.subr.mxu0 0.0
    %1545 = vmatpush1.msra.mxu0 0.0
    %1546 = vmatprep.subr.mxu0 0.0
    %1547 = vmatpush1.msra.mxu0 0.0
    %1548 = vmatprep.subr.mxu0 0.0
    %1549 = vmatpush1.msra.mxu0 0.0
    %1550 = vmatprep.subr.mxu0 0.0
    %1551 = vmatpush1.msra.mxu0 0.0
    %1552 = vmatprep.subr.mxu0 0.0
    %1553 = vmatpush1.msra.mxu0 0.0
    %1554 = vmatprep.subr.mxu0 0.0
    %1555 = vmatpush1.msra.mxu0 0.0
    %1556 = vmatprep.subr.mxu0 0.0
    %1557 = vmatpush1.msra.mxu0 0.0
    %1558 = vmatprep.subr.mxu0 0.0
    %1559 = vmatpush1.msra.mxu0 0.0
    %1560 = vmatprep.subr.mxu0 0.0
    %1561 = vmatpush1.msra.mxu0 0.0
    %1562 = vmatprep.subr.mxu0 0.0
    %1563 = vmatpush1.msra.mxu0 0.0
    %1564 = vmatprep.subr.mxu0 0.0
    %1565 = vmatpush1.msra.mxu0 0.0
    %1566 = vmatprep.subr.mxu0 0.0
    %1567 = vmatpush1.msra.mxu0 0.0
    %1568 = vmatprep.subr.mxu0 0.0
    %1569 = vmatpush1.msra.mxu0 0.0
    %1570 = vmatprep.subr.mxu0 0.0
    %1571 = vmatpush1.msra.mxu0 0.0
    %1572 = vmatprep.subr.mxu0 0.0
    %1573 = vmatpush1.msra.mxu0 0.0
    %1574 = vmatprep.subr.mxu0 0.0
    %1575 = vmatpush1.msra.mxu0 0.0
    %1576 = vmatprep.subr.mxu0 0.0
    %1577 = vmatpush1.msra.mxu0 0.0
    %1578 = vmatprep.mubr.f32.mxu0 0.0
    %1579 = vmatmul.mubr.f32.gmra.mrb[0].mxu0 %v1512
    %v1580 = vpop.f32.mrb[0].mxu0
    %v1581 = vadd.f32 0.0, %v1580
    %v1582 = vpop.f32.mrb[0].mxu0
    %1583 = vdwg.mxu0
    %v1584 = vadd.f32 %v165, %v1581
    %v1585 = vxor.u32 %v1584, 2147483648
    %v1586 = vmul.f32 %v1585, 1.442695
    %v1587 = vpow.pop %v1586
    %v1588 = vadd.f32 %v1587, 1.0
    %v1589 = vrcp.pop %v1588
    %v1590 = vmul.f32 1.0, %v1589
    %1591 = vmatprep.subr.mxu0 0.0
    %1592 = vmatpush1.msra.mxu0 %v551
    %1593 = vmatprep.subr.mxu0 0.0
    %1594 = vmatpush1.msra.mxu0 %v552
    %1595 = vmatprep.subr.mxu0 0.0
    %1596 = vmatpush1.msra.mxu0 %v553
    %1597 = vmatprep.subr.mxu0 0.0
    %1598 = vmatpush1.msra.mxu0 %v554
    %1599 = vmatprep.subr.mxu0 0.0
    %1600 = vmatpush1.msra.mxu0 %v555
    %1601 = vmatprep.subr.mxu0 0.0
    %1602 = vmatpush1.msra.mxu0 %v556
    %1603 = vmatprep.subr.mxu0 0.0
    %1604 = vmatpush1.msra.mxu0 %v557
    %1605 = vmatprep.subr.mxu0 0.0
    %1606 = vmatpush1.msra.mxu0 %v558
    %1607 = vmatprep.subr.mxu0 0.0
    %1608 = vmatpush1.msra.mxu0 0.0
    %1609 = vmatprep.subr.mxu0 0.0
    %1610 = vmatpush1.msra.mxu0 0.0
    %1611 = vmatprep.subr.mxu0 0.0
    %1612 = vmatpush1.msra.mxu0 0.0
    %1613 = vmatprep.subr.mxu0 0.0
    %1614 = vmatpush1.msra.mxu0 0.0
    %1615 = vmatprep.subr.mxu0 0.0
    %1616 = vmatpush1.msra.mxu0 0.0
    %1617 = vmatprep.subr.mxu0 0.0
    %1618 = vmatpush1.msra.mxu0 0.0
    %1619 = vmatprep.subr.mxu0 0.0
    %1620 = vmatpush1.msra.mxu0 0.0
    %1621 = vmatprep.subr.mxu0 0.0
    %1622 = vmatpush1.msra.mxu0 0.0
    %1623 = vmatprep.subr.mxu0 0.0
    %1624 = vmatpush1.msra.mxu0 0.0
    %1625 = vmatprep.subr.mxu0 0.0
    %1626 = vmatpush1.msra.mxu0 0.0
    %1627 = vmatprep.subr.mxu0 0.0
    %1628 = vmatpush1.msra.mxu0 0.0
    %1629 = vmatprep.subr.mxu0 0.0
    %1630 = vmatpush1.msra.mxu0 0.0
    %1631 = vmatprep.subr.mxu0 0.0
    %1632 = vmatpush1.msra.mxu0 0.0
    %1633 = vmatprep.subr.mxu0 0.0
    %1634 = vmatpush1.msra.mxu0 0.0
    %1635 = vmatprep.subr.mxu0 0.0
    %1636 = vmatpush1.msra.mxu0 0.0
    %1637 = vmatprep.subr.mxu0 0.0
    %1638 = vmatpush1.msra.mxu0 0.0
    %1639 = vmatprep.subr.mxu0 0.0
    %1640 = vmatpush1.msra.mxu0 0.0
    %1641 = vmatprep.subr.mxu0 0.0
    %1642 = vmatpush1.msra.mxu0 0.0
    %1643 = vmatprep.subr.mxu0 0.0
    %1644 = vmatpush1.msra.mxu0 0.0
    %1645 = vmatprep.subr.mxu0 0.0
    %1646 = vmatpush1.msra.mxu0 0.0
    %1647 = vmatprep.subr.mxu0 0.0
    %1648 = vmatpush1.msra.mxu0 0.0
    %1649 = vmatprep.subr.mxu0 0.0
    %1650 = vmatpush1.msra.mxu0 0.0
    %1651 = vmatprep.subr.mxu0 0.0
    %1652 = vmatpush1.msra.mxu0 0.0
    %1653 = vmatprep.subr.mxu0 0.0
    %1654 = vmatpush1.msra.mxu0 0.0
    %1655 = vmatprep.mubr.f32.mxu0 0.0
    %1656 = vmatmul.mubr.f32.gmra.mrb[0].mxu0 %v1512
    %v1657 = vpop.f32.mrb[0].mxu0
    %v1658 = vadd.f32 0.0, %v1657
    %v1659 = vpop.f32.mrb[0].mxu0
    %1660 = vdwg.mxu0
    %v1661 = vadd.f32 %v283, %v1658
    %v1662 = vxor.u32 %v1661, 2147483648
    %v1663 = vmul.f32 %v1662, 1.442695
    %v1664 = vpow.pop %v1663
    %v1665 = vadd.f32 %v1664, 1.0
    %v1666 = vrcp.pop %v1665
    %v1667 = vmul.f32 1.0, %v1666
    %1668 = vmatprep.subr.mxu0 0.0
    %1669 = vmatpush1.msra.mxu0 %v560
    %1670 = vmatprep.subr.mxu0 0.0
    %1671 = vmatpush1.msra.mxu0 %v561
    %1672 = vmatprep.subr.mxu0 0.0
    %1673 = vmatpush1.msra.mxu0 %v562
    %1674 = vmatprep.subr.mxu0 0.0
    %1675 = vmatpush1.msra.mxu0 %v563
    %1676 = vmatprep.subr.mxu0 0.0
    %1677 = vmatpush1.msra.mxu0 %v564
    %1678 = vmatprep.subr.mxu0 0.0
    %1679 = vmatpush1.msra.mxu0 %v565
    %1680 = vmatprep.subr.mxu0 0.0
    %1681 = vmatpush1.msra.mxu0 %v566
    %1682 = vmatprep.subr.mxu0 0.0
    %1683 = vmatpush1.msra.mxu0 %v567
    %1684 = vmatprep.subr.mxu0 0.0
    %1685 = vmatpush1.msra.mxu0 0.0
    %1686 = vmatprep.subr.mxu0 0.0
    %1687 = vmatpush1.msra.mxu0 0.0
    %1688 = vmatprep.subr.mxu0 0.0
    %1689 = vmatpush1.msra.mxu0 0.0
    %1690 = vmatprep.subr.mxu0 0.0
    %1691 = vmatpush1.msra.mxu0 0.0
    %1692 = vmatprep.subr.mxu0 0.0
    %1693 = vmatpush1.msra.mxu0 0.0
    %1694 = vmatprep.subr.mxu0 0.0
    %1695 = vmatpush1.msra.mxu0 0.0
    %1696 = vmatprep.subr.mxu0 0.0
    %1697 = vmatpush1.msra.mxu0 0.0
    %1698 = vmatprep.subr.mxu0 0.0
    %1699 = vmatpush1.msra.mxu0 0.0
    %1700 = vmatprep.subr.mxu0 0.0
    %1701 = vmatpush1.msra.mxu0 0.0
    %1702 = vmatprep.subr.mxu0 0.0
    %1703 = vmatpush1.msra.mxu0 0.0
    %1704 = vmatprep.subr.mxu0 0.0
    %1705 = vmatpush1.msra.mxu0 0.0
    %1706 = vmatprep.subr.mxu0 0.0
    %1707 = vmatpush1.msra.mxu0 0.0
    %1708 = vmatprep.subr.mxu0 0.0
    %1709 = vmatpush1.msra.mxu0 0.0
    %1710 = vmatprep.subr.mxu0 0.0
    %1711 = vmatpush1.msra.mxu0 0.0
    %1712 = vmatprep.subr.mxu0 0.0
    %1713 = vmatpush1.msra.mxu0 0.0
    %1714 = vmatprep.subr.mxu0 0.0
    %1715 = vmatpush1.msra.mxu0 0.0
    %1716 = vmatprep.subr.mxu0 0.0
    %1717 = vmatpush1.msra.mxu0 0.0
    %1718 = vmatprep.subr.mxu0 0.0
    %1719 = vmatpush1.msra.mxu0 0.0
    %1720 = vmatprep.subr.mxu0 0.0
    %1721 = vmatpush1.msra.mxu0 0.0
    %1722 = vmatprep.subr.mxu0 0.0
    %1723 = vmatpush1.msra.mxu0 0.0
    %1724 = vmatprep.subr.mxu0 0.0
    %1725 = vmatpush1.msra.mxu0 0.0
    %1726 = vmatprep.subr.mxu0 0.0
    %1727 = vmatpush1.msra.mxu0 0.0
    %1728 = vmatprep.subr.mxu0 0.0
    %1729 = vmatpush1.msra.mxu0 0.0
    %1730 = vmatprep.subr.mxu0 0.0
    %1731 = vmatpush1.msra.mxu0 0.0
    %1732 = vmatprep.mubr.f32.mxu0 0.0
    %1733 = vmatmul.mubr.f32.gmra.mrb[0].mxu0 %v1512
    %v1734 = vpop.f32.mrb[0].mxu0
    %v1735 = vadd.f32 0.0, %v1734
    %v1736 = vpop.f32.mrb[0].mxu0
    %1737 = vdwg.mxu0
    %v1738 = vadd.f32 %v401, %v1735
    %v1739 = vtanh.pop %v1738
    %1740 = vmatprep.subr.mxu0 0.0
    %1741 = vmatpush1.msra.mxu0 %v569
    %1742 = vmatprep.subr.mxu0 0.0
    %1743 = vmatpush1.msra.mxu0 %v570
    %1744 = vmatprep.subr.mxu0 0.0
    %1745 = vmatpush1.msra.mxu0 %v571
    %1746 = vmatprep.subr.mxu0 0.0
    %1747 = vmatpush1.msra.mxu0 %v572
    %1748 = vmatprep.subr.mxu0 0.0
    %1749 = vmatpush1.msra.mxu0 %v573
    %1750 = vmatprep.subr.mxu0 0.0
    %1751 = vmatpush1.msra.mxu0 %v574
    %1752 = vmatprep.subr.mxu0 0.0
    %1753 = vmatpush1.msra.mxu0 %v575
    %1754 = vmatprep.subr.mxu0 0.0
    %1755 = vmatpush1.msra.mxu0 %v576
    %1756 = vmatprep.subr.mxu0 0.0
    %1757 = vmatpush1.msra.mxu0 0.0
    %1758 = vmatprep.subr.mxu0 0.0
    %1759 = vmatpush1.msra.mxu0 0.0
    %1760 = vmatprep.subr.mxu0 0.0
    %1761 = vmatpush1.msra.mxu0 0.0
    %1762 = vmatprep.subr.mxu0 0.0
    %1763 = vmatpush1.msra.mxu0 0.0
    %1764 = vmatprep.subr.mxu0 0.0
    %1765 = vmatpush1.msra.mxu0 0.0
    %1766 = vmatprep.subr.mxu0 0.0
    %1767 = vmatpush1.msra.mxu0 0.0
    %1768 = vmatprep.subr.mxu0 0.0
    %1769 = vmatpush1.msra.mxu0 0.0
    %1770 = vmatprep.subr.mxu0 0.0
    %1771 = vmatpush1.msra.mxu0 0.0
    %1772 = vmatprep.subr.mxu0 0.0
    %1773 = vmatpush1.msra.mxu0 0.0
    %1774 = vmatprep.subr.mxu0 0.0
    %1775 = vmatpush1.msra.mxu0 0.0
    %1776 = vmatprep.subr.mxu0 0.0
    %1777 = vmatpush1.msra.mxu0 0.0
    %1778 = vmatprep.subr.mxu0 0.0
    %1779 = vmatpush1.msra.mxu0 0.0
    %1780 = vmatprep.subr.mxu0 0.0
    %1781 = vmatpush1.msra.mxu0 0.0
    %1782 = vmatprep.subr.mxu0 0.0
    %1783 = vmatpush1.msra.mxu0 0.0
    %1784 = vmatprep.subr.mxu0 0.0
    %1785 = vmatpush1.msra.mxu0 0.0
    %1786 = vmatprep.subr.mxu0 0.0
    %1787 = vmatpush1.msra.mxu0 0.0
    %1788 = vmatprep.subr.mxu0 0.0
    %1789 = vmatpush1.msra.mxu0 0.0
    %1790 = vmatprep.subr.mxu0 0.0
    %1791 = vmatpush1.msra.mxu0 0.0
    %1792 = vmatprep.subr.mxu0 0.0
    %1793 = vmatpush1.msra.mxu0 0.0
    %1794 = vmatprep.subr.mxu0 0.0
    %1795 = vmatpush1.msra.mxu0 0.0
    %1796 = vmatprep.subr.mxu0 0.0
    %1797 = vmatpush1.msra.mxu0 0.0
    %1798 = vmatprep.subr.mxu0 0.0
    %1799 = vmatpush1.msra.mxu0 0.0
    %1800 = vmatprep.subr.mxu0 0.0
    %1801 = vmatpush1.msra.mxu0 0.0
    %1802 = vmatprep.subr.mxu0 0.0
    %1803 = vmatpush1.msra.mxu0 0.0
    %1804 = vmatprep.mubr.f32.mxu0 0.0
    %1805 = vmatmul.mubr.f32.gmra.mrb[0].mxu0 %v1512
    %v1806 = vpop.f32.mrb[0].mxu0
    %v1807 = vadd.f32 0.0, %v1806
    %v1808 = vpop.f32.mrb[0].mxu0
    %1809 = vdwg.mxu0
    %v1810 = vadd.f32 %v519, %v1807
    %v1811 = vxor.u32 %v1810, 2147483648
    %v1812 = vmul.f32 %v1811, 1.442695
    %v1813 = vpow.pop %v1812
    %v1814 = vadd.f32 %v1813, 1.0
    %v1815 = vrcp.pop %v1814
    %v1816 = vmul.f32 1.0, %v1815
    %v1817 = vmul.f32 %v1667, %v1508
    %v1818 = vmul.f32 %v1590, %v1739
    %v1819 = vadd.f32 %v1817, %v1818
    %v1820 = vtanh.pop %v1819
    %v1821 = vmul.f32 %v1816, %v1820
    %v1823 = vsel %vm577, %v1821, 0
    %1825 = vmatprep.subr.mxu0 0.0
    %1826 = vmatpush1.msra.mxu0 %v542
    %1827 = vmatprep.subr.mxu0 0.0
    %1828 = vmatpush1.msra.mxu0 %v543
    %1829 = vmatprep.subr.mxu0 0.0
    %1830 = vmatpush1.msra.mxu0 %v544
    %1831 = vmatprep.subr.mxu0 0.0
    %1832 = vmatpush1.msra.mxu0 %v545
    %1833 = vmatprep.subr.mxu0 0.0
    %1834 = vmatpush1.msra.mxu0 %v546
    %1835 = vmatprep.subr.mxu0 0.0
    %1836 = vmatpush1.msra.mxu0 %v547
    %1837 = vmatprep.subr.mxu0 0.0
    %1838 = vmatpush1.msra.mxu0 %v548
    %1839 = vmatprep.subr.mxu0 0.0
    %1840 = vmatpush1.msra.mxu0 %v549
    %1841 = vmatprep.subr.mxu0 0.0
    %1842 = vmatpush1.msra.mxu0 0.0
    %1843 = vmatprep.subr.mxu0 0.0
    %1844 = vmatpush1.msra.mxu0 0.0
    %1845 = vmatprep.subr.mxu0 0.0
    %1846 = vmatpush1.msra.mxu0 0.0
    %1847 = vmatprep.subr.mxu0 0.0
    %1848 = vmatpush1.msra.mxu0 0.0
    %1849 = vmatprep.subr.mxu0 0.0
    %1850 = vmatpush1.msra.mxu0 0.0
    %1851 = vmatprep.subr.mxu0 0.0
    %1852 = vmatpush1.msra.mxu0 0.0
    %1853 = vmatprep.subr.mxu0 0.0
    %1854 = vmatpush1.msra.mxu0 0.0
    %1855 = vmatprep.subr.mxu0 0.0
    %1856 = vmatpush1.msra.mxu0 0.0
    %1857 = vmatprep.subr.mxu0 0.0
    %1858 = vmatpush1.msra.mxu0 0.0
    %1859 = vmatprep.subr.mxu0 0.0
    %1860 = vmatpush1.msra.mxu0 0.0
    %1861 = vmatprep.subr.mxu0 0.0
    %1862 = vmatpush1.msra.mxu0 0.0
    %1863 = vmatprep.subr.mxu0 0.0
    %1864 = vmatpush1.msra.mxu0 0.0
    %1865 = vmatprep.subr.mxu0 0.0
    %1866 = vmatpush1.msra.mxu0 0.0
    %1867 = vmatprep.subr.mxu0 0.0
    %1868 = vmatpush1.msra.mxu0 0.0
    %1869 = vmatprep.subr.mxu0 0.0
    %1870 = vmatpush1.msra.mxu0 0.0
    %1871 = vmatprep.subr.mxu0 0.0
    %1872 = vmatpush1.msra.mxu0 0.0
    %1873 = vmatprep.subr.mxu0 0.0
    %1874 = vmatpush1.msra.mxu0 0.0
    %1875 = vmatprep.subr.mxu0 0.0
    %1876 = vmatpush1.msra.mxu0 0.0
    %1877 = vmatprep.subr.mxu0 0.0
    %1878 = vmatpush1.msra.mxu0 0.0
    %1879 = vmatprep.subr.mxu0 0.0
    %1880 = vmatpush1.msra.mxu0 0.0
    %1881 = vmatprep.subr.mxu0 0.0
    %1882 = vmatpush1.msra.mxu0 0.0
    %1883 = vmatprep.subr.mxu0 0.0
    %1884 = vmatpush1.msra.mxu0 0.0
    %1885 = vmatprep.subr.mxu0 0.0
    %1886 = vmatpush1.msra.mxu0 0.0
    %1887 = vmatprep.subr.mxu0 0.0
    %1888 = vmatpush1.msra.mxu0 0.0
    %1889 = vmatprep.mubr.f32.mxu0 0.0
    %1890 = vmatmul.mubr.f32.gmra.mrb[0].mxu0 %v1823
    %v1891 = vpop.f32.mrb[0].mxu0
    %v1892 = vadd.f32 0.0, %v1891
    %v1893 = vpop.f32.mrb[0].mxu0
    %1894 = vdwg.mxu0
    %v1895 = vadd.f32 %v170, %v1892
    %v1896 = vxor.u32 %v1895, 2147483648
    %v1897 = vmul.f32 %v1896, 1.442695
    %v1898 = vpow.pop %v1897
    %v1899 = vadd.f32 %v1898, 1.0
    %v1900 = vrcp.pop %v1899
    %v1901 = vmul.f32 1.0, %v1900
    %1902 = vmatprep.subr.mxu0 0.0
    %1903 = vmatpush1.msra.mxu0 %v551
    %1904 = vmatprep.subr.mxu0 0.0
    %1905 = vmatpush1.msra.mxu0 %v552
    %1906 = vmatprep.subr.mxu0 0.0
    %1907 = vmatpush1.msra.mxu0 %v553
    %1908 = vmatprep.subr.mxu0 0.0
    %1909 = vmatpush1.msra.mxu0 %v554
    %1910 = vmatprep.subr.mxu0 0.0
    %1911 = vmatpush1.msra.mxu0 %v555
    %1912 = vmatprep.subr.mxu0 0.0
    %1913 = vmatpush1.msra.mxu0 %v556
    %1914 = vmatprep.subr.mxu0 0.0
    %1915 = vmatpush1.msra.mxu0 %v557
    %1916 = vmatprep.subr.mxu0 0.0
    %1917 = vmatpush1.msra.mxu0 %v558
    %1918 = vmatprep.subr.mxu0 0.0
    %1919 = vmatpush1.msra.mxu0 0.0
    %1920 = vmatprep.subr.mxu0 0.0
    %1921 = vmatpush1.msra.mxu0 0.0
    %1922 = vmatprep.subr.mxu0 0.0
    %1923 = vmatpush1.msra.mxu0 0.0
    %1924 = vmatprep.subr.mxu0 0.0
    %1925 = vmatpush1.msra.mxu0 0.0
    %1926 = vmatprep.subr.mxu0 0.0
    %1927 = vmatpush1.msra.mxu0 0.0
    %1928 = vmatprep.subr.mxu0 0.0
    %1929 = vmatpush1.msra.mxu0 0.0
    %1930 = vmatprep.subr.mxu0 0.0
    %1931 = vmatpush1.msra.mxu0 0.0
    %1932 = vmatprep.subr.mxu0 0.0
    %1933 = vmatpush1.msra.mxu0 0.0
    %1934 = vmatprep.subr.mxu0 0.0
    %1935 = vmatpush1.msra.mxu0 0.0
    %1936 = vmatprep.subr.mxu0 0.0
    %1937 = vmatpush1.msra.mxu0 0.0
    %1938 = vmatprep.subr.mxu0 0.0
    %1939 = vmatpush1.msra.mxu0 0.0
    %1940 = vmatprep.subr.mxu0 0.0
    %1941 = vmatpush1.msra.mxu0 0.0
    %1942 = vmatprep.subr.mxu0 0.0
    %1943 = vmatpush1.msra.mxu0 0.0
    %1944 = vmatprep.subr.mxu0 0.0
    %1945 = vmatpush1.msra.mxu0 0.0
    %1946 = vmatprep.subr.mxu0 0.0
    %1947 = vmatpush1.msra.mxu0 0.0
    %1948 = vmatprep.subr.mxu0 0.0
    %1949 = vmatpush1.msra.mxu0 0.0
    %1950 = vmatprep.subr.mxu0 0.0
    %1951 = vmatpush1.msra.mxu0 0.0
    %1952 = vmatprep.subr.mxu0 0.0
    %1953 = vmatpush1.msra.mxu0 0.0
    %1954 = vmatprep.subr.mxu0 0.0
    %1955 = vmatpush1.msra.mxu0 0.0
    %1956 = vmatprep.subr.mxu0 0.0
    %1957 = vmatpush1.msra.mxu0 0.0
    %1958 = vmatprep.subr.mxu0 0.0
    %1959 = vmatpush1.msra.mxu0 0.0
    %1960 = vmatprep.subr.mxu0 0.0
    %1961 = vmatpush1.msra.mxu0 0.0
    %1962 = vmatprep.subr.mxu0 0.0
    %1963 = vmatpush1.msra.mxu0 0.0
    %1964 = vmatprep.subr.mxu0 0.0
    %1965 = vmatpush1.msra.mxu0 0.0
    %1966 = vmatprep.mubr.f32.mxu0 0.0
    %1967 = vmatmul.mubr.f32.gmra.mrb[0].mxu0 %v1823
    %v1968 = vpop.f32.mrb[0].mxu0
    %v1969 = vadd.f32 0.0, %v1968
    %v1970 = vpop.f32.mrb[0].mxu0
    %1971 = vdwg.mxu0
    %v1972 = vadd.f32 %v288, %v1969
    %v1973 = vxor.u32 %v1972, 2147483648
    %v1974 = vmul.f32 %v1973, 1.442695
    %v1975 = vpow.pop %v1974
    %v1976 = vadd.f32 %v1975, 1.0
    %v1977 = vrcp.pop %v1976
    %v1978 = vmul.f32 1.0, %v1977
    %1979 = vmatprep.subr.mxu0 0.0
    %1980 = vmatpush1.msra.mxu0 %v560
    %1981 = vmatprep.subr.mxu0 0.0
    %1982 = vmatpush1.msra.mxu0 %v561
    %1983 = vmatprep.subr.mxu0 0.0
    %1984 = vmatpush1.msra.mxu0 %v562
    %1985 = vmatprep.subr.mxu0 0.0
    %1986 = vmatpush1.msra.mxu0 %v563
    %1987 = vmatprep.subr.mxu0 0.0
    %1988 = vmatpush1.msra.mxu0 %v564
    %1989 = vmatprep.subr.mxu0 0.0
    %1990 = vmatpush1.msra.mxu0 %v565
    %1991 = vmatprep.subr.mxu0 0.0
    %1992 = vmatpush1.msra.mxu0 %v566
    %1993 = vmatprep.subr.mxu0 0.0
    %1994 = vmatpush1.msra.mxu0 %v567
    %1995 = vmatprep.subr.mxu0 0.0
    %1996 = vmatpush1.msra.mxu0 0.0
    %1997 = vmatprep.subr.mxu0 0.0
    %1998 = vmatpush1.msra.mxu0 0.0
    %1999 = vmatprep.subr.mxu0 0.0
    %2000 = vmatpush1.msra.mxu0 0.0
    %2001 = vmatprep.subr.mxu0 0.0
    %2002 = vmatpush1.msra.mxu0 0.0
    %2003 = vmatprep.subr.mxu0 0.0
    %2004 = vmatpush1.msra.mxu0 0.0
    %2005 = vmatprep.subr.mxu0 0.0
    %2006 = vmatpush1.msra.mxu0 0.0
    %2007 = vmatprep.subr.mxu0 0.0
    %2008 = vmatpush1.msra.mxu0 0.0
    %2009 = vmatprep.subr.mxu0 0.0
    %2010 = vmatpush1.msra.mxu0 0.0
    %2011 = vmatprep.subr.mxu0 0.0
    %2012 = vmatpush1.msra.mxu0 0.0
    %2013 = vmatprep.subr.mxu0 0.0
    %2014 = vmatpush1.msra.mxu0 0.0
    %2015 = vmatprep.subr.mxu0 0.0
    %2016 = vmatpush1.msra.mxu0 0.0
    %2017 = vmatprep.subr.mxu0 0.0
    %2018 = vmatpush1.msra.mxu0 0.0
    %2019 = vmatprep.subr.mxu0 0.0
    %2020 = vmatpush1.msra.mxu0 0.0
    %2021 = vmatprep.subr.mxu0 0.0
    %2022 = vmatpush1.msra.mxu0 0.0
    %2023 = vmatprep.subr.mxu0 0.0
    %2024 = vmatpush1.msra.mxu0 0.0
    %2025 = vmatprep.subr.mxu0 0.0
    %2026 = vmatpush1.msra.mxu0 0.0
    %2027 = vmatprep.subr.mxu0 0.0
    %2028 = vmatpush1.msra.mxu0 0.0
    %2029 = vmatprep.subr.mxu0 0.0
    %2030 = vmatpush1.msra.mxu0 0.0
    %2031 = vmatprep.subr.mxu0 0.0
    %2032 = vmatpush1.msra.mxu0 0.0
    %2033 = vmatprep.subr.mxu0 0.0
    %2034 = vmatpush1.msra.mxu0 0.0
    %2035 = vmatprep.subr.mxu0 0.0
    %2036 = vmatpush1.msra.mxu0 0.0
    %2037 = vmatprep.subr.mxu0 0.0
    %2038 = vmatpush1.msra.mxu0 0.0
    %2039 = vmatprep.subr.mxu0 0.0
    %2040 = vmatpush1.msra.mxu0 0.0
    %2041 = vmatprep.subr.mxu0 0.0
    %2042 = vmatpush1.msra.mxu0 0.0
    %2043 = vmatprep.mubr.f32.mxu0 0.0
    %2044 = vmatmul.mubr.f32.gmra.mrb[0].mxu0 %v1823
    %v2045 = vpop.f32.mrb[0].mxu0
    %v2046 = vadd.f32 0.0, %v2045
    %v2047 = vpop.f32.mrb[0].mxu0
    %2048 = vdwg.mxu0
    %v2049 = vadd.f32 %v406, %v2046
    %v2050 = vtanh.pop %v2049
    %2051 = vmatprep.subr.mxu0 0.0
    %2052 = vmatpush1.msra.mxu0 %v569
    %2053 = vmatprep.subr.mxu0 0.0
    %2054 = vmatpush1.msra.mxu0 %v570
    %2055 = vmatprep.subr.mxu0 0.0
    %2056 = vmatpush1.msra.mxu0 %v571
    %2057 = vmatprep.subr.mxu0 0.0
    %2058 = vmatpush1.msra.mxu0 %v572
    %2059 = vmatprep.subr.mxu0 0.0
    %2060 = vmatpush1.msra.mxu0 %v573
    %2061 = vmatprep.subr.mxu0 0.0
    %2062 = vmatpush1.msra.mxu0 %v574
    %2063 = vmatprep.subr.mxu0 0.0
    %2064 = vmatpush1.msra.mxu0 %v575
    %2065 = vmatprep.subr.mxu0 0.0
    %2066 = vmatpush1.msra.mxu0 %v576
    %2067 = vmatprep.subr.mxu0 0.0
    %2068 = vmatpush1.msra.mxu0 0.0
    %2069 = vmatprep.subr.mxu0 0.0
    %2070 = vmatpush1.msra.mxu0 0.0
    %2071 = vmatprep.subr.mxu0 0.0
    %2072 = vmatpush1.msra.mxu0 0.0
    %2073 = vmatprep.subr.mxu0 0.0
    %2074 = vmatpush1.msra.mxu0 0.0
    %2075 = vmatprep.subr.mxu0 0.0
    %2076 = vmatpush1.msra.mxu0 0.0
    %2077 = vmatprep.subr.mxu0 0.0
    %2078 = vmatpush1.msra.mxu0 0.0
    %2079 = vmatprep.subr.mxu0 0.0
    %2080 = vmatpush1.msra.mxu0 0.0
    %2081 = vmatprep.subr.mxu0 0.0
    %2082 = vmatpush1.msra.mxu0 0.0
    %2083 = vmatprep.subr.mxu0 0.0
    %2084 = vmatpush1.msra.mxu0 0.0
    %2085 = vmatprep.subr.mxu0 0.0
    %2086 = vmatpush1.msra.mxu0 0.0
    %2087 = vmatprep.subr.mxu0 0.0
    %2088 = vmatpush1.msra.mxu0 0.0
    %2089 = vmatprep.subr.mxu0 0.0
    %2090 = vmatpush1.msra.mxu0 0.0
    %2091 = vmatprep.subr.mxu0 0.0
    %2092 = vmatpush1.msra.mxu0 0.0
    %2093 = vmatprep.subr.mxu0 0.0
    %2094 = vmatpush1.msra.mxu0 0.0
    %2095 = vmatprep.subr.mxu0 0.0
    %2096 = vmatpush1.msra.mxu0 0.0
    %2097 = vmatprep.subr.mxu0 0.0
    %2098 = vmatpush1.msra.mxu0 0.0
    %2099 = vmatprep.subr.mxu0 0.0
    %2100 = vmatpush1.msra.mxu0 0.0
    %2101 = vmatprep.subr.mxu0 0.0
    %2102 = vmatpush1.msra.mxu0 0.0
    %2103 = vmatprep.subr.mxu0 0.0
    %2104 = vmatpush1.msra.mxu0 0.0
    %2105 = vmatprep.subr.mxu0 0.0
    %2106 = vmatpush1.msra.mxu0 0.0
    %2107 = vmatprep.subr.mxu0 0.0
    %2108 = vmatpush1.msra.mxu0 0.0
    %2109 = vmatprep.subr.mxu0 0.0
    %2110 = vmatpush1.msra.mxu0 0.0
    %2111 = vmatprep.subr.mxu0 0.0
    %2112 = vmatpush1.msra.mxu0 0.0
    %2113 = vmatprep.subr.mxu0 0.0
    %2114 = vmatpush1.msra.mxu0 0.0
    %2115 = vmatprep.mubr.f32.mxu0 0.0
    %2116 = vmatmul.mubr.f32.gmra.mrb[0].mxu0 %v1823
    %v2117 = vpop.f32.mrb[0].mxu0
    %v2118 = vadd.f32 0.0, %v2117
    %v2119 = vpop.f32.mrb[0].mxu0
    %2120 = vdwg.mxu0
    %v2121 = vadd.f32 %v524, %v2118
    %v2122 = vxor.u32 %v2121, 2147483648
    %v2123 = vmul.f32 %v2122, 1.442695
    %v2124 = vpow.pop %v2123
    %v2125 = vadd.f32 %v2124, 1.0
    %v2126 = vrcp.pop %v2125
    %v2127 = vmul.f32 1.0, %v2126
    %v2128 = vmul.f32 %v1978, %v1819
    %v2129 = vmul.f32 %v1901, %v2050
    %v2130 = vadd.f32 %v2128, %v2129
    %v2131 = vtanh.pop %v2130
    %v2132 = vmul.f32 %v2127, %v2131
    %v2134 = vsel %vm577, %v2132, 0
    %2136 = vmatprep.subr.mxu0 0.0
    %2137 = vmatpush1.msra.mxu0 %v542
    %2138 = vmatprep.subr.mxu0 0.0
    %2139 = vmatpush1.msra.mxu0 %v543
    %2140 = vmatprep.subr.mxu0 0.0
    %2141 = vmatpush1.msra.mxu0 %v544
    %2142 = vmatprep.subr.mxu0 0.0
    %2143 = vmatpush1.msra.mxu0 %v545
    %2144 = vmatprep.subr.mxu0 0.0
    %2145 = vmatpush1.msra.mxu0 %v546
    %2146 = vmatprep.subr.mxu0 0.0
    %2147 = vmatpush1.msra.mxu0 %v547
    %2148 = vmatprep.subr.mxu0 0.0
    %2149 = vmatpush1.msra.mxu0 %v548
    %2150 = vmatprep.subr.mxu0 0.0
    %2151 = vmatpush1.msra.mxu0 %v549
    %2152 = vmatprep.subr.mxu0 0.0
    %2153 = vmatpush1.msra.mxu0 0.0
    %2154 = vmatprep.subr.mxu0 0.0
    %2155 = vmatpush1.msra.mxu0 0.0
    %2156 = vmatprep.subr.mxu0 0.0
    %2157 = vmatpush1.msra.mxu0 0.0
    %2158 = vmatprep.subr.mxu0 0.0
    %2159 = vmatpush1.msra.mxu0 0.0
    %2160 = vmatprep.subr.mxu0 0.0
    %2161 = vmatpush1.msra.mxu0 0.0
    %2162 = vmatprep.subr.mxu0 0.0
    %2163 = vmatpush1.msra.mxu0 0.0
    %2164 = vmatprep.subr.mxu0 0.0
    %2165 = vmatpush1.msra.mxu0 0.0
    %2166 = vmatprep.subr.mxu0 0.0
    %2167 = vmatpush1.msra.mxu0 0.0
    %2168 = vmatprep.subr.mxu0 0.0
    %2169 = vmatpush1.msra.mxu0 0.0
    %2170 = vmatprep.subr.mxu0 0.0
    %2171 = vmatpush1.msra.mxu0 0.0
    %2172 = vmatprep.subr.mxu0 0.0
    %2173 = vmatpush1.msra.mxu0 0.0
    %2174 = vmatprep.subr.mxu0 0.0
    %2175 = vmatpush1.msra.mxu0 0.0
    %2176 = vmatprep.subr.mxu0 0.0
    %2177 = vmatpush1.msra.mxu0 0.0
    %2178 = vmatprep.subr.mxu0 0.0
    %2179 = vmatpush1.msra.mxu0 0.0
    %2180 = vmatprep.subr.mxu0 0.0
    %2181 = vmatpush1.msra.mxu0 0.0
    %2182 = vmatprep.subr.mxu0 0.0
    %2183 = vmatpush1.msra.mxu0 0.0
    %2184 = vmatprep.subr.mxu0 0.0
    %2185 = vmatpush1.msra.mxu0 0.0
    %2186 = vmatprep.subr.mxu0 0.0
    %2187 = vmatpush1.msra.mxu0 0.0
    %2188 = vmatprep.subr.mxu0 0.0
    %2189 = vmatpush1.msra.mxu0 0.0
    %2190 = vmatprep.subr.mxu0 0.0
    %2191 = vmatpush1.msra.mxu0 0.0
    %2192 = vmatprep.subr.mxu0 0.0
    %2193 = vmatpush1.msra.mxu0 0.0
    %2194 = vmatprep.subr.mxu0 0.0
    %2195 = vmatpush1.msra.mxu0 0.0
    %2196 = vmatprep.subr.mxu0 0.0
    %2197 = vmatpush1.msra.mxu0 0.0
    %2198 = vmatprep.subr.mxu0 0.0
    %2199 = vmatpush1.msra.mxu0 0.0
    %2200 = vmatprep.mubr.f32.mxu0 0.0
    %2201 = vmatmul.mubr.f32.gmra.mrb[0].mxu0 %v2134
    %v2202 = vpop.f32.mrb[0].mxu0
    %v2203 = vadd.f32 0.0, %v2202
    %v2204 = vpop.f32.mrb[0].mxu0
    %2205 = vdwg.mxu0
    %v2206 = vadd.f32 %v175, %v2203
    %v2207 = vxor.u32 %v2206, 2147483648
    %v2208 = vmul.f32 %v2207, 1.442695
    %v2209 = vpow.pop %v2208
    %v2210 = vadd.f32 %v2209, 1.0
    %v2211 = vrcp.pop %v2210
    %v2212 = vmul.f32 1.0, %v2211
    %2213 = vmatprep.subr.mxu0 0.0
    %2214 = vmatpush1.msra.mxu0 %v551
    %2215 = vmatprep.subr.mxu0 0.0
    %2216 = vmatpush1.msra.mxu0 %v552
    %2217 = vmatprep.subr.mxu0 0.0
    %2218 = vmatpush1.msra.mxu0 %v553
    %2219 = vmatprep.subr.mxu0 0.0
    %2220 = vmatpush1.msra.mxu0 %v554
    %2221 = vmatprep.subr.mxu0 0.0
    %2222 = vmatpush1.msra.mxu0 %v555
    %2223 = vmatprep.subr.mxu0 0.0
    %2224 = vmatpush1.msra.mxu0 %v556
    %2225 = vmatprep.subr.mxu0 0.0
    %2226 = vmatpush1.msra.mxu0 %v557
    %2227 = vmatprep.subr.mxu0 0.0
    %2228 = vmatpush1.msra.mxu0 %v558
    %2229 = vmatprep.subr.mxu0 0.0
    %2230 = vmatpush1.msra.mxu0 0.0
    %2231 = vmatprep.subr.mxu0 0.0
    %2232 = vmatpush1.msra.mxu0 0.0
    %2233 = vmatprep.subr.mxu0 0.0
    %2234 = vmatpush1.msra.mxu0 0.0
    %2235 = vmatprep.subr.mxu0 0.0
    %2236 = vmatpush1.msra.mxu0 0.0
    %2237 = vmatprep.subr.mxu0 0.0
    %2238 = vmatpush1.msra.mxu0 0.0
    %2239 = vmatprep.subr.mxu0 0.0
    %2240 = vmatpush1.msra.mxu0 0.0
    %2241 = vmatprep.subr.mxu0 0.0
    %2242 = vmatpush1.msra.mxu0 0.0
    %2243 = vmatprep.subr.mxu0 0.0
    %2244 = vmatpush1.msra.mxu0 0.0
    %2245 = vmatprep.subr.mxu0 0.0
    %2246 = vmatpush1.msra.mxu0 0.0
    %2247 = vmatprep.subr.mxu0 0.0
    %2248 = vmatpush1.msra.mxu0 0.0
    %2249 = vmatprep.subr.mxu0 0.0
    %2250 = vmatpush1.msra.mxu0 0.0
    %2251 = vmatprep.subr.mxu0 0.0
    %2252 = vmatpush1.msra.mxu0 0.0
    %2253 = vmatprep.subr.mxu0 0.0
    %2254 = vmatpush1.msra.mxu0 0.0
    %2255 = vmatprep.subr.mxu0 0.0
    %2256 = vmatpush1.msra.mxu0 0.0
    %2257 = vmatprep.subr.mxu0 0.0
    %2258 = vmatpush1.msra.mxu0 0.0
    %2259 = vmatprep.subr.mxu0 0.0
    %2260 = vmatpush1.msra.mxu0 0.0
    %2261 = vmatprep.subr.mxu0 0.0
    %2262 = vmatpush1.msra.mxu0 0.0
    %2263 = vmatprep.subr.mxu0 0.0
    %2264 = vmatpush1.msra.mxu0 0.0
    %2265 = vmatprep.subr.mxu0 0.0
    %2266 = vmatpush1.msra.mxu0 0.0
    %2267 = vmatprep.subr.mxu0 0.0
    %2268 = vmatpush1.msra.mxu0 0.0
    %2269 = vmatprep.subr.mxu0 0.0
    %2270 = vmatpush1.msra.mxu0 0.0
    %2271 = vmatprep.subr.mxu0 0.0
    %2272 = vmatpush1.msra.mxu0 0.0
    %2273 = vmatprep.subr.mxu0 0.0
    %2274 = vmatpush1.msra.mxu0 0.0
    %2275 = vmatprep.subr.mxu0 0.0
    %2276 = vmatpush1.msra.mxu0 0.0
    %2277 = vmatprep.mubr.f32.mxu0 0.0
    %2278 = vmatmul.mubr.f32.gmra.mrb[0].mxu0 %v2134
    %v2279 = vpop.f32.mrb[0].mxu0
    %v2280 = vadd.f32 0.0, %v2279
    %v2281 = vpop.f32.mrb[0].mxu0
    %2282 = vdwg.mxu0
    %v2283 = vadd.f32 %v293, %v2280
    %v2284 = vxor.u32 %v2283, 2147483648
    %v2285 = vmul.f32 %v2284, 1.442695
    %v2286 = vpow.pop %v2285
    %v2287 = vadd.f32 %v2286, 1.0
    %v2288 = vrcp.pop %v2287
    %v2289 = vmul.f32 1.0, %v2288
    %2290 = vmatprep.subr.mxu0 0.0
    %2291 = vmatpush1.msra.mxu0 %v560
    %2292 = vmatprep.subr.mxu0 0.0
    %2293 = vmatpush1.msra.mxu0 %v561
    %2294 = vmatprep.subr.mxu0 0.0
    %2295 = vmatpush1.msra.mxu0 %v562
    %2296 = vmatprep.subr.mxu0 0.0
    %2297 = vmatpush1.msra.mxu0 %v563
    %2298 = vmatprep.subr.mxu0 0.0
    %2299 = vmatpush1.msra.mxu0 %v564
    %2300 = vmatprep.subr.mxu0 0.0
    %2301 = vmatpush1.msra.mxu0 %v565
    %2302 = vmatprep.subr.mxu0 0.0
    %2303 = vmatpush1.msra.mxu0 %v566
    %2304 = vmatprep.subr.mxu0 0.0
    %2305 = vmatpush1.msra.mxu0 %v567
    %2306 = vmatprep.subr.mxu0 0.0
    %2307 = vmatpush1.msra.mxu0 0.0
    %2308 = vmatprep.subr.mxu0 0.0
    %2309 = vmatpush1.msra.mxu0 0.0
    %2310 = vmatprep.subr.mxu0 0.0
    %2311 = vmatpush1.msra.mxu0 0.0
    %2312 = vmatprep.subr.mxu0 0.0
    %2313 = vmatpush1.msra.mxu0 0.0
    %2314 = vmatprep.subr.mxu0 0.0
    %2315 = vmatpush1.msra.mxu0 0.0
    %2316 = vmatprep.subr.mxu0 0.0
    %2317 = vmatpush1.msra.mxu0 0.0
    %2318 = vmatprep.subr.mxu0 0.0
    %2319 = vmatpush1.msra.mxu0 0.0
    %2320 = vmatprep.subr.mxu0 0.0
    %2321 = vmatpush1.msra.mxu0 0.0
    %2322 = vmatprep.subr.mxu0 0.0
    %2323 = vmatpush1.msra.mxu0 0.0
    %2324 = vmatprep.subr.mxu0 0.0
    %2325 = vmatpush1.msra.mxu0 0.0
    %2326 = vmatprep.subr.mxu0 0.0
    %2327 = vmatpush1.msra.mxu0 0.0
    %2328 = vmatprep.subr.mxu0 0.0
    %2329 = vmatpush1.msra.mxu0 0.0
    %2330 = vmatprep.subr.mxu0 0.0
    %2331 = vmatpush1.msra.mxu0 0.0
    %2332 = vmatprep.subr.mxu0 0.0
    %2333 = vmatpush1.msra.mxu0 0.0
    %2334 = vmatprep.subr.mxu0 0.0
    %2335 = vmatpush1.msra.mxu0 0.0
    %2336 = vmatprep.subr.mxu0 0.0
    %2337 = vmatpush1.msra.mxu0 0.0
    %2338 = vmatprep.subr.mxu0 0.0
    %2339 = vmatpush1.msra.mxu0 0.0
    %2340 = vmatprep.subr.mxu0 0.0
    %2341 = vmatpush1.msra.mxu0 0.0
    %2342 = vmatprep.subr.mxu0 0.0
    %2343 = vmatpush1.msra.mxu0 0.0
    %2344 = vmatprep.subr.mxu0 0.0
    %2345 = vmatpush1.msra.mxu0 0.0
    %2346 = vmatprep.subr.mxu0 0.0
    %2347 = vmatpush1.msra.mxu0 0.0
    %2348 = vmatprep.subr.mxu0 0.0
    %2349 = vmatpush1.msra.mxu0 0.0
    %2350 = vmatprep.subr.mxu0 0.0
    %2351 = vmatpush1.msra.mxu0 0.0
    %2352 = vmatprep.subr.mxu0 0.0
    %2353 = vmatpush1.msra.mxu0 0.0
    %2354 = vmatprep.mubr.f32.mxu0 0.0
    %2355 = vmatmul.mubr.f32.gmra.mrb[0].mxu0 %v2134
    %v2356 = vpop.f32.mrb[0].mxu0
    %v2357 = vadd.f32 0.0, %v2356
    %v2358 = vpop.f32.mrb[0].mxu0
    %2359 = vdwg.mxu0
    %v2360 = vadd.f32 %v411, %v2357
    %v2361 = vtanh.pop %v2360
    %2362 = vmatprep.subr.mxu0 0.0
    %2363 = vmatpush1.msra.mxu0 %v569
    %2364 = vmatprep.subr.mxu0 0.0
    %2365 = vmatpush1.msra.mxu0 %v570
    %2366 = vmatprep.subr.mxu0 0.0
    %2367 = vmatpush1.msra.mxu0 %v571
    %2368 = vmatprep.subr.mxu0 0.0
    %2369 = vmatpush1.msra.mxu0 %v572
    %2370 = vmatprep.subr.mxu0 0.0
    %2371 = vmatpush1.msra.mxu0 %v573
    %2372 = vmatprep.subr.mxu0 0.0
    %2373 = vmatpush1.msra.mxu0 %v574
    %2374 = vmatprep.subr.mxu0 0.0
    %2375 = vmatpush1.msra.mxu0 %v575
    %2376 = vmatprep.subr.mxu0 0.0
    %2377 = vmatpush1.msra.mxu0 %v576
    %2378 = vmatprep.subr.mxu0 0.0
    %2379 = vmatpush1.msra.mxu0 0.0
    %2380 = vmatprep.subr.mxu0 0.0
    %2381 = vmatpush1.msra.mxu0 0.0
    %2382 = vmatprep.subr.mxu0 0.0
    %2383 = vmatpush1.msra.mxu0 0.0
    %2384 = vmatprep.subr.mxu0 0.0
    %2385 = vmatpush1.msra.mxu0 0.0
    %2386 = vmatprep.subr.mxu0 0.0
    %2387 = vmatpush1.msra.mxu0 0.0
    %2388 = vmatprep.subr.mxu0 0.0
    %2389 = vmatpush1.msra.mxu0 0.0
    %2390 = vmatprep.subr.mxu0 0.0
    %2391 = vmatpush1.msra.mxu0 0.0
    %2392 = vmatprep.subr.mxu0 0.0
    %2393 = vmatpush1.msra.mxu0 0.0
    %2394 = vmatprep.subr.mxu0 0.0
    %2395 = vmatpush1.msra.mxu0 0.0
    %2396 = vmatprep.subr.mxu0 0.0
    %2397 = vmatpush1.msra.mxu0 0.0
    %2398 = vmatprep.subr.mxu0 0.0
    %2399 = vmatpush1.msra.mxu0 0.0
    %2400 = vmatprep.subr.mxu0 0.0
    %2401 = vmatpush1.msra.mxu0 0.0
    %2402 = vmatprep.subr.mxu0 0.0
    %2403 = vmatpush1.msra.mxu0 0.0
    %2404 = vmatprep.subr.mxu0 0.0
    %2405 = vmatpush1.msra.mxu0 0.0
    %2406 = vmatprep.subr.mxu0 0.0
    %2407 = vmatpush1.msra.mxu0 0.0
    %2408 = vmatprep.subr.mxu0 0.0
    %2409 = vmatpush1.msra.mxu0 0.0
    %2410 = vmatprep.subr.mxu0 0.0
    %2411 = vmatpush1.msra.mxu0 0.0
    %2412 = vmatprep.subr.mxu0 0.0
    %2413 = vmatpush1.msra.mxu0 0.0
    %2414 = vmatprep.subr.mxu0 0.0
    %2415 = vmatpush1.msra.mxu0 0.0
    %2416 = vmatprep.subr.mxu0 0.0
    %2417 = vmatpush1.msra.mxu0 0.0
    %2418 = vmatprep.subr.mxu0 0.0
    %2419 = vmatpush1.msra.mxu0 0.0
    %2420 = vmatprep.subr.mxu0 0.0
    %2421 = vmatpush1.msra.mxu0 0.0
    %2422 = vmatprep.subr.mxu0 0.0
    %2423 = vmatpush1.msra.mxu0 0.0
    %2424 = vmatprep.subr.mxu0 0.0
    %2425 = vmatpush1.msra.mxu0 0.0
    %2426 = vmatprep.mubr.f32.mxu0 0.0
    %2427 = vmatmul.mubr.f32.gmra.mrb[0].mxu0 %v2134
    %v2428 = vpop.f32.mrb[0].mxu0
    %v2429 = vadd.f32 0.0, %v2428
    %v2430 = vpop.f32.mrb[0].mxu0
    %2431 = vdwg.mxu0
    %v2432 = vadd.f32 %v529, %v2429
    %v2433 = vxor.u32 %v2432, 2147483648
    %v2434 = vmul.f32 %v2433, 1.442695
    %v2435 = vpow.pop %v2434
    %v2436 = vadd.f32 %v2435, 1.0
    %v2437 = vrcp.pop %v2436
    %v2438 = vmul.f32 1.0, %v2437
    %v2439 = vmul.f32 %v2289, %v2130
    %v2440 = vmul.f32 %v2212, %v2361
    %v2441 = vadd.f32 %v2439, %v2440
    %v2442 = vtanh.pop %v2441
    %v2443 = vmul.f32 %v2438, %v2442
    %v2445 = vsel %vm577, %v2443, 0
    %2447 = vmatprep.subr.mxu0 0.0
    %2448 = vmatpush1.msra.mxu0 %v542
    %2449 = vmatprep.subr.mxu0 0.0
    %2450 = vmatpush1.msra.mxu0 %v543
    %2451 = vmatprep.subr.mxu0 0.0
    %2452 = vmatpush1.msra.mxu0 %v544
    %2453 = vmatprep.subr.mxu0 0.0
    %2454 = vmatpush1.msra.mxu0 %v545
    %2455 = vmatprep.subr.mxu0 0.0
    %2456 = vmatpush1.msra.mxu0 %v546
    %2457 = vmatprep.subr.mxu0 0.0
    %2458 = vmatpush1.msra.mxu0 %v547
    %2459 = vmatprep.subr.mxu0 0.0
    %2460 = vmatpush1.msra.mxu0 %v548
    %2461 = vmatprep.subr.mxu0 0.0
    %2462 = vmatpush1.msra.mxu0 %v549
    %2463 = vmatprep.subr.mxu0 0.0
    %2464 = vmatpush1.msra.mxu0 0.0
    %2465 = vmatprep.subr.mxu0 0.0
    %2466 = vmatpush1.msra.mxu0 0.0
    %2467 = vmatprep.subr.mxu0 0.0
    %2468 = vmatpush1.msra.mxu0 0.0
    %2469 = vmatprep.subr.mxu0 0.0
    %2470 = vmatpush1.msra.mxu0 0.0
    %2471 = vmatprep.subr.mxu0 0.0
    %2472 = vmatpush1.msra.mxu0 0.0
    %2473 = vmatprep.subr.mxu0 0.0
    %2474 = vmatpush1.msra.mxu0 0.0
    %2475 = vmatprep.subr.mxu0 0.0
    %2476 = vmatpush1.msra.mxu0 0.0
    %2477 = vmatprep.subr.mxu0 0.0
    %2478 = vmatpush1.msra.mxu0 0.0
    %2479 = vmatprep.subr.mxu0 0.0
    %2480 = vmatpush1.msra.mxu0 0.0
    %2481 = vmatprep.subr.mxu0 0.0
    %2482 = vmatpush1.msra.mxu0 0.0
    %2483 = vmatprep.subr.mxu0 0.0
    %2484 = vmatpush1.msra.mxu0 0.0
    %2485 = vmatprep.subr.mxu0 0.0
    %2486 = vmatpush1.msra.mxu0 0.0
    %2487 = vmatprep.subr.mxu0 0.0
    %2488 = vmatpush1.msra.mxu0 0.0
    %2489 = vmatprep.subr.mxu0 0.0
    %2490 = vmatpush1.msra.mxu0 0.0
    %2491 = vmatprep.subr.mxu0 0.0
    %2492 = vmatpush1.msra.mxu0 0.0
    %2493 = vmatprep.subr.mxu0 0.0
    %2494 = vmatpush1.msra.mxu0 0.0
    %2495 = vmatprep.subr.mxu0 0.0
    %2496 = vmatpush1.msra.mxu0 0.0
    %2497 = vmatprep.subr.mxu0 0.0
    %2498 = vmatpush1.msra.mxu0 0.0
    %2499 = vmatprep.subr.mxu0 0.0
    %2500 = vmatpush1.msra.mxu0 0.0
    %2501 = vmatprep.subr.mxu0 0.0
    %2502 = vmatpush1.msra.mxu0 0.0
    %2503 = vmatprep.subr.mxu0 0.0
    %2504 = vmatpush1.msra.mxu0 0.0
    %2505 = vmatprep.subr.mxu0 0.0
    %2506 = vmatpush1.msra.mxu0 0.0
    %2507 = vmatprep.subr.mxu0 0.0
    %2508 = vmatpush1.msra.mxu0 0.0
    %2509 = vmatprep.subr.mxu0 0.0
    %2510 = vmatpush1.msra.mxu0 0.0
    %2511 = vmatprep.mubr.f32.mxu0 0.0
    %2512 = vmatmul.mubr.f32.gmra.mrb[0].mxu0 %v2445
    %v2513 = vpop.f32.mrb[0].mxu0
    %v2514 = vadd.f32 0.0, %v2513
    %v2515 = vpop.f32.mrb[0].mxu0
    %2516 = vdwg.mxu0
    %v2517 = vadd.f32 %v180, %v2514
    %v2518 = vxor.u32 %v2517, 2147483648
    %v2519 = vmul.f32 %v2518, 1.442695
    %v2520 = vpow.pop %v2519
    %v2521 = vadd.f32 %v2520, 1.0
    %v2522 = vrcp.pop %v2521
    %v2523 = vmul.f32 1.0, %v2522
    %2524 = vmatprep.subr.mxu0 0.0
    %2525 = vmatpush1.msra.mxu0 %v551
    %2526 = vmatprep.subr.mxu0 0.0
    %2527 = vmatpush1.msra.mxu0 %v552
    %2528 = vmatprep.subr.mxu0 0.0
    %2529 = vmatpush1.msra.mxu0 %v553
    %2530 = vmatprep.subr.mxu0 0.0
    %2531 = vmatpush1.msra.mxu0 %v554
    %2532 = vmatprep.subr.mxu0 0.0
    %2533 = vmatpush1.msra.mxu0 %v555
    %2534 = vmatprep.subr.mxu0 0.0
    %2535 = vmatpush1.msra.mxu0 %v556
    %2536 = vmatprep.subr.mxu0 0.0
    %2537 = vmatpush1.msra.mxu0 %v557
    %2538 = vmatprep.subr.mxu0 0.0
    %2539 = vmatpush1.msra.mxu0 %v558
    %2540 = vmatprep.subr.mxu0 0.0
    %2541 = vmatpush1.msra.mxu0 0.0
    %2542 = vmatprep.subr.mxu0 0.0
    %2543 = vmatpush1.msra.mxu0 0.0
    %2544 = vmatprep.subr.mxu0 0.0
    %2545 = vmatpush1.msra.mxu0 0.0
    %2546 = vmatprep.subr.mxu0 0.0
    %2547 = vmatpush1.msra.mxu0 0.0
    %2548 = vmatprep.subr.mxu0 0.0
    %2549 = vmatpush1.msra.mxu0 0.0
    %2550 = vmatprep.subr.mxu0 0.0
    %2551 = vmatpush1.msra.mxu0 0.0
    %2552 = vmatprep.subr.mxu0 0.0
    %2553 = vmatpush1.msra.mxu0 0.0
    %2554 = vmatprep.subr.mxu0 0.0
    %2555 = vmatpush1.msra.mxu0 0.0
    %2556 = vmatprep.subr.mxu0 0.0
    %2557 = vmatpush1.msra.mxu0 0.0
    %2558 = vmatprep.subr.mxu0 0.0
    %2559 = vmatpush1.msra.mxu0 0.0
    %2560 = vmatprep.subr.mxu0 0.0
    %2561 = vmatpush1.msra.mxu0 0.0
    %2562 = vmatprep.subr.mxu0 0.0
    %2563 = vmatpush1.msra.mxu0 0.0
    %2564 = vmatprep.subr.mxu0 0.0
    %2565 = vmatpush1.msra.mxu0 0.0
    %2566 = vmatprep.subr.mxu0 0.0
    %2567 = vmatpush1.msra.mxu0 0.0
    %2568 = vmatprep.subr.mxu0 0.0
    %2569 = vmatpush1.msra.mxu0 0.0
    %2570 = vmatprep.subr.mxu0 0.0
    %2571 = vmatpush1.msra.mxu0 0.0
    %2572 = vmatprep.subr.mxu0 0.0
    %2573 = vmatpush1.msra.mxu0 0.0
    %2574 = vmatprep.subr.mxu0 0.0
    %2575 = vmatpush1.msra.mxu0 0.0
    %2576 = vmatprep.subr.mxu0 0.0
    %2577 = vmatpush1.msra.mxu0 0.0
    %2578 = vmatprep.subr.mxu0 0.0
    %2579 = vmatpush1.msra.mxu0 0.0
    %2580 = vmatprep.subr.mxu0 0.0
    %2581 = vmatpush1.msra.mxu0 0.0
    %2582 = vmatprep.subr.mxu0 0.0
    %2583 = vmatpush1.msra.mxu0 0.0
    %2584 = vmatprep.subr.mxu0 0.0
    %2585 = vmatpush1.msra.mxu0 0.0
    %2586 = vmatprep.subr.mxu0 0.0
    %2587 = vmatpush1.msra.mxu0 0.0
    %2588 = vmatprep.mubr.f32.mxu0 0.0
    %2589 = vmatmul.mubr.f32.gmra.mrb[0].mxu0 %v2445
    %v2590 = vpop.f32.mrb[0].mxu0
    %v2591 = vadd.f32 0.0, %v2590
    %v2592 = vpop.f32.mrb[0].mxu0
    %2593 = vdwg.mxu0
    %v2594 = vadd.f32 %v298, %v2591
    %v2595 = vxor.u32 %v2594, 2147483648
    %v2596 = vmul.f32 %v2595, 1.442695
    %v2597 = vpow.pop %v2596
    %v2598 = vadd.f32 %v2597, 1.0
    %v2599 = vrcp.pop %v2598
    %v2600 = vmul.f32 1.0, %v2599
    %2601 = vmatprep.subr.mxu0 0.0
    %2602 = vmatpush1.msra.mxu0 %v560
    %2603 = vmatprep.subr.mxu0 0.0
    %2604 = vmatpush1.msra.mxu0 %v561
    %2605 = vmatprep.subr.mxu0 0.0
    %2606 = vmatpush1.msra.mxu0 %v562
    %2607 = vmatprep.subr.mxu0 0.0
    %2608 = vmatpush1.msra.mxu0 %v563
    %2609 = vmatprep.subr.mxu0 0.0
    %2610 = vmatpush1.msra.mxu0 %v564
    %2611 = vmatprep.subr.mxu0 0.0
    %2612 = vmatpush1.msra.mxu0 %v565
    %2613 = vmatprep.subr.mxu0 0.0
    %2614 = vmatpush1.msra.mxu0 %v566
    %2615 = vmatprep.subr.mxu0 0.0
    %2616 = vmatpush1.msra.mxu0 %v567
    %2617 = vmatprep.subr.mxu0 0.0
    %2618 = vmatpush1.msra.mxu0 0.0
    %2619 = vmatprep.subr.mxu0 0.0
    %2620 = vmatpush1.msra.mxu0 0.0
    %2621 = vmatprep.subr.mxu0 0.0
    %2622 = vmatpush1.msra.mxu0 0.0
    %2623 = vmatprep.subr.mxu0 0.0
    %2624 = vmatpush1.msra.mxu0 0.0
    %2625 = vmatprep.subr.mxu0 0.0
    %2626 = vmatpush1.msra.mxu0 0.0
    %2627 = vmatprep.subr.mxu0 0.0
    %2628 = vmatpush1.msra.mxu0 0.0
    %2629 = vmatprep.subr.mxu0 0.0
    %2630 = vmatpush1.msra.mxu0 0.0
    %2631 = vmatprep.subr.mxu0 0.0
    %2632 = vmatpush1.msra.mxu0 0.0
    %2633 = vmatprep.subr.mxu0 0.0
    %2634 = vmatpush1.msra.mxu0 0.0
    %2635 = vmatprep.subr.mxu0 0.0
    %2636 = vmatpush1.msra.mxu0 0.0
    %2637 = vmatprep.subr.mxu0 0.0
    %2638 = vmatpush1.msra.mxu0 0.0
    %2639 = vmatprep.subr.mxu0 0.0
    %2640 = vmatpush1.msra.mxu0 0.0
    %2641 = vmatprep.subr.mxu0 0.0
    %2642 = vmatpush1.msra.mxu0 0.0
    %2643 = vmatprep.subr.mxu0 0.0
    %2644 = vmatpush1.msra.mxu0 0.0
    %2645 = vmatprep.subr.mxu0 0.0
    %2646 = vmatpush1.msra.mxu0 0.0
    %2647 = vmatprep.subr.mxu0 0.0
    %2648 = vmatpush1.msra.mxu0 0.0
    %2649 = vmatprep.subr.mxu0 0.0
    %2650 = vmatpush1.msra.mxu0 0.0
    %2651 = vmatprep.subr.mxu0 0.0
    %2652 = vmatpush1.msra.mxu0 0.0
    %2653 = vmatprep.subr.mxu0 0.0
    %2654 = vmatpush1.msra.mxu0 0.0
    %2655 = vmatprep.subr.mxu0 0.0
    %2656 = vmatpush1.msra.mxu0 0.0
    %2657 = vmatprep.subr.mxu0 0.0
    %2658 = vmatpush1.msra.mxu0 0.0
    %2659 = vmatprep.subr.mxu0 0.0
    %2660 = vmatpush1.msra.mxu0 0.0
    %2661 = vmatprep.subr.mxu0 0.0
    %2662 = vmatpush1.msra.mxu0 0.0
    %2663 = vmatprep.subr.mxu0 0.0
    %2664 = vmatpush1.msra.mxu0 0.0
    %2665 = vmatprep.mubr.f32.mxu0 0.0
    %2666 = vmatmul.mubr.f32.gmra.mrb[0].mxu0 %v2445
    %v2667 = vpop.f32.mrb[0].mxu0
    %v2668 = vadd.f32 0.0, %v2667
    %v2669 = vpop.f32.mrb[0].mxu0
    %2670 = vdwg.mxu0
    %v2671 = vadd.f32 %v416, %v2668
    %v2672 = vtanh.pop %v2671
    %2673 = vmatprep.subr.mxu0 0.0
    %2674 = vmatpush1.msra.mxu0 %v569
    %2675 = vmatprep.subr.mxu0 0.0
    %2676 = vmatpush1.msra.mxu0 %v570
    %2677 = vmatprep.subr.mxu0 0.0
    %2678 = vmatpush1.msra.mxu0 %v571
    %2679 = vmatprep.subr.mxu0 0.0
    %2680 = vmatpush1.msra.mxu0 %v572
    %2681 = vmatprep.subr.mxu0 0.0
    %2682 = vmatpush1.msra.mxu0 %v573
    %2683 = vmatprep.subr.mxu0 0.0
    %2684 = vmatpush1.msra.mxu0 %v574
    %2685 = vmatprep.subr.mxu0 0.0
    %2686 = vmatpush1.msra.mxu0 %v575
    %2687 = vmatprep.subr.mxu0 0.0
    %2688 = vmatpush1.msra.mxu0 %v576
    %2689 = vmatprep.subr.mxu0 0.0
    %2690 = vmatpush1.msra.mxu0 0.0
    %2691 = vmatprep.subr.mxu0 0.0
    %2692 = vmatpush1.msra.mxu0 0.0
    %2693 = vmatprep.subr.mxu0 0.0
    %2694 = vmatpush1.msra.mxu0 0.0
    %2695 = vmatprep.subr.mxu0 0.0
    %2696 = vmatpush1.msra.mxu0 0.0
    %2697 = vmatprep.subr.mxu0 0.0
    %2698 = vmatpush1.msra.mxu0 0.0
    %2699 = vmatprep.subr.mxu0 0.0
    %2700 = vmatpush1.msra.mxu0 0.0
    %2701 = vmatprep.subr.mxu0 0.0
    %2702 = vmatpush1.msra.mxu0 0.0
    %2703 = vmatprep.subr.mxu0 0.0
    %2704 = vmatpush1.msra.mxu0 0.0
    %2705 = vmatprep.subr.mxu0 0.0
    %2706 = vmatpush1.msra.mxu0 0.0
    %2707 = vmatprep.subr.mxu0 0.0
    %2708 = vmatpush1.msra.mxu0 0.0
    %2709 = vmatprep.subr.mxu0 0.0
    %2710 = vmatpush1.msra.mxu0 0.0
    %2711 = vmatprep.subr.mxu0 0.0
    %2712 = vmatpush1.msra.mxu0 0.0
    %2713 = vmatprep.subr.mxu0 0.0
    %2714 = vmatpush1.msra.mxu0 0.0
    %2715 = vmatprep.subr.mxu0 0.0
    %2716 = vmatpush1.msra.mxu0 0.0
    %2717 = vmatprep.subr.mxu0 0.0
    %2718 = vmatpush1.msra.mxu0 0.0
    %2719 = vmatprep.subr.mxu0 0.0
    %2720 = vmatpush1.msra.mxu0 0.0
    %2721 = vmatprep.subr.mxu0 0.0
    %2722 = vmatpush1.msra.mxu0 0.0
    %2723 = vmatprep.subr.mxu0 0.0
    %2724 = vmatpush1.msra.mxu0 0.0
    %2725 = vmatprep.subr.mxu0 0.0
    %2726 = vmatpush1.msra.mxu0 0.0
    %2727 = vmatprep.subr.mxu0 0.0
    %2728 = vmatpush1.msra.mxu0 0.0
    %2729 = vmatprep.subr.mxu0 0.0
    %2730 = vmatpush1.msra.mxu0 0.0
    %2731 = vmatprep.subr.mxu0 0.0
    %2732 = vmatpush1.msra.mxu0 0.0
    %2733 = vmatprep.subr.mxu0 0.0
    %2734 = vmatpush1.msra.mxu0 0.0
    %2735 = vmatprep.subr.mxu0 0.0
    %2736 = vmatpush1.msra.mxu0 0.0
    %2737 = vmatprep.mubr.f32.mxu0 0.0
    %2738 = vmatmul.mubr.f32.gmra.mrb[0].mxu0 %v2445
    %v2739 = vpop.f32.mrb[0].mxu0
    %v2740 = vadd.f32 0.0, %v2739
    %v2741 = vpop.f32.mrb[0].mxu0
    %2742 = vdwg.mxu0
    %v2743 = vadd.f32 %v534, %v2740
    %v2744 = vxor.u32 %v2743, 2147483648
    %v2745 = vmul.f32 %v2744, 1.442695
    %v2746 = vpow.pop %v2745
    %v2747 = vadd.f32 %v2746, 1.0
    %v2748 = vrcp.pop %v2747
    %v2749 = vmul.f32 1.0, %v2748
    %v2750 = vmul.f32 %v2600, %v2441
    %v2751 = vmul.f32 %v2523, %v2672
    %v2752 = vadd.f32 %v2750, %v2751
    %v2753 = vtanh.pop %v2752
    %v2754 = vmul.f32 %v2749, %v2753
    %v2756 = vsel %vm577, %v2754, 0
    %2758 = vmatprep.subr.mxu0 0.0
    %2759 = vmatpush1.msra.mxu0 %v542
    %2760 = vmatprep.subr.mxu0 0.0
    %2761 = vmatpush1.msra.mxu0 %v543
    %2762 = vmatprep.subr.mxu0 0.0
    %2763 = vmatpush1.msra.mxu0 %v544
    %2764 = vmatprep.subr.mxu0 0.0
    %2765 = vmatpush1.msra.mxu0 %v545
    %2766 = vmatprep.subr.mxu0 0.0
    %2767 = vmatpush1.msra.mxu0 %v546
    %2768 = vmatprep.subr.mxu0 0.0
    %2769 = vmatpush1.msra.mxu0 %v547
    %2770 = vmatprep.subr.mxu0 0.0
    %2771 = vmatpush1.msra.mxu0 %v548
    %2772 = vmatprep.subr.mxu0 0.0
    %2773 = vmatpush1.msra.mxu0 %v549
    %2774 = vmatprep.subr.mxu0 0.0
    %2775 = vmatpush1.msra.mxu0 0.0
    %2776 = vmatprep.subr.mxu0 0.0
    %2777 = vmatpush1.msra.mxu0 0.0
    %2778 = vmatprep.subr.mxu0 0.0
    %2779 = vmatpush1.msra.mxu0 0.0
    %2780 = vmatprep.subr.mxu0 0.0
    %2781 = vmatpush1.msra.mxu0 0.0
    %2782 = vmatprep.subr.mxu0 0.0
    %2783 = vmatpush1.msra.mxu0 0.0
    %2784 = vmatprep.subr.mxu0 0.0
    %2785 = vmatpush1.msra.mxu0 0.0
    %2786 = vmatprep.subr.mxu0 0.0
    %2787 = vmatpush1.msra.mxu0 0.0
    %2788 = vmatprep.subr.mxu0 0.0
    %2789 = vmatpush1.msra.mxu0 0.0
    %2790 = vmatprep.subr.mxu0 0.0
    %2791 = vmatpush1.msra.mxu0 0.0
    %2792 = vmatprep.subr.mxu0 0.0
    %2793 = vmatpush1.msra.mxu0 0.0
    %2794 = vmatprep.subr.mxu0 0.0
    %2795 = vmatpush1.msra.mxu0 0.0
    %2796 = vmatprep.subr.mxu0 0.0
    %2797 = vmatpush1.msra.mxu0 0.0
    %2798 = vmatprep.subr.mxu0 0.0
    %2799 = vmatpush1.msra.mxu0 0.0
    %2800 = vmatprep.subr.mxu0 0.0
    %2801 = vmatpush1.msra.mxu0 0.0
    %2802 = vmatprep.subr.mxu0 0.0
    %2803 = vmatpush1.msra.mxu0 0.0
    %2804 = vmatprep.subr.mxu0 0.0
    %2805 = vmatpush1.msra.mxu0 0.0
    %2806 = vmatprep.subr.mxu0 0.0
    %2807 = vmatpush1.msra.mxu0 0.0
    %2808 = vmatprep.subr.mxu0 0.0
    %2809 = vmatpush1.msra.mxu0 0.0
    %2810 = vmatprep.subr.mxu0 0.0
    %2811 = vmatpush1.msra.mxu0 0.0
    %2812 = vmatprep.subr.mxu0 0.0
    %2813 = vmatpush1.msra.mxu0 0.0
    %2814 = vmatprep.subr.mxu0 0.0
    %2815 = vmatpush1.msra.mxu0 0.0
    %2816 = vmatprep.subr.mxu0 0.0
    %2817 = vmatpush1.msra.mxu0 0.0
    %2818 = vmatprep.subr.mxu0 0.0
    %2819 = vmatpush1.msra.mxu0 0.0
    %2820 = vmatprep.subr.mxu0 0.0
    %2821 = vmatpush1.msra.mxu0 0.0
    %2822 = vmatprep.mubr.f32.mxu0 0.0
    %2823 = vmatmul.mubr.f32.gmra.mrb[0].mxu0 %v2756
    %v2824 = vpop.f32.mrb[0].mxu0
    %v2825 = vadd.f32 0.0, %v2824
    %v2826 = vpop.f32.mrb[0].mxu0
    %2827 = vdwg.mxu0
    %v2828 = vadd.f32 %v185, %v2825
    %v2829 = vxor.u32 %v2828, 2147483648
    %v2830 = vmul.f32 %v2829, 1.442695
    %v2831 = vpow.pop %v2830
    %v2832 = vadd.f32 %v2831, 1.0
    %v2833 = vrcp.pop %v2832
    %v2834 = vmul.f32 1.0, %v2833
    %2835 = vmatprep.subr.mxu0 0.0
    %2836 = vmatpush1.msra.mxu0 %v551
    %2837 = vmatprep.subr.mxu0 0.0
    %2838 = vmatpush1.msra.mxu0 %v552
    %2839 = vmatprep.subr.mxu0 0.0
    %2840 = vmatpush1.msra.mxu0 %v553
    %2841 = vmatprep.subr.mxu0 0.0
    %2842 = vmatpush1.msra.mxu0 %v554
    %2843 = vmatprep.subr.mxu0 0.0
    %2844 = vmatpush1.msra.mxu0 %v555
    %2845 = vmatprep.subr.mxu0 0.0
    %2846 = vmatpush1.msra.mxu0 %v556
    %2847 = vmatprep.subr.mxu0 0.0
    %2848 = vmatpush1.msra.mxu0 %v557
    %2849 = vmatprep.subr.mxu0 0.0
    %2850 = vmatpush1.msra.mxu0 %v558
    %2851 = vmatprep.subr.mxu0 0.0
    %2852 = vmatpush1.msra.mxu0 0.0
    %2853 = vmatprep.subr.mxu0 0.0
    %2854 = vmatpush1.msra.mxu0 0.0
    %2855 = vmatprep.subr.mxu0 0.0
    %2856 = vmatpush1.msra.mxu0 0.0
    %2857 = vmatprep.subr.mxu0 0.0
    %2858 = vmatpush1.msra.mxu0 0.0
    %2859 = vmatprep.subr.mxu0 0.0
    %2860 = vmatpush1.msra.mxu0 0.0
    %2861 = vmatprep.subr.mxu0 0.0
    %2862 = vmatpush1.msra.mxu0 0.0
    %2863 = vmatprep.subr.mxu0 0.0
    %2864 = vmatpush1.msra.mxu0 0.0
    %2865 = vmatprep.subr.mxu0 0.0
    %2866 = vmatpush1.msra.mxu0 0.0
    %2867 = vmatprep.subr.mxu0 0.0
    %2868 = vmatpush1.msra.mxu0 0.0
    %2869 = vmatprep.subr.mxu0 0.0
    %2870 = vmatpush1.msra.mxu0 0.0
    %2871 = vmatprep.subr.mxu0 0.0
    %2872 = vmatpush1.msra.mxu0 0.0
    %2873 = vmatprep.subr.mxu0 0.0
    %2874 = vmatpush1.msra.mxu0 0.0
    %2875 = vmatprep.subr.mxu0 0.0
    %2876 = vmatpush1.msra.mxu0 0.0
    %2877 = vmatprep.subr.mxu0 0.0
    %2878 = vmatpush1.msra.mxu0 0.0
    %2879 = vmatprep.subr.mxu0 0.0
    %2880 = vmatpush1.msra.mxu0 0.0
    %2881 = vmatprep.subr.mxu0 0.0
    %2882 = vmatpush1.msra.mxu0 0.0
    %2883 = vmatprep.subr.mxu0 0.0
    %2884 = vmatpush1.msra.mxu0 0.0
    %2885 = vmatprep.subr.mxu0 0.0
    %2886 = vmatpush1.msra.mxu0 0.0
    %2887 = vmatprep.subr.mxu0 0.0
    %2888 = vmatpush1.msra.mxu0 0.0
    %2889 = vmatprep.subr.mxu0 0.0
    %2890 = vmatpush1.msra.mxu0 0.0
    %2891 = vmatprep.subr.mxu0 0.0
    %2892 = vmatpush1.msra.mxu0 0.0
    %2893 = vmatprep.subr.mxu0 0.0
    %2894 = vmatpush1.msra.mxu0 0.0
    %2895 = vmatprep.subr.mxu0 0.0
    %2896 = vmatpush1.msra.mxu0 0.0
    %2897 = vmatprep.subr.mxu0 0.0
    %2898 = vmatpush1.msra.mxu0 0.0
    %2899 = vmatprep.mubr.f32.mxu0 0.0
    %2900 = vmatmul.mubr.f32.gmra.mrb[0].mxu0 %v2756
    %v2901 = vpop.f32.mrb[0].mxu0
    %v2902 = vadd.f32 0.0, %v2901
    %v2903 = vpop.f32.mrb[0].mxu0
    %2904 = vdwg.mxu0
    %v2905 = vadd.f32 %v303, %v2902
    %v2906 = vxor.u32 %v2905, 2147483648
    %v2907 = vmul.f32 %v2906, 1.442695
    %v2908 = vpow.pop %v2907
    %v2909 = vadd.f32 %v2908, 1.0
    %v2910 = vrcp.pop %v2909
    %v2911 = vmul.f32 1.0, %v2910
    %2912 = vmatprep.subr.mxu0 0.0
    %2913 = vmatpush1.msra.mxu0 %v560
    %2914 = vmatprep.subr.mxu0 0.0
    %2915 = vmatpush1.msra.mxu0 %v561
    %2916 = vmatprep.subr.mxu0 0.0
    %2917 = vmatpush1.msra.mxu0 %v562
    %2918 = vmatprep.subr.mxu0 0.0
    %2919 = vmatpush1.msra.mxu0 %v563
    %2920 = vmatprep.subr.mxu0 0.0
    %2921 = vmatpush1.msra.mxu0 %v564
    %2922 = vmatprep.subr.mxu0 0.0
    %2923 = vmatpush1.msra.mxu0 %v565
    %2924 = vmatprep.subr.mxu0 0.0
    %2925 = vmatpush1.msra.mxu0 %v566
    %2926 = vmatprep.subr.mxu0 0.0
    %2927 = vmatpush1.msra.mxu0 %v567
    %2928 = vmatprep.subr.mxu0 0.0
    %2929 = vmatpush1.msra.mxu0 0.0
    %2930 = vmatprep.subr.mxu0 0.0
    %2931 = vmatpush1.msra.mxu0 0.0
    %2932 = vmatprep.subr.mxu0 0.0
    %2933 = vmatpush1.msra.mxu0 0.0
    %2934 = vmatprep.subr.mxu0 0.0
    %2935 = vmatpush1.msra.mxu0 0.0
    %2936 = vmatprep.subr.mxu0 0.0
    %2937 = vmatpush1.msra.mxu0 0.0
    %2938 = vmatprep.subr.mxu0 0.0
    %2939 = vmatpush1.msra.mxu0 0.0
    %2940 = vmatprep.subr.mxu0 0.0
    %2941 = vmatpush1.msra.mxu0 0.0
    %2942 = vmatprep.subr.mxu0 0.0
    %2943 = vmatpush1.msra.mxu0 0.0
    %2944 = vmatprep.subr.mxu0 0.0
    %2945 = vmatpush1.msra.mxu0 0.0
    %2946 = vmatprep.subr.mxu0 0.0
    %2947 = vmatpush1.msra.mxu0 0.0
    %2948 = vmatprep.subr.mxu0 0.0
    %2949 = vmatpush1.msra.mxu0 0.0
    %2950 = vmatprep.subr.mxu0 0.0
    %2951 = vmatpush1.msra.mxu0 0.0
    %2952 = vmatprep.subr.mxu0 0.0
    %2953 = vmatpush1.msra.mxu0 0.0
    %2954 = vmatprep.subr.mxu0 0.0
    %2955 = vmatpush1.msra.mxu0 0.0
    %2956 = vmatprep.subr.mxu0 0.0
    %2957 = vmatpush1.msra.mxu0 0.0
    %2958 = vmatprep.subr.mxu0 0.0
    %2959 = vmatpush1.msra.mxu0 0.0
    %2960 = vmatprep.subr.mxu0 0.0
    %2961 = vmatpush1.msra.mxu0 0.0
    %2962 = vmatprep.subr.mxu0 0.0
    %2963 = vmatpush1.msra.mxu0 0.0
    %2964 = vmatprep.subr.mxu0 0.0
    %2965 = vmatpush1.msra.mxu0 0.0
    %2966 = vmatprep.subr.mxu0 0.0
    %2967 = vmatpush1.msra.mxu0 0.0
    %2968 = vmatprep.subr.mxu0 0.0
    %2969 = vmatpush1.msra.mxu0 0.0
    %2970 = vmatprep.subr.mxu0 0.0
    %2971 = vmatpush1.msra.mxu0 0.0
    %2972 = vmatprep.subr.mxu0 0.0
    %2973 = vmatpush1.msra.mxu0 0.0
    %2974 = vmatprep.subr.mxu0 0.0
    %2975 = vmatpush1.msra.mxu0 0.0
    %2976 = vmatprep.mubr.f32.mxu0 0.0
    %2977 = vmatmul.mubr.f32.gmra.mrb[0].mxu0 %v2756
    %v2978 = vpop.f32.mrb[0].mxu0
    %v2979 = vadd.f32 0.0, %v2978
    %v2980 = vpop.f32.mrb[0].mxu0
    %2981 = vdwg.mxu0
    %v2982 = vadd.f32 %v421, %v2979
    %v2983 = vtanh.pop %v2982
    %2984 = vmatprep.subr.mxu0 0.0
    %2985 = vmatpush1.msra.mxu0 %v569
    %2986 = vmatprep.subr.mxu0 0.0
    %2987 = vmatpush1.msra.mxu0 %v570
    %2988 = vmatprep.subr.mxu0 0.0
    %2989 = vmatpush1.msra.mxu0 %v571
    %2990 = vmatprep.subr.mxu0 0.0
    %2991 = vmatpush1.msra.mxu0 %v572
    %2992 = vmatprep.subr.mxu0 0.0
    %2993 = vmatpush1.msra.mxu0 %v573
    %2994 = vmatprep.subr.mxu0 0.0
    %2995 = vmatpush1.msra.mxu0 %v574
    %2996 = vmatprep.subr.mxu0 0.0
    %2997 = vmatpush1.msra.mxu0 %v575
    %2998 = vmatprep.subr.mxu0 0.0
    %2999 = vmatpush1.msra.mxu0 %v576
    %3000 = vmatprep.subr.mxu0 0.0
    %3001 = vmatpush1.msra.mxu0 0.0
    %3002 = vmatprep.subr.mxu0 0.0
    %3003 = vmatpush1.msra.mxu0 0.0
    %3004 = vmatprep.subr.mxu0 0.0
    %3005 = vmatpush1.msra.mxu0 0.0
    %3006 = vmatprep.subr.mxu0 0.0
    %3007 = vmatpush1.msra.mxu0 0.0
    %3008 = vmatprep.subr.mxu0 0.0
    %3009 = vmatpush1.msra.mxu0 0.0
    %3010 = vmatprep.subr.mxu0 0.0
    %3011 = vmatpush1.msra.mxu0 0.0
    %3012 = vmatprep.subr.mxu0 0.0
    %3013 = vmatpush1.msra.mxu0 0.0
    %3014 = vmatprep.subr.mxu0 0.0
    %3015 = vmatpush1.msra.mxu0 0.0
    %3016 = vmatprep.subr.mxu0 0.0
    %3017 = vmatpush1.msra.mxu0 0.0
    %3018 = vmatprep.subr.mxu0 0.0
    %3019 = vmatpush1.msra.mxu0 0.0
    %3020 = vmatprep.subr.mxu0 0.0
    %3021 = vmatpush1.msra.mxu0 0.0
    %3022 = vmatprep.subr.mxu0 0.0
    %3023 = vmatpush1.msra.mxu0 0.0
    %3024 = vmatprep.subr.mxu0 0.0
    %3025 = vmatpush1.msra.mxu0 0.0
    %3026 = vmatprep.subr.mxu0 0.0
    %3027 = vmatpush1.msra.mxu0 0.0
    %3028 = vmatprep.subr.mxu0 0.0
    %3029 = vmatpush1.msra.mxu0 0.0
    %3030 = vmatprep.subr.mxu0 0.0
    %3031 = vmatpush1.msra.mxu0 0.0
    %3032 = vmatprep.subr.mxu0 0.0
    %3033 = vmatpush1.msra.mxu0 0.0
    %3034 = vmatprep.subr.mxu0 0.0
    %3035 = vmatpush1.msra.mxu0 0.0
    %3036 = vmatprep.subr.mxu0 0.0
    %3037 = vmatpush1.msra.mxu0 0.0
    %3038 = vmatprep.subr.mxu0 0.0
    %3039 = vmatpush1.msra.mxu0 0.0
    %3040 = vmatprep.subr.mxu0 0.0
    %3041 = vmatpush1.msra.mxu0 0.0
    %3042 = vmatprep.subr.mxu0 0.0
    %3043 = vmatpush1.msra.mxu0 0.0
    %3044 = vmatprep.subr.mxu0 0.0
    %3045 = vmatpush1.msra.mxu0 0.0
    %3046 = vmatprep.subr.mxu0 0.0
    %3047 = vmatpush1.msra.mxu0 0.0
    %3048 = vmatprep.mubr.f32.mxu0 0.0
    %3049 = vmatmul.mubr.f32.gmra.mrb[0].mxu0 %v2756
    %v3050 = vpop.f32.mrb[0].mxu0
    %v3051 = vadd.f32 0.0, %v3050
    %v3052 = vpop.f32.mrb[0].mxu0
    %3053 = vdwg.mxu0
    %v3054 = vadd.f32 %v539, %v3051
    %v3055 = vxor.u32 %v3054, 2147483648
    %v3056 = vmul.f32 %v3055, 1.442695
    %v3057 = vpow.pop %v3056
    %v3058 = vadd.f32 %v3057, 1.0
    %v3059 = vrcp.pop %v3058
    %v3060 = vmul.f32 1.0, %v3059
    %v3061 = vmul.f32 %v2911, %v2752
    %v3062 = vmul.f32 %v2834, %v2983
    %v3063 = vadd.f32 %v3061, %v3062
    %v3064 = vtanh.pop %v3063
    %v3065 = vmul.f32 %v3060, %v3064
    %v3066 = vld [vmem:[%s4] sm:$0xff]
    %v3067 = vld [vmem:[%s4 + $0x8] sm:$0xff]
    %v3068 = vld [vmem:[%s4 + $0x10] sm:$0xff]
    %v3069 = vld [vmem:[%s4 + $0x18] sm:$0xff]
    %v3070 = vld [vmem:[%s4 + $0x20] sm:$0xff]
    %v3071 = vld [vmem:[%s4 + $0x28] sm:$0xff]
    %v3072 = vld [vmem:[%s4 + $0x30] sm:$0xff]
    %v3073 = vld [vmem:[%s4 + $0x38] sm:$0xff]
    %v3074 = vld [vmem:[%s5] sm:$0x1]
    %v3076 = vlaneseq
    %v3077 = vshrl.u32 %v3076, 7
    %v3078 = vsub.s32 0, %v3077
    %v3079 = vrot.slane %v3074, %v3078
    %v3082 = vsel %vm577, %v3065, 0
    %3084 = vmatprep.subr.mxu0 0.0
    %3085 = vmatpush1.msra.mxu0 %v3066
    %3086 = vmatprep.subr.mxu0 0.0
    %3087 = vmatpush1.msra.mxu0 %v3067
    %3088 = vmatprep.subr.mxu0 0.0
    %3089 = vmatpush1.msra.mxu0 %v3068
    %3090 = vmatprep.subr.mxu0 0.0
    %3091 = vmatpush1.msra.mxu0 %v3069
    %3092 = vmatprep.subr.mxu0 0.0
    %3093 = vmatpush1.msra.mxu0 %v3070
    %3094 = vmatprep.subr.mxu0 0.0
    %3095 = vmatpush1.msra.mxu0 %v3071
    %3096 = vmatprep.subr.mxu0 0.0
    %3097 = vmatpush1.msra.mxu0 %v3072
    %3098 = vmatprep.subr.mxu0 0.0
    %3099 = vmatpush1.msra.mxu0 %v3073
    %3100 = vmatprep.subr.mxu0 0.0
    %3101 = vmatpush1.msra.mxu0 0.0
    %3102 = vmatprep.subr.mxu0 0.0
    %3103 = vmatpush1.msra.mxu0 0.0
    %3104 = vmatprep.subr.mxu0 0.0
    %3105 = vmatpush1.msra.mxu0 0.0
    %3106 = vmatprep.subr.mxu0 0.0
    %3107 = vmatpush1.msra.mxu0 0.0
    %3108 = vmatprep.subr.mxu0 0.0
    %3109 = vmatpush1.msra.mxu0 0.0
    %3110 = vmatprep.subr.mxu0 0.0
    %3111 = vmatpush1.msra.mxu0 0.0
    %3112 = vmatprep.subr.mxu0 0.0
    %3113 = vmatpush1.msra.mxu0 0.0
    %3114 = vmatprep.subr.mxu0 0.0
    %3115 = vmatpush1.msra.mxu0 0.0
    %3116 = vmatprep.subr.mxu0 0.0
    %3117 = vmatpush1.msra.mxu0 0.0
    %3118 = vmatprep.subr.mxu0 0.0
    %3119 = vmatpush1.msra.mxu0 0.0
    %3120 = vmatprep.subr.mxu0 0.0
    %3121 = vmatpush1.msra.mxu0 0.0
    %3122 = vmatprep.subr.mxu0 0.0
    %3123 = vmatpush1.msra.mxu0 0.0
    %3124 = vmatprep.subr.mxu0 0.0
    %3125 = vmatpush1.msra.mxu0 0.0
    %3126 = vmatprep.subr.mxu0 0.0
    %3127 = vmatpush1.msra.mxu0 0.0
    %3128 = vmatprep.subr.mxu0 0.0
    %3129 = vmatpush1.msra.mxu0 0.0
    %3130 = vmatprep.subr.mxu0 0.0
    %3131 = vmatpush1.msra.mxu0 0.0
    %3132 = vmatprep.subr.mxu0 0.0
    %3133 = vmatpush1.msra.mxu0 0.0
    %3134 = vmatprep.subr.mxu0 0.0
    %3135 = vmatpush1.msra.mxu0 0.0
    %3136 = vmatprep.subr.mxu0 0.0
    %3137 = vmatpush1.msra.mxu0 0.0
    %3138 = vmatprep.subr.mxu0 0.0
    %3139 = vmatpush1.msra.mxu0 0.0
    %3140 = vmatprep.subr.mxu0 0.0
    %3141 = vmatpush1.msra.mxu0 0.0
    %3142 = vmatprep.subr.mxu0 0.0
    %3143 = vmatpush1.msra.mxu0 0.0
    %3144 = vmatprep.subr.mxu0 0.0
    %3145 = vmatpush1.msra.mxu0 0.0
    %3146 = vmatprep.subr.mxu0 0.0
    %3147 = vmatpush1.msra.mxu0 0.0
    %3148 = vmatprep.mubr.f32.mxu0 0.0
    %3149 = vmatmul.mubr.f32.gmra.mrb[0].mxu0 %v3082
    %v3150 = vpop.f32.mrb[0].mxu0
    %v3151 = vadd.f32 %v3079, %v3150
    %v3152 = vpop.f32.mrb[0].mxu0
    %3153 = vdwg.mxu0
    %3154 = vst [vmem:[#allocation5] sm:$0xff] %v3151
    // Predicated region
    $region30: #{tpu_custom_call.1} parent=1 // pred_check
      _
    $region31: #{tpu_custom_call.1} parent=1 // pred_check_branch
      %3156 = sbr.rel (0) target = $region33
    $region32: #{tpu_custom_call.1} parent=1 // pred_region
      %s3158 = ssub.s32 128, 128
      %3159 = vsyncadd [#allocation4], %s3158
      %s3161 = sshll.u32 [#allocation5], 4
      %s3162 = int_to_ptr.vmem [resolvable:$true] %s3161
      %3164 = dma.vmem_to_hbm [thread:$0]  %s3162, 128, %s6, [#allocation4]
    $region33: #{tpu_custom_call.1} parent=1 // pred_fallthru
      _
    // Predicated region
    $region34: #{tpu_custom_call.1} parent=1 // pred_check
      _
    $region35: #{tpu_custom_call.1} parent=1 // pred_check_branch
      %3166 = sbr.rel (0) target = $region37
    $region36: #{tpu_custom_call.1} parent=1 // pred_region
      %3167 = dma.done [#allocation4], 128
    $region37: #{tpu_custom_call.1} parent=1 // pred_fallthru
      _
    %3168 = vsyncpa [#allocation3], 1
    %3169 = vsyncpa [#allocation4], 1

</llo_original>
